<compile_context>
chip_gen: v6e
topology: v6e:2x2x1
jax: 0.10.0
libtpu: 0.0.40
codegen_flags: <defaults>
</compile_context>

<pallas_src>
import jax
import jax.numpy as jnp
from jax.experimental import pallas as pl
from jax.experimental.pallas import tpu as pltpu


def net_kernel(x_ref, w1_ref, b1_ref, w2_ref, b2_ref, wo_ref, bo_ref, o_ref):
    # x block: (TILE, 16) f32 straight from HBM; cast to bf16 on the VPU here
    # (cheaper than a separate wrapper-side astype pass over HBM).
    x = x_ref[...].astype(jnp.bfloat16)

    # ln1 (BN1 pre-folded) + ReLU.  Dropout = identity at inference.
    h = jnp.dot(x, w1_ref[...], preferred_element_type=jnp.float32)
    h = jnp.maximum(h + b1_ref[...], 0.0)

    # ln2 (BN2 pre-folded) + ReLU.
    h = jnp.dot(h.astype(jnp.bfloat16), w2_ref[...],
                preferred_element_type=jnp.float32)
    h = jnp.maximum(h + b2_ref[...], 0.0)

    # out (BN3 pre-folded): 64 -> 1 projection emitted directly as a
    # lane-dense (1, TILE) row: contract the feature axes (wo @ h^T), f32.
    row = jax.lax.dot_general(
        wo_ref[...], h,
        dimension_numbers=(((1,), (1,)), ((), ())),
        preferred_element_type=jnp.float32)
    o_ref[...] = row + bo_ref[...]


def _pick_tile(n, max_tile=4096):
    """Batch tile: multiple of 128, minimal padding, even block count
    (balanced work across v7x's two TensorCores), capped at max_tile."""
    nb = 2
    tile = pl.cdiv(pl.cdiv(n, nb), 128) * 128
    while tile > max_tile:
        nb += 2
        tile = pl.cdiv(pl.cdiv(n, nb), 128) * 128
    return max(tile, 128)


def net_forward(x, p, max_tile=4096):
    N, F = x.shape
    tile = _pick_tile(N, max_tile)
    n_blocks = pl.cdiv(N, tile)
    n_pad = n_blocks * tile

    const = lambda i: (0, 0)      # weights / biases stay VMEM-resident
    out = pl.pallas_call(
        net_kernel,
        out_shape=jax.ShapeDtypeStruct((1, n_pad), jnp.float32),
        grid=(n_blocks,),
        in_specs=[
            pl.BlockSpec((tile, F), lambda i: (i, 0)),   # ragged last block OK
            pl.BlockSpec(p["w1"].shape, const),
            pl.BlockSpec(p["b1"].shape, const),
            pl.BlockSpec(p["w2"].shape, const),
            pl.BlockSpec(p["b2"].shape, const),
            pl.BlockSpec(p["wo"].shape, const),
            pl.BlockSpec(p["bo"].shape, const),
        ],
        out_specs=pl.BlockSpec((1, tile), lambda i: (0, i)),
        compiler_params=pltpu.CompilerParams(dimension_semantics=("parallel",)),
    )(x, p["w1"], p["b1"], p["w2"], p["b2"], p["wo"], p["bo"])

    out = out.reshape(n_pad, 1)                 # same contiguous layout (free)
    return out if n_pad == N else out[:N]       # slice only when padded


def make_raw_params(key):
    """PyTorch-layout parameters + deterministic BatchNorm running stats."""
    ks = jax.random.split(key, 18)
    r = {}
    r["w1"] = jax.random.normal(ks[0], (64, 16), jnp.float32) * 0.1
    r["b1"] = jax.random.normal(ks[1], (64,), jnp.float32) * 0.1
    r["w2"] = jax.random.normal(ks[2], (64, 64), jnp.float32) * 0.1
    r["b2"] = jax.random.normal(ks[3], (64,), jnp.float32) * 0.1
    r["wo"] = jax.random.normal(ks[4], (1, 64), jnp.float32) * 0.1
    r["bo"] = jax.random.normal(ks[5], (1,), jnp.float32) * 0.1

    def bn(kg, kb, km, kv, n):
        return dict(
            gamma=1.0 + 0.1 * jax.random.normal(kg, (n,), jnp.float32),
            beta=0.1 * jax.random.normal(kb, (n,), jnp.float32),
            mean=0.5 * jax.random.normal(km, (n,), jnp.float32),
            var=jnp.abs(jax.random.normal(kv, (n,), jnp.float32)) + 0.5,
        )

    r["bn1"] = bn(ks[6], ks[7], ks[8], ks[9], 16)
    r["bn2"] = bn(ks[10], ks[11], ks[12], ks[13], 64)
    r["bn3"] = bn(ks[14], ks[15], ks[16], ks[17], 64)
    return r


def fold_params(raw, eps=1e-5):
    """Fold each BatchNorm (scale s, shift t) into the following Linear:
       y = W @ (s*x + t) + b = (W*s) @ x + (W @ t + b).
       Note: bf16 W1/W2 + in-kernel bf16 x is intentional precision loss
       (~1e-2 relative) vs the f32 PyTorch eval forward."""
    def scale_shift(bn):
        inv = bn["gamma"] / jnp.sqrt(bn["var"] + eps)
        return inv, bn["beta"] - bn["mean"] * inv

    s1, t1 = scale_shift(raw["bn1"])
    s2, t2 = scale_shift(raw["bn2"])
    s3, t3 = scale_shift(raw["bn3"])

    w1t = raw["w1"].T               # (16, 64)  for x @ W^T
    w2t = raw["w2"].T               # (64, 64)
    wo_row = raw["wo"].reshape(-1)  # (64,)

    p = {}
    p["w1"] = (s1[:, None] * w1t).astype(jnp.bfloat16)
    p["b1"] = (t1 @ w1t + raw["b1"]).reshape(1, 64).astype(jnp.float32)
    p["w2"] = (s2[:, None] * w2t).astype(jnp.bfloat16)
    p["b2"] = (t2 @ w2t + raw["b2"]).reshape(1, 64).astype(jnp.float32)
    p["wo"] = (s3 * wo_row).reshape(1, 64).astype(jnp.float32)   # f32 final dot
    p["bo"] = (jnp.sum(t3 * wo_row) + raw["bo"]).reshape(1, 1).astype(jnp.float32)
    return p


def net_reference(x, raw, eps=1e-5):
    """Unfused f32 reference matching the PyTorch eval-mode forward."""
    def bn_apply(h, bn):
        return (h - bn["mean"]) / jnp.sqrt(bn["var"] + eps) * bn["gamma"] + bn["beta"]

    h = bn_apply(x.astype(jnp.float32), raw["bn1"])
    h = jnp.maximum(h @ raw["w1"].T + raw["b1"], 0.0)
    h = bn_apply(h, raw["bn2"])
    h = jnp.maximum(h @ raw["w2"].T + raw["b2"], 0.0)
    h = bn_apply(h, raw["bn3"])
    return h @ raw["wo"].T + raw["bo"]


if __name__ == "__main__":
    key = jax.random.PRNGKey(0)
    kx, kp = jax.random.split(key)
    N = 2500  # exercises ragged last block + a 2-step (megacore-balanced) grid
    x = jax.random.normal(kx, (N, 16), jnp.float32)

    raw = make_raw_params(kp)
    params = fold_params(raw)

    out = jax.block_until_ready(net_forward(x, params))
    ref = net_reference(x, raw)

    assert out.shape == (N, 1)
    # bf16 activations/weights -> relaxed tolerance vs the f32 reference.
    assert jnp.allclose(out, ref, atol=5e-2, rtol=5e-2), (
        "mismatch vs reference, max abs err = "
        + str(float(jnp.max(jnp.abs(out - ref)))))
    print("KERNEL_OK")
</pallas_src>

<mosaic_0001>
module attributes {stable_mosaic.version = 11 : i64} {
  func.func @net_kernel(%arg0: i32, %arg1: memref<1280x16xf32, #tpu.memory_space<vmem>>, %arg2: memref<16x64xbf16, #tpu.memory_space<vmem>>, %arg3: memref<1x64xf32, #tpu.memory_space<vmem>>, %arg4: memref<64x64xbf16, #tpu.memory_space<vmem>>, %arg5: memref<1x64xf32, #tpu.memory_space<vmem>>, %arg6: memref<1x64xf32, #tpu.memory_space<vmem>>, %arg7: memref<1x1xf32, #tpu.memory_space<vmem>>, %arg8: memref<1x1280xf32, #tpu.memory_space<vmem>>) attributes {dimension_semantics = [#tpu.dimension_semantics<parallel>], iteration_bounds = array<i64: 2>, scalar_prefetch = 0 : i64, scratch_operands = 0 : i64, tpu.core_type = #tpu.core_type<tc>, window_params = [{transform_indices = @transform_0, window_bounds = array<i64: 1280, 16>}, {pipeline_mode = #tpu.pipeline_mode<synchronous>, transform_indices = @transform_1, window_bounds = array<i64: 16, 64>}, {pipeline_mode = #tpu.pipeline_mode<synchronous>, transform_indices = @transform_2, window_bounds = array<i64: 1, 64>}, {pipeline_mode = #tpu.pipeline_mode<synchronous>, transform_indices = @transform_3, window_bounds = array<i64: 64, 64>}, {pipeline_mode = #tpu.pipeline_mode<synchronous>, transform_indices = @transform_4, window_bounds = array<i64: 1, 64>}, {pipeline_mode = #tpu.pipeline_mode<synchronous>, transform_indices = @transform_5, window_bounds = array<i64: 1, 64>}, {pipeline_mode = #tpu.pipeline_mode<synchronous>, transform_indices = @transform_6, window_bounds = array<i64: 1, 1>}, {transform_indices = @transform_7, window_bounds = array<i64: 1, 1280>}]} {
    %c0 = arith.constant 0 : index
    %c0_0 = arith.constant 0 : index
    %0 = vector.load %arg1[%c0, %c0_0] : memref<1280x16xf32, #tpu.memory_space<vmem>>, vector<1280x16xf32>
    %1 = arith.truncf %0 : vector<1280x16xf32> to vector<1280x16xbf16>
    %c0_1 = arith.constant 0 : index
    %c0_2 = arith.constant 0 : index
    %2 = vector.load %arg2[%c0_1, %c0_2] : memref<16x64xbf16, #tpu.memory_space<vmem>>, vector<16x64xbf16>
    %cst = arith.constant dense<0.000000e+00> : vector<1280x64xf32>
    %3 = tpu.matmul %1, %2, %cst {dimension_numbers = #tpu.dot_dimension_numbers<[1], [0], [0], [1], [0, 0, 1, 1], [], []>} : vector<1280x16xbf16>, vector<16x64xbf16>, vector<1280x64xf32> -> vector<1280x64xf32>
    %c0_3 = arith.constant 0 : index
    %c0_4 = arith.constant 0 : index
    %4 = vector.load %arg3[%c0_3, %c0_4] : memref<1x64xf32, #tpu.memory_space<vmem>>, vector<1x64xf32>
    %5 = vector.broadcast %4 : vector<1x64xf32> to vector<1280x64xf32>
    %6 = arith.addf %3, %5 : vector<1280x64xf32>
    %cst_5 = arith.constant 0.000000e+00 : f32
    %7 = vector.broadcast %cst_5 : f32 to vector<1280x64xf32>
    %8 = arith.maximumf %6, %7 : vector<1280x64xf32>
    %9 = arith.truncf %8 : vector<1280x64xf32> to vector<1280x64xbf16>
    %c0_6 = arith.constant 0 : index
    %c0_7 = arith.constant 0 : index
    %10 = vector.load %arg4[%c0_6, %c0_7] : memref<64x64xbf16, #tpu.memory_space<vmem>>, vector<64x64xbf16>
    %cst_8 = arith.constant dense<0.000000e+00> : vector<1280x64xf32>
    %11 = tpu.matmul %9, %10, %cst_8 {dimension_numbers = #tpu.dot_dimension_numbers<[1], [0], [0], [1], [0, 0, 1, 1], [], []>} : vector<1280x64xbf16>, vector<64x64xbf16>, vector<1280x64xf32> -> vector<1280x64xf32>
    %c0_9 = arith.constant 0 : index
    %c0_10 = arith.constant 0 : index
    %12 = vector.load %arg5[%c0_9, %c0_10] : memref<1x64xf32, #tpu.memory_space<vmem>>, vector<1x64xf32>
    %13 = vector.broadcast %12 : vector<1x64xf32> to vector<1280x64xf32>
    %14 = arith.addf %11, %13 : vector<1280x64xf32>
    %cst_11 = arith.constant 0.000000e+00 : f32
    %15 = vector.broadcast %cst_11 : f32 to vector<1280x64xf32>
    %16 = arith.maximumf %14, %15 : vector<1280x64xf32>
    %c0_12 = arith.constant 0 : index
    %c0_13 = arith.constant 0 : index
    %17 = vector.load %arg6[%c0_12, %c0_13] : memref<1x64xf32, #tpu.memory_space<vmem>>, vector<1x64xf32>
    %cst_14 = arith.constant dense<0.000000e+00> : vector<1x1280xf32>
    %18 = tpu.matmul %17, %16, %cst_14 {dimension_numbers = #tpu.dot_dimension_numbers<[1], [1], [0], [0], [0, 0, 1, 0], [], []>} : vector<1x64xf32>, vector<1280x64xf32>, vector<1x1280xf32> -> vector<1x1280xf32>
    %c0_15 = arith.constant 0 : index
    %c0_16 = arith.constant 0 : index
    %19 = vector.load %arg7[%c0_15, %c0_16] : memref<1x1xf32, #tpu.memory_space<vmem>>, vector<1x1xf32>
    %20 = vector.broadcast %19 : vector<1x1xf32> to vector<1x1280xf32>
    %21 = arith.addf %18, %20 : vector<1x1280xf32>
    %c0_17 = arith.constant 0 : index
    %c0_18 = arith.constant 0 : index
    %22 = vector.load %arg8[%c0_17, %c0_18] : memref<1x1280xf32, #tpu.memory_space<vmem>>, vector<1x1280xf32>
    tpu.vector_store %arg8[%c0_17, %c0_18], %21 {strides = array<i32>} : memref<1x1280xf32, #tpu.memory_space<vmem>>, vector<1x1280xf32>,
    return
  }
  func.func @transform_0(%arg0: i32) -> (i32, i32) {
    %c0_i32 = arith.constant 0 : i32
    %c0_i32_0 = arith.constant 0 : i32
    return %arg0, %c0_i32 : i32, i32
  }
  func.func @transform_1(%arg0: i32) -> (i32, i32) {
    %c0_i32 = arith.constant 0 : i32
    %c0_i32_0 = arith.constant 0 : i32
    %c0_i32_1 = arith.constant 0 : i32
    return %c0_i32, %c0_i32_0 : i32, i32
  }
  func.func @transform_2(%arg0: i32) -> (i32, i32) {
    %c0_i32 = arith.constant 0 : i32
    %c0_i32_0 = arith.constant 0 : i32
    %c0_i32_1 = arith.constant 0 : i32
    return %c0_i32, %c0_i32_0 : i32, i32
  }
  func.func @transform_3(%arg0: i32) -> (i32, i32) {
    %c0_i32 = arith.constant 0 : i32
    %c0_i32_0 = arith.constant 0 : i32
    %c0_i32_1 = arith.constant 0 : i32
    return %c0_i32, %c0_i32_0 : i32, i32
  }
  func.func @transform_4(%arg0: i32) -> (i32, i32) {
    %c0_i32 = arith.constant 0 : i32
    %c0_i32_0 = arith.constant 0 : i32
    %c0_i32_1 = arith.constant 0 : i32
    return %c0_i32, %c0_i32_0 : i32, i32
  }
  func.func @transform_5(%arg0: i32) -> (i32, i32) {
    %c0_i32 = arith.constant 0 : i32
    %c0_i32_0 = arith.constant 0 : i32
    %c0_i32_1 = arith.constant 0 : i32
    return %c0_i32, %c0_i32_0 : i32, i32
  }
  func.func @transform_6(%arg0: i32) -> (i32, i32) {
    %c0_i32 = arith.constant 0 : i32
    %c0_i32_0 = arith.constant 0 : i32
    %c0_i32_1 = arith.constant 0 : i32
    return %c0_i32, %c0_i32_0 : i32, i32
  }
  func.func @transform_7(%arg0: i32) -> (i32, i32) {
    %c0_i32 = arith.constant 0 : i32
    %c0_i32_0 = arith.constant 0 : i32
    return %c0_i32, %arg0 : i32, i32
  }
}

</mosaic_0001>

<llo_original>
// kernel: tpu_custom_call.1
$region0: #{tpu_custom_call.1}
  #allocation0 [shape = 'u32[]', space=smem, size = 0x4, offset = 0x4, fixed_abs, tag = 'smem constant byte address 0x4 - core index']
  #allocation1 [shape = 'u32[144,128]{1,0:T(1,128)}', space=vmem, size = 0x12000, scoped, tag = 'internal scratch']
  #allocation2 [shape = 'f32[1,1]{1,0:T(1,128)S(1)}', space=vmem, size = 0x200, scoped, tag = 'scoped memory for tpu_custom_call.1']
  %s0 = inlined_call_operand.vmem [shape: f32[2500,16], index: 0, kind: input, shape index: {}]
  %s1 = inlined_call_operand.vmem [shape: bf16[16,64], index: 1, kind: input, shape index: {}]
  %s2 = inlined_call_operand.vmem [shape: f32[1,64], index: 2, kind: input, shape index: {}]
  %s3 = inlined_call_operand.vmem [shape: bf16[64,64], index: 3, kind: input, shape index: {}]
  %s4 = inlined_call_operand.vmem [shape: f32[1,64], index: 4, kind: input, shape index: {}]
  %s5 = inlined_call_operand.vmem [shape: f32[1,64], index: 5, kind: input, shape index: {}]
  %s6 = inlined_call_operand.<no memory space> [shape: f32[1,1], index: 6, kind: input, shape index: {}]
  %s7 = inlined_call_operand.hbm [shape: f32[1,2560], index: 7, kind: output, shape index: {}]
  %s8 = sld [smem:[#allocation0]]
  $region61: #{tpu_custom_call.1} parent=0
    _
  %s10 = ssub.s32 1, %s8
  %s11 = scalar_select 0, %s10, %s8
  %v12 = vstv %s6
  %13 = vst [vmem:[#allocation2] sm:$0x1] %v12
  $region1: #{tpu_custom_call.1} parent=0
    #allocation3 [shape = 'u8[10240]{0}', space=vmem, size = 0x2800, scoped, tag = 'output window, operand 0']
    #allocation4 [shape = 's32[2]{0}', space=sflag, size = 0x8, scoped, tag = 'scoped memory for tpu_custom_call.1']
    %14 = vsyncpa [#allocation4], 0
    %s15 = scalar_lea.sflag [#allocation4], 1
    %16 = vsyncpa %s15, 0
    loop: start=0, step=1, limit=4
    $region2: #{tpu_custom_call.1} parent=1 // loop_pre_header
      _
    $region3: #{tpu_custom_call.1} parent=1 // loop_header
      %s18 = sphi 0, %s22
      %p19 = scmp.ge.s32.totalorder %s18, 4
      %s28 = sphi 0, %s30
      %s31 = sphi 0, %s28
      %s32 = sphi 0, %s31
      %s48 = sphi 0, %s32
      %s52 = sphi 0, %s52
      %s54 = sphi 0, %s52
      %s55 = sphi 0, %s54
      %s69 = sphi 0, %s55
      %s73 = sphi 0, %s73
      %s75 = sphi 0, %s73
      %s76 = sphi 0, %s75
      %s90 = sphi 0, %s76
      %s94 = sphi 0, %s94
      %s96 = sphi 0, %s94
      %s97 = sphi 0, %s96
      %s111 = sphi 0, %s97
      %s115 = sphi 0, %s115
      %s117 = sphi 0, %s115
      %s118 = sphi 0, %s117
      %s132 = sphi 0, %s118
      %s136 = sphi 0, %s136
      %s138 = sphi 0, %s136
      %s139 = sphi 0, %s138
      %s153 = sphi 0, %s139
      %s157 = sphi 0, %s157
      %s159 = sphi 0, %s157
      %s160 = sphi 0, %s159
      %s174 = sphi 0, %s160
      %s180 = sphi 0, %s182
      %s183 = sphi 0, %s180
      %s184 = sphi 0, %s183
      %s200 = sphi 0, %s184
    $region4: #{tpu_custom_call.1} parent=1 // loop_header_branch
      %21 = sbr.rel (%p19) target = $region8
    $region5: #{tpu_custom_call.1} parent=1 // loop_body
      %s23 = ssub.s32 %s18, 1
      %s24 = ssub.s32 %s18, 2
      %s25 = sadd.s32 %s18, 1
      %s26 = ssub.s32 %s18, %s25
      %p27 = scmp.eq.s32.totalorder %s26, 0
      %s29 = sadd.s32 %s28, 1
      %s30 = scalar_select %p27, %s28, %s29
      %p33 = pneg %p27
      %p34 = scmp.eq.s32.totalorder %s18, 1
      %p35 = por %p33, %p34
      %p36 = scmp.ne.s32.totalorder %s28, %s31
      %p37 = scmp.eq.s32.totalorder %s18, 0
      %p38 = por %p36, %p37
      %p39 = scmp.ne.s32.totalorder %s28, %s31
      %p40 = scmp.eq.s32.totalorder %s23, 1
      %p41 = por %p39, %p40
      %p42 = scmp.ne.s32.totalorder %s31, %s32
      %p43 = scmp.eq.s32.totalorder %s23, 0
      %p44 = por %p42, %p43
      %p45 = scmp.ne.s32.totalorder %s31, %s32
      %p46 = scmp.eq.s32.totalorder %s24, 1
      %p47 = por %p45, %p46
      %p49 = scmp.ne.s32.totalorder %s32, %s48
      %p50 = scmp.eq.s32.totalorder %s24, 0
      %p51 = por %p49, %p50
      %s53 = sadd.s32 %s52, 1
      %p56 = scmp.eq.s32.totalorder %s18, 1
      %p57 = scmp.ne.s32.totalorder %s52, %s54
      %p58 = scmp.eq.s32.totalorder %s18, 0
      %p59 = por %p57, %p58
      %p60 = scmp.ne.s32.totalorder %s52, %s54
      %p61 = scmp.eq.s32.totalorder %s23, 1
      %p62 = por %p60, %p61
      %p63 = scmp.ne.s32.totalorder %s54, %s55
      %p64 = scmp.eq.s32.totalorder %s23, 0
      %p65 = por %p63, %p64
      %p66 = scmp.ne.s32.totalorder %s54, %s55
      %p67 = scmp.eq.s32.totalorder %s24, 1
      %p68 = por %p66, %p67
      %p70 = scmp.ne.s32.totalorder %s55, %s69
      %p71 = scmp.eq.s32.totalorder %s24, 0
      %p72 = por %p70, %p71
      %s74 = sadd.s32 %s73, 1
      %p77 = scmp.eq.s32.totalorder %s18, 1
      %p78 = scmp.ne.s32.totalorder %s73, %s75
      %p79 = scmp.eq.s32.totalorder %s18, 0
      %p80 = por %p78, %p79
      %p81 = scmp.ne.s32.totalorder %s73, %s75
      %p82 = scmp.eq.s32.totalorder %s23, 1
      %p83 = por %p81, %p82
      %p84 = scmp.ne.s32.totalorder %s75, %s76
      %p85 = scmp.eq.s32.totalorder %s23, 0
      %p86 = por %p84, %p85
      %p87 = scmp.ne.s32.totalorder %s75, %s76
      %p88 = scmp.eq.s32.totalorder %s24, 1
      %p89 = por %p87, %p88
      %p91 = scmp.ne.s32.totalorder %s76, %s90
      %p92 = scmp.eq.s32.totalorder %s24, 0
      %p93 = por %p91, %p92
      %s95 = sadd.s32 %s94, 1
      %p98 = scmp.eq.s32.totalorder %s18, 1
      %p99 = scmp.ne.s32.totalorder %s94, %s96
      %p100 = scmp.eq.s32.totalorder %s18, 0
      %p101 = por %p99, %p100
      %p102 = scmp.ne.s32.totalorder %s94, %s96
      %p103 = scmp.eq.s32.totalorder %s23, 1
      %p104 = por %p102, %p103
      %p105 = scmp.ne.s32.totalorder %s96, %s97
      %p106 = scmp.eq.s32.totalorder %s23, 0
      %p107 = por %p105, %p106
      %p108 = scmp.ne.s32.totalorder %s96, %s97
      %p109 = scmp.eq.s32.totalorder %s24, 1
      %p110 = por %p108, %p109
      %p112 = scmp.ne.s32.totalorder %s97, %s111
      %p113 = scmp.eq.s32.totalorder %s24, 0
      %p114 = por %p112, %p113
      %s116 = sadd.s32 %s115, 1
      %p119 = scmp.eq.s32.totalorder %s18, 1
      %p120 = scmp.ne.s32.totalorder %s115, %s117
      %p121 = scmp.eq.s32.totalorder %s18, 0
      %p122 = por %p120, %p121
      %p123 = scmp.ne.s32.totalorder %s115, %s117
      %p124 = scmp.eq.s32.totalorder %s23, 1
      %p125 = por %p123, %p124
      %p126 = scmp.ne.s32.totalorder %s117, %s118
      %p127 = scmp.eq.s32.totalorder %s23, 0
      %p128 = por %p126, %p127
      %p129 = scmp.ne.s32.totalorder %s117, %s118
      %p130 = scmp.eq.s32.totalorder %s24, 1
      %p131 = por %p129, %p130
      %p133 = scmp.ne.s32.totalorder %s118, %s132
      %p134 = scmp.eq.s32.totalorder %s24, 0
      %p135 = por %p133, %p134
      %s137 = sadd.s32 %s136, 1
      %p140 = scmp.eq.s32.totalorder %s18, 1
      %p141 = scmp.ne.s32.totalorder %s136, %s138
      %p142 = scmp.eq.s32.totalorder %s18, 0
      %p143 = por %p141, %p142
      %p144 = scmp.ne.s32.totalorder %s136, %s138
      %p145 = scmp.eq.s32.totalorder %s23, 1
      %p146 = por %p144, %p145
      %p147 = scmp.ne.s32.totalorder %s138, %s139
      %p148 = scmp.eq.s32.totalorder %s23, 0
      %p149 = por %p147, %p148
      %p150 = scmp.ne.s32.totalorder %s138, %s139
      %p151 = scmp.eq.s32.totalorder %s24, 1
      %p152 = por %p150, %p151
      %p154 = scmp.ne.s32.totalorder %s139, %s153
      %p155 = scmp.eq.s32.totalorder %s24, 0
      %p156 = por %p154, %p155
      %s158 = sadd.s32 %s157, 1
      %p161 = scmp.eq.s32.totalorder %s18, 1
      %p162 = scmp.ne.s32.totalorder %s157, %s159
      %p163 = scmp.eq.s32.totalorder %s18, 0
      %p164 = por %p162, %p163
      %p165 = scmp.ne.s32.totalorder %s157, %s159
      %p166 = scmp.eq.s32.totalorder %s23, 1
      %p167 = por %p165, %p166
      %p168 = scmp.ne.s32.totalorder %s159, %s160
      %p169 = scmp.eq.s32.totalorder %s23, 0
      %p170 = por %p168, %p169
      %p171 = scmp.ne.s32.totalorder %s159, %s160
      %p172 = scmp.eq.s32.totalorder %s24, 1
      %p173 = por %p171, %p172
      %p175 = scmp.ne.s32.totalorder %s160, %s174
      %p176 = scmp.eq.s32.totalorder %s24, 0
      %p177 = por %p175, %p176
      %s178 = ssub.s32 %s18, %s25
      %p179 = scmp.eq.s32.totalorder %s178, 0
      %s181 = sadd.s32 %s180, 1
      %s182 = scalar_select %p179, %s180, %s181
      %p185 = pneg %p179
      %p186 = scmp.eq.s32.totalorder %s18, 1
      %p187 = por %p185, %p186
      %p188 = scmp.ne.s32.totalorder %s180, %s183
      %p189 = scmp.eq.s32.totalorder %s18, 0
      %p190 = por %p188, %p189
      %p191 = scmp.ne.s32.totalorder %s180, %s183
      %p192 = scmp.eq.s32.totalorder %s23, 1
      %p193 = por %p191, %p192
      %p194 = scmp.ne.s32.totalorder %s183, %s184
      %p195 = scmp.eq.s32.totalorder %s23, 0
      %p196 = por %p194, %p195
      %p197 = scmp.ne.s32.totalorder %s183, %s184
      %p198 = scmp.eq.s32.totalorder %s24, 1
      %p199 = por %p197, %p198
      %p201 = scmp.ne.s32.totalorder %s184, %s200
      %p202 = scmp.eq.s32.totalorder %s24, 0
      %p203 = por %p201, %p202
      %p204 = scmp.le.s32.totalorder 1, %s18
      %p205 = scmp.lt.s32.totalorder %s18, 3
      %p206 = pnand %p204, %p205
      %p207 = pneg %p206
      // Predicated region
      $region9: #{tpu_custom_call.1} parent=5 // pred_check
        _
      $region10: #{tpu_custom_call.1} parent=5 // pred_check_branch
        %209 = sbr.rel (%p206) target = $region12
      $region11: #{tpu_custom_call.1} parent=5 // pred_region
        %s210 = ssub.s32 %s18, 1
        // Predicated region
        $region13: #{tpu_custom_call.1} parent=11 // pred_check
          %p211 = pneg %p65
        $region14: #{tpu_custom_call.1} parent=11 // pred_check_branch
          %213 = sbr.rel (%p211) target = $region16
        $region15: #{tpu_custom_call.1} parent=11 // pred_region
          _
        $region16: #{tpu_custom_call.1} parent=11 // pred_fallthru
          _
        // Predicated region
        $region17: #{tpu_custom_call.1} parent=11 // pred_check
          %p214 = pneg %p86
        $region18: #{tpu_custom_call.1} parent=11 // pred_check_branch
          %216 = sbr.rel (%p214) target = $region20
        $region19: #{tpu_custom_call.1} parent=11 // pred_region
          _
        $region20: #{tpu_custom_call.1} parent=11 // pred_fallthru
          _
        // Predicated region
        $region21: #{tpu_custom_call.1} parent=11 // pred_check
          %p217 = pneg %p107
        $region22: #{tpu_custom_call.1} parent=11 // pred_check_branch
          %219 = sbr.rel (%p217) target = $region24
        $region23: #{tpu_custom_call.1} parent=11 // pred_region
          _
        $region24: #{tpu_custom_call.1} parent=11 // pred_fallthru
          _
        // Predicated region
        $region25: #{tpu_custom_call.1} parent=11 // pred_check
          %p220 = pneg %p128
        $region26: #{tpu_custom_call.1} parent=11 // pred_check_branch
          %222 = sbr.rel (%p220) target = $region28
        $region27: #{tpu_custom_call.1} parent=11 // pred_region
          _
        $region28: #{tpu_custom_call.1} parent=11 // pred_fallthru
          _
        // Predicated region
        $region29: #{tpu_custom_call.1} parent=11 // pred_check
          %p223 = pneg %p149
        $region30: #{tpu_custom_call.1} parent=11 // pred_check_branch
          %225 = sbr.rel (%p223) target = $region32
        $region31: #{tpu_custom_call.1} parent=11 // pred_region
          _
        $region32: #{tpu_custom_call.1} parent=11 // pred_fallthru
          _
        // Predicated region
        $region33: #{tpu_custom_call.1} parent=11 // pred_check
          %p226 = pneg %p170
        $region34: #{tpu_custom_call.1} parent=11 // pred_check_branch
          %228 = sbr.rel (%p226) target = $region36
        $region35: #{tpu_custom_call.1} parent=11 // pred_region
          _
        $region36: #{tpu_custom_call.1} parent=11 // pred_fallthru
          _
      $region12: #{tpu_custom_call.1} parent=5 // pred_fallthru
        _
      %p229 = scmp.lt.s32.totalorder %s18, 2
      // Predicated region
      $region37: #{tpu_custom_call.1} parent=5 // pred_check
        %p230 = pneg %p229
      $region38: #{tpu_custom_call.1} parent=5 // pred_check_branch
        %232 = sbr.rel (%p230) target = $region40
      $region39: #{tpu_custom_call.1} parent=5 // pred_region
        // Predicated region
        $region41: #{tpu_custom_call.1} parent=39 // pred_check
          %p233 = pneg %p38
        $region42: #{tpu_custom_call.1} parent=39 // pred_check_branch
          %235 = sbr.rel (%p233) target = $region44
        $region43: #{tpu_custom_call.1} parent=39 // pred_region
          %s236 = smul.u32 160, %s18
          %s237 = ssub.s32 313, %s236
          %p238 = scmp.lt.s32.totalorder %s237, 160
          %s239 = scalar_select %p238, %s237, 160
          %s240 = smul.u32 128, %s239
          %p241 = scmp.lt.s32.totalorder %s236, 312
          %s242 = scalar_select %p241, %s236, 312
          %s243 = smul.addr %s242, 8
          %s244 = scalar_lea.vmem %s0, %s243
          %s245 = smul.u32 160, %s18
          %s246 = ssub.s32 313, %s245
          %p247 = scmp.lt.s32.totalorder %s246, 160
          %s248 = scalar_select %p247, %s246, 160
          %s249 = smul.u32 128, %s248
        $region44: #{tpu_custom_call.1} parent=39 // pred_fallthru
          _
      $region40: #{tpu_custom_call.1} parent=5 // pred_fallthru
        _
      %p250 = scmp.le.s32.totalorder 1, %s18
      %p251 = scmp.lt.s32.totalorder %s18, 3
      %p252 = pnand %p250, %p251
      %p253 = pneg %p252
      // Predicated region
      $region45: #{tpu_custom_call.1} parent=5 // pred_check
        _
      $region46: #{tpu_custom_call.1} parent=5 // pred_check_branch
        %255 = sbr.rel (%p252) target = $region48
      $region47: #{tpu_custom_call.1} parent=5 // pred_region
        %s256 = ssub.s32 %s18, 1
        %s257 = smul.u32 160, %s23
        %s258 = ssub.s32 313, %s257
        %p259 = scmp.lt.s32.totalorder %s258, 160
        %s260 = scalar_select %p259, %s258, 160
        %s261 = smul.u32 128, %s260
        %p262 = scmp.lt.s32.totalorder %s257, 312
        %s263 = scalar_select %p262, %s257, 312
        %s264 = smul.addr %s263, 8
        %s265 = scalar_lea.vmem %s0, %s264
        %p266 = pneg %p44
        %p267 = pneg %p41
        %p268 = pneg %p65
        %p269 = pneg %p62
        %p270 = pneg %p86
        %p271 = pneg %p83
        %p272 = pneg %p107
        %p273 = pneg %p104
        %p274 = pneg %p128
        %p275 = pneg %p125
        %p276 = pneg %p149
        %p277 = pneg %p146
        %p278 = pneg %p170
        %p279 = pneg %p167
        %p280 = pneg %p196
        %p281 = pneg %p193
        %s282 = sand.u32 %s183, 1
        %s283 = scalar_lea.sflag [#allocation4], %s282
        %s284 = sand.u32 %s183, 1
        %s285 = smul.addr %s284, 10
        %s286 = scalar_lea.vmem [#allocation3], %s285
        %s287 = smul.u32 160, %s23
        %s288 = ssub.s32 313, %s287
        %p289 = scmp.lt.s32.totalorder %s288, 160
        %s290 = scalar_select %p289, %s288, 160
        %s291 = smul.u32 128, %s290
        %p292 = scmp.lt.s32.totalorder %s287, 312
        %s293 = scalar_select %p292, %s287, 312
        %s294 = smul.addr %s293, 8
        %s295 = scalar_lea.vmem %s0, %s294
        %s296 = smul.u32 160, %s23
        %s297 = ssub.s32 313, %s296
        %p298 = scmp.lt.s32.totalorder %s297, 160
        %s299 = scalar_select %p298, %s297, 160
        %s300 = smul.u32 128, %s299
        %s301 = smul.u32 10, %s23
        %v303 = vld [vmem:[%s295] sm:$0xff]
        %v304 = vld [vmem:[%s295 + $0x8] sm:$0xff]
        %v305 = vld [vmem:[%s295 + $0x10] sm:$0xff]
        %v306 = vld [vmem:[%s295 + $0x18] sm:$0xff]
        %v307 = vld [vmem:[%s295 + $0x20] sm:$0xff]
        %v308 = vld [vmem:[%s295 + $0x28] sm:$0xff]
        %v309 = vld [vmem:[%s295 + $0x30] sm:$0xff]
        %v310 = vld [vmem:[%s295 + $0x38] sm:$0xff]
        %v311 = vld [vmem:[%s295 + $0x40] sm:$0xff]
        %v312 = vld [vmem:[%s295 + $0x48] sm:$0xff]
        %v313 = vld [vmem:[%s295 + $0x50] sm:$0xff]
        %v314 = vld [vmem:[%s295 + $0x58] sm:$0xff]
        %v315 = vld [vmem:[%s295 + $0x60] sm:$0xff]
        %v316 = vld [vmem:[%s295 + $0x68] sm:$0xff]
        %v317 = vld [vmem:[%s295 + $0x70] sm:$0xff]
        %v318 = vld [vmem:[%s295 + $0x78] sm:$0xff]
        %v319 = vld [vmem:[%s295 + $0x80] sm:$0xff]
        %v320 = vld [vmem:[%s295 + $0x88] sm:$0xff]
        %v321 = vld [vmem:[%s295 + $0x90] sm:$0xff]
        %v322 = vld [vmem:[%s295 + $0x98] sm:$0xff]
        %v323 = vld [vmem:[%s295 + $0xa0] sm:$0xff]
        %v324 = vld [vmem:[%s295 + $0xa8] sm:$0xff]
        %v325 = vld [vmem:[%s295 + $0xb0] sm:$0xff]
        %v326 = vld [vmem:[%s295 + $0xb8] sm:$0xff]
        %v327 = vld [vmem:[%s295 + $0xc0] sm:$0xff]
        %v328 = vld [vmem:[%s295 + $0xc8] sm:$0xff]
        %v329 = vld [vmem:[%s295 + $0xd0] sm:$0xff]
        %v330 = vld [vmem:[%s295 + $0xd8] sm:$0xff]
        %v331 = vld [vmem:[%s295 + $0xe0] sm:$0xff]
        %v332 = vld [vmem:[%s295 + $0xe8] sm:$0xff]
        %v333 = vld [vmem:[%s295 + $0xf0] sm:$0xff]
        %v334 = vld [vmem:[%s295 + $0xf8] sm:$0xff]
        %v335 = vld [vmem:[%s295 + $0x100] sm:$0xff]
        %v336 = vld [vmem:[%s295 + $0x108] sm:$0xff]
        %v337 = vld [vmem:[%s295 + $0x110] sm:$0xff]
        %v338 = vld [vmem:[%s295 + $0x118] sm:$0xff]
        %v339 = vld [vmem:[%s295 + $0x120] sm:$0xff]
        %v340 = vld [vmem:[%s295 + $0x128] sm:$0xff]
        %v341 = vld [vmem:[%s295 + $0x130] sm:$0xff]
        %v342 = vld [vmem:[%s295 + $0x138] sm:$0xff]
        %v343 = vld [vmem:[%s295 + $0x140] sm:$0xff]
        %v344 = vld [vmem:[%s295 + $0x148] sm:$0xff]
        %v345 = vld [vmem:[%s295 + $0x150] sm:$0xff]
        %v346 = vld [vmem:[%s295 + $0x158] sm:$0xff]
        %v347 = vld [vmem:[%s295 + $0x160] sm:$0xff]
        %v348 = vld [vmem:[%s295 + $0x168] sm:$0xff]
        %v349 = vld [vmem:[%s295 + $0x170] sm:$0xff]
        %v350 = vld [vmem:[%s295 + $0x178] sm:$0xff]
        %v351 = vld [vmem:[%s295 + $0x180] sm:$0xff]
        %v352 = vld [vmem:[%s295 + $0x188] sm:$0xff]
        %v353 = vld [vmem:[%s295 + $0x190] sm:$0xff]
        %v354 = vld [vmem:[%s295 + $0x198] sm:$0xff]
        %v355 = vld [vmem:[%s295 + $0x1a0] sm:$0xff]
        %v356 = vld [vmem:[%s295 + $0x1a8] sm:$0xff]
        %v357 = vld [vmem:[%s295 + $0x1b0] sm:$0xff]
        %v358 = vld [vmem:[%s295 + $0x1b8] sm:$0xff]
        %v359 = vld [vmem:[%s295 + $0x1c0] sm:$0xff]
        %v360 = vld [vmem:[%s295 + $0x1c8] sm:$0xff]
        %v361 = vld [vmem:[%s295 + $0x1d0] sm:$0xff]
        %v362 = vld [vmem:[%s295 + $0x1d8] sm:$0xff]
        %v363 = vld [vmem:[%s295 + $0x1e0] sm:$0xff]
        %v364 = vld [vmem:[%s295 + $0x1e8] sm:$0xff]
        %v365 = vld [vmem:[%s295 + $0x1f0] sm:$0xff]
        %v366 = vld [vmem:[%s295 + $0x1f8] sm:$0xff]
        %v367 = vld [vmem:[%s295 + $0x200] sm:$0xff]
        %v368 = vld [vmem:[%s295 + $0x208] sm:$0xff]
        %v369 = vld [vmem:[%s295 + $0x210] sm:$0xff]
        %v370 = vld [vmem:[%s295 + $0x218] sm:$0xff]
        %v371 = vld [vmem:[%s295 + $0x220] sm:$0xff]
        %v372 = vld [vmem:[%s295 + $0x228] sm:$0xff]
        %v373 = vld [vmem:[%s295 + $0x230] sm:$0xff]
        %v374 = vld [vmem:[%s295 + $0x238] sm:$0xff]
        %v375 = vld [vmem:[%s295 + $0x240] sm:$0xff]
        %v376 = vld [vmem:[%s295 + $0x248] sm:$0xff]
        %v377 = vld [vmem:[%s295 + $0x250] sm:$0xff]
        %v378 = vld [vmem:[%s295 + $0x258] sm:$0xff]
        %v379 = vld [vmem:[%s295 + $0x260] sm:$0xff]
        %v380 = vld [vmem:[%s295 + $0x268] sm:$0xff]
        %v381 = vld [vmem:[%s295 + $0x270] sm:$0xff]
        %v382 = vld [vmem:[%s295 + $0x278] sm:$0xff]
        %v383 = vld [vmem:[%s295 + $0x280] sm:$0xff]
        %v384 = vld [vmem:[%s295 + $0x288] sm:$0xff]
        %v385 = vld [vmem:[%s295 + $0x290] sm:$0xff]
        %v386 = vld [vmem:[%s295 + $0x298] sm:$0xff]
        %v387 = vld [vmem:[%s295 + $0x2a0] sm:$0xff]
        %v388 = vld [vmem:[%s295 + $0x2a8] sm:$0xff]
        %v389 = vld [vmem:[%s295 + $0x2b0] sm:$0xff]
        %v390 = vld [vmem:[%s295 + $0x2b8] sm:$0xff]
        %v391 = vld [vmem:[%s295 + $0x2c0] sm:$0xff]
        %v392 = vld [vmem:[%s295 + $0x2c8] sm:$0xff]
        %v393 = vld [vmem:[%s295 + $0x2d0] sm:$0xff]
        %v394 = vld [vmem:[%s295 + $0x2d8] sm:$0xff]
        %v395 = vld [vmem:[%s295 + $0x2e0] sm:$0xff]
        %v396 = vld [vmem:[%s295 + $0x2e8] sm:$0xff]
        %v397 = vld [vmem:[%s295 + $0x2f0] sm:$0xff]
        %v398 = vld [vmem:[%s295 + $0x2f8] sm:$0xff]
        %v399 = vld [vmem:[%s295 + $0x300] sm:$0xff]
        %v400 = vld [vmem:[%s295 + $0x308] sm:$0xff]
        %v401 = vld [vmem:[%s295 + $0x310] sm:$0xff]
        %v402 = vld [vmem:[%s295 + $0x318] sm:$0xff]
        %v403 = vld [vmem:[%s295 + $0x320] sm:$0xff]
        %v404 = vld [vmem:[%s295 + $0x328] sm:$0xff]
        %v405 = vld [vmem:[%s295 + $0x330] sm:$0xff]
        %v406 = vld [vmem:[%s295 + $0x338] sm:$0xff]
        %v407 = vld [vmem:[%s295 + $0x340] sm:$0xff]
        %v408 = vld [vmem:[%s295 + $0x348] sm:$0xff]
        %v409 = vld [vmem:[%s295 + $0x350] sm:$0xff]
        %v410 = vld [vmem:[%s295 + $0x358] sm:$0xff]
        %v411 = vld [vmem:[%s295 + $0x360] sm:$0xff]
        %v412 = vld [vmem:[%s295 + $0x368] sm:$0xff]
        %v413 = vld [vmem:[%s295 + $0x370] sm:$0xff]
        %v414 = vld [vmem:[%s295 + $0x378] sm:$0xff]
        %v415 = vld [vmem:[%s295 + $0x380] sm:$0xff]
        %v416 = vld [vmem:[%s295 + $0x388] sm:$0xff]
        %v417 = vld [vmem:[%s295 + $0x390] sm:$0xff]
        %v418 = vld [vmem:[%s295 + $0x398] sm:$0xff]
        %v419 = vld [vmem:[%s295 + $0x3a0] sm:$0xff]
        %v420 = vld [vmem:[%s295 + $0x3a8] sm:$0xff]
        %v421 = vld [vmem:[%s295 + $0x3b0] sm:$0xff]
        %v422 = vld [vmem:[%s295 + $0x3b8] sm:$0xff]
        %v423 = vld [vmem:[%s295 + $0x3c0] sm:$0xff]
        %v424 = vld [vmem:[%s295 + $0x3c8] sm:$0xff]
        %v425 = vld [vmem:[%s295 + $0x3d0] sm:$0xff]
        %v426 = vld [vmem:[%s295 + $0x3d8] sm:$0xff]
        %v427 = vld [vmem:[%s295 + $0x3e0] sm:$0xff]
        %v428 = vld [vmem:[%s295 + $0x3e8] sm:$0xff]
        %v429 = vld [vmem:[%s295 + $0x3f0] sm:$0xff]
        %v430 = vld [vmem:[%s295 + $0x3f8] sm:$0xff]
        %v431 = vld [vmem:[%s295 + $0x400] sm:$0xff]
        %v432 = vld [vmem:[%s295 + $0x408] sm:$0xff]
        %v433 = vld [vmem:[%s295 + $0x410] sm:$0xff]
        %v434 = vld [vmem:[%s295 + $0x418] sm:$0xff]
        %v435 = vld [vmem:[%s295 + $0x420] sm:$0xff]
        %v436 = vld [vmem:[%s295 + $0x428] sm:$0xff]
        %v437 = vld [vmem:[%s295 + $0x430] sm:$0xff]
        %v438 = vld [vmem:[%s295 + $0x438] sm:$0xff]
        %v439 = vld [vmem:[%s295 + $0x440] sm:$0xff]
        %v440 = vld [vmem:[%s295 + $0x448] sm:$0xff]
        %v441 = vld [vmem:[%s295 + $0x450] sm:$0xff]
        %v442 = vld [vmem:[%s295 + $0x458] sm:$0xff]
        %v443 = vld [vmem:[%s295 + $0x460] sm:$0xff]
        %v444 = vld [vmem:[%s295 + $0x468] sm:$0xff]
        %v445 = vld [vmem:[%s295 + $0x470] sm:$0xff]
        %v446 = vld [vmem:[%s295 + $0x478] sm:$0xff]
        %v447 = vld [vmem:[%s295 + $0x480] sm:$0xff]
        %v448 = vld [vmem:[%s295 + $0x488] sm:$0xff]
        %v449 = vld [vmem:[%s295 + $0x490] sm:$0xff]
        %v450 = vld [vmem:[%s295 + $0x498] sm:$0xff]
        %v451 = vld [vmem:[%s295 + $0x4a0] sm:$0xff]
        %v452 = vld [vmem:[%s295 + $0x4a8] sm:$0xff]
        %v453 = vld [vmem:[%s295 + $0x4b0] sm:$0xff]
        %v454 = vld [vmem:[%s295 + $0x4b8] sm:$0xff]
        %v455 = vld [vmem:[%s295 + $0x4c0] sm:$0xff]
        %v456 = vld [vmem:[%s295 + $0x4c8] sm:$0xff]
        %v457 = vld [vmem:[%s295 + $0x4d0] sm:$0xff]
        %v458 = vld [vmem:[%s295 + $0x4d8] sm:$0xff]
        %v459 = vld [vmem:[%s295 + $0x4e0] sm:$0xff]
        %v460 = vld [vmem:[%s295 + $0x4e8] sm:$0xff]
        %v461 = vld [vmem:[%s295 + $0x4f0] sm:$0xff]
        %v462 = vld [vmem:[%s295 + $0x4f8] sm:$0xff]
        %v463 = vpack.c.bf16 %v304, %v303
        %v464 = vpack.c.bf16 %v306, %v305
        %v465 = vpack.c.bf16 %v308, %v307
        %v466 = vpack.c.bf16 %v310, %v309
        %v467 = vpack.c.bf16 %v312, %v311
        %v468 = vpack.c.bf16 %v314, %v313
        %v469 = vpack.c.bf16 %v316, %v315
        %v470 = vpack.c.bf16 %v318, %v317
        %v471 = vpack.c.bf16 %v320, %v319
        %v472 = vpack.c.bf16 %v322, %v321
        %v473 = vpack.c.bf16 %v324, %v323
        %v474 = vpack.c.bf16 %v326, %v325
        %v475 = vpack.c.bf16 %v328, %v327
        %v476 = vpack.c.bf16 %v330, %v329
        %v477 = vpack.c.bf16 %v332, %v331
        %v478 = vpack.c.bf16 %v334, %v333
        %v479 = vpack.c.bf16 %v336, %v335
        %v480 = vpack.c.bf16 %v338, %v337
        %v481 = vpack.c.bf16 %v340, %v339
        %v482 = vpack.c.bf16 %v342, %v341
        %v483 = vpack.c.bf16 %v344, %v343
        %v484 = vpack.c.bf16 %v346, %v345
        %v485 = vpack.c.bf16 %v348, %v347
        %v486 = vpack.c.bf16 %v350, %v349
        %v487 = vpack.c.bf16 %v352, %v351
        %v488 = vpack.c.bf16 %v354, %v353
        %v489 = vpack.c.bf16 %v356, %v355
        %v490 = vpack.c.bf16 %v358, %v357
        %v491 = vpack.c.bf16 %v360, %v359
        %v492 = vpack.c.bf16 %v362, %v361
        %v493 = vpack.c.bf16 %v364, %v363
        %v494 = vpack.c.bf16 %v366, %v365
        %v495 = vpack.c.bf16 %v368, %v367
        %v496 = vpack.c.bf16 %v370, %v369
        %v497 = vpack.c.bf16 %v372, %v371
        %v498 = vpack.c.bf16 %v374, %v373
        %v499 = vpack.c.bf16 %v376, %v375
        %v500 = vpack.c.bf16 %v378, %v377
        %v501 = vpack.c.bf16 %v380, %v379
        %v502 = vpack.c.bf16 %v382, %v381
        %v503 = vpack.c.bf16 %v384, %v383
        %v504 = vpack.c.bf16 %v386, %v385
        %v505 = vpack.c.bf16 %v388, %v387
        %v506 = vpack.c.bf16 %v390, %v389
        %v507 = vpack.c.bf16 %v392, %v391
        %v508 = vpack.c.bf16 %v394, %v393
        %v509 = vpack.c.bf16 %v396, %v395
        %v510 = vpack.c.bf16 %v398, %v397
        %v511 = vpack.c.bf16 %v400, %v399
        %v512 = vpack.c.bf16 %v402, %v401
        %v513 = vpack.c.bf16 %v404, %v403
        %v514 = vpack.c.bf16 %v406, %v405
        %v515 = vpack.c.bf16 %v408, %v407
        %v516 = vpack.c.bf16 %v410, %v409
        %v517 = vpack.c.bf16 %v412, %v411
        %v518 = vpack.c.bf16 %v414, %v413
        %v519 = vpack.c.bf16 %v416, %v415
        %v520 = vpack.c.bf16 %v418, %v417
        %v521 = vpack.c.bf16 %v420, %v419
        %v522 = vpack.c.bf16 %v422, %v421
        %v523 = vpack.c.bf16 %v424, %v423
        %v524 = vpack.c.bf16 %v426, %v425
        %v525 = vpack.c.bf16 %v428, %v427
        %v526 = vpack.c.bf16 %v430, %v429
        %v527 = vpack.c.bf16 %v432, %v431
        %v528 = vpack.c.bf16 %v434, %v433
        %v529 = vpack.c.bf16 %v436, %v435
        %v530 = vpack.c.bf16 %v438, %v437
        %v531 = vpack.c.bf16 %v440, %v439
        %v532 = vpack.c.bf16 %v442, %v441
        %v533 = vpack.c.bf16 %v444, %v443
        %v534 = vpack.c.bf16 %v446, %v445
        %v535 = vpack.c.bf16 %v448, %v447
        %v536 = vpack.c.bf16 %v450, %v449
        %v537 = vpack.c.bf16 %v452, %v451
        %v538 = vpack.c.bf16 %v454, %v453
        %v539 = vpack.c.bf16 %v456, %v455
        %v540 = vpack.c.bf16 %v458, %v457
        %v541 = vpack.c.bf16 %v460, %v459
        %v542 = vpack.c.bf16 %v462, %v461
        %v543 = vld [vmem:[%s1] sm:$0xf]
        %v544 = vld [vmem:[%s1 + $0x4] sm:$0xf]
        %v545 = vld [vmem:[%s2] sm:$0x1]
        %v547 = vlaneseq
        %v548 = vshrl.u32 %v547, 7
        %v549 = vsub.s32 0, %v548
        %v550 = vrot.slane %v545, %v549
        %v554 = vunpack.c.l.b16 %v543
        %v555 = vunpack.c.l.b16 %v544
        %v556 = vpack.c.b16 %v555, %v554
        %vm558 = vcmask 130048
        %v560 = vsel %vm558, %v463, 0
        %v563 = vsel %vm558, %v464, 0
        %v566 = vsel %vm558, %v465, 0
        %v569 = vsel %vm558, %v466, 0
        %v572 = vsel %vm558, %v467, 0
        %v575 = vsel %vm558, %v468, 0
        %v578 = vsel %vm558, %v469, 0
        %v581 = vsel %vm558, %v470, 0
        %v584 = vsel %vm558, %v471, 0
        %v587 = vsel %vm558, %v472, 0
        %v590 = vsel %vm558, %v473, 0
        %v593 = vsel %vm558, %v474, 0
        %v596 = vsel %vm558, %v475, 0
        %v599 = vsel %vm558, %v476, 0
        %v602 = vsel %vm558, %v477, 0
        %v605 = vsel %vm558, %v478, 0
        %v608 = vsel %vm558, %v479, 0
        %v611 = vsel %vm558, %v480, 0
        %v614 = vsel %vm558, %v481, 0
        %v617 = vsel %vm558, %v482, 0
        %v620 = vsel %vm558, %v483, 0
        %v623 = vsel %vm558, %v484, 0
        %v626 = vsel %vm558, %v485, 0
        %v629 = vsel %vm558, %v486, 0
        %v632 = vsel %vm558, %v487, 0
        %v635 = vsel %vm558, %v488, 0
        %v638 = vsel %vm558, %v489, 0
        %v641 = vsel %vm558, %v490, 0
        %v644 = vsel %vm558, %v491, 0
        %v647 = vsel %vm558, %v492, 0
        %v650 = vsel %vm558, %v493, 0
        %v653 = vsel %vm558, %v494, 0
        %v656 = vsel %vm558, %v495, 0
        %v659 = vsel %vm558, %v496, 0
        %v662 = vsel %vm558, %v497, 0
        %v665 = vsel %vm558, %v498, 0
        %v668 = vsel %vm558, %v499, 0
        %v671 = vsel %vm558, %v500, 0
        %v674 = vsel %vm558, %v501, 0
        %v677 = vsel %vm558, %v502, 0
        %v680 = vsel %vm558, %v503, 0
        %v683 = vsel %vm558, %v504, 0
        %v686 = vsel %vm558, %v505, 0
        %v689 = vsel %vm558, %v506, 0
        %v692 = vsel %vm558, %v507, 0
        %v695 = vsel %vm558, %v508, 0
        %v698 = vsel %vm558, %v509, 0
        %v701 = vsel %vm558, %v510, 0
        %v704 = vsel %vm558, %v511, 0
        %v707 = vsel %vm558, %v512, 0
        %v710 = vsel %vm558, %v513, 0
        %v713 = vsel %vm558, %v514, 0
        %v716 = vsel %vm558, %v515, 0
        %v719 = vsel %vm558, %v516, 0
        %v722 = vsel %vm558, %v517, 0
        %v725 = vsel %vm558, %v518, 0
        %v728 = vsel %vm558, %v519, 0
        %v731 = vsel %vm558, %v520, 0
        %v734 = vsel %vm558, %v521, 0
        %v737 = vsel %vm558, %v522, 0
        %v740 = vsel %vm558, %v523, 0
        %v743 = vsel %vm558, %v524, 0
        %v746 = vsel %vm558, %v525, 0
        %v749 = vsel %vm558, %v526, 0
        %v752 = vsel %vm558, %v527, 0
        %v755 = vsel %vm558, %v528, 0
        %v758 = vsel %vm558, %v529, 0
        %v761 = vsel %vm558, %v530, 0
        %v764 = vsel %vm558, %v531, 0
        %v767 = vsel %vm558, %v532, 0
        %v770 = vsel %vm558, %v533, 0
        %v773 = vsel %vm558, %v534, 0
        %v776 = vsel %vm558, %v535, 0
        %v779 = vsel %vm558, %v536, 0
        %v782 = vsel %vm558, %v537, 0
        %v785 = vsel %vm558, %v538, 0
        %v788 = vsel %vm558, %v539, 0
        %v791 = vsel %vm558, %v540, 0
        %v794 = vsel %vm558, %v541, 0
        %v797 = vsel %vm558, %v542, 0
        %799 = vmatprep.subr.bf16.mxu0 0
        %800 = vmatpush1.bf16.msra.mxu0 0
        %801 = vmatprep.subr.bf16.mxu0 0
        %802 = vmatpush1.bf16.msra.mxu0 0
        %803 = vmatprep.subr.bf16.mxu0 0
        %804 = vmatpush1.bf16.msra.mxu0 0
        %805 = vmatprep.subr.bf16.mxu0 0
        %806 = vmatpush1.bf16.msra.mxu0 0
        %807 = vmatprep.subr.bf16.mxu0 0
        %808 = vmatpush1.bf16.msra.mxu0 0
        %809 = vmatprep.subr.bf16.mxu0 0
        %810 = vmatpush1.bf16.msra.mxu0 0
        %811 = vmatprep.subr.bf16.mxu0 0
        %812 = vmatpush1.bf16.msra.mxu0 0
        %813 = vmatprep.subr.bf16.mxu0 0
        %814 = vmatpush1.bf16.msra.mxu0 %v556
        %815 = vmatprep.subr.bf16.mxu0 0
        %816 = vmatpush2.bf16.msra.mxu0 0
        %817 = vmatprep.subr.bf16.mxu0 0
        %818 = vmatpush2.bf16.msra.mxu0 0
        %819 = vmatprep.subr.bf16.mxu0 0
        %820 = vmatpush2.bf16.msra.mxu0 0
        %821 = vmatprep.subr.bf16.mxu0 0
        %822 = vmatpush2.bf16.msra.mxu0 0
        %823 = vmatprep.subr.bf16.mxu0 0
        %824 = vmatpush2.bf16.msra.mxu0 0
        %825 = vmatprep.subr.bf16.mxu0 0
        %826 = vmatpush2.bf16.msra.mxu0 0
        %827 = vmatprep.subr.bf16.mxu0 0
        %828 = vmatpush2.bf16.msra.mxu0 0
        %829 = vmatprep.subr.bf16.mxu0 0
        %830 = vmatpush2.bf16.msra.mxu0 0
        %831 = vmatprep.mubr.bf16.mxu0 0
        %832 = vmatmul.mubr.bf16.gmra.mxu0 %v560
        %v833 = vpop.f32.mrf.mxu0
        %v834 = vadd.f32 %v550, %v833
        %v835 = vpop.f32.mrf.mxu0
        %v836 = vpop.f32.mrf.mxu0
        %v837 = vadd.f32 %v550, %v836
        %v838 = vpop.f32.mrf.mxu0
        %839 = vmatprep.mubr.bf16.mxu0 0
        %840 = vmatmul.mubr.bf16.gmra.mxu0 %v563
        %v841 = vpop.f32.mrf.mxu0
        %v842 = vadd.f32 %v550, %v841
        %v843 = vpop.f32.mrf.mxu0
        %v844 = vpop.f32.mrf.mxu0
        %v845 = vadd.f32 %v550, %v844
        %v846 = vpop.f32.mrf.mxu0
        %847 = vmatprep.mubr.bf16.mxu0 0
        %848 = vmatmul.mubr.bf16.gmra.mxu0 %v566
        %v849 = vpop.f32.mrf.mxu0
        %v850 = vadd.f32 %v550, %v849
        %v851 = vpop.f32.mrf.mxu0
        %v852 = vpop.f32.mrf.mxu0
        %v853 = vadd.f32 %v550, %v852
        %v854 = vpop.f32.mrf.mxu0
        %855 = vmatprep.mubr.bf16.mxu0 0
        %856 = vmatmul.mubr.bf16.gmra.mxu0 %v569
        %v857 = vpop.f32.mrf.mxu0
        %v858 = vadd.f32 %v550, %v857
        %v859 = vpop.f32.mrf.mxu0
        %v860 = vpop.f32.mrf.mxu0
        %v861 = vadd.f32 %v550, %v860
        %v862 = vpop.f32.mrf.mxu0
        %863 = vmatprep.mubr.bf16.mxu0 0
        %864 = vmatmul.mubr.bf16.gmra.mxu0 %v572
        %v865 = vpop.f32.mrf.mxu0
        %v866 = vadd.f32 %v550, %v865
        %v867 = vpop.f32.mrf.mxu0
        %v868 = vpop.f32.mrf.mxu0
        %v869 = vadd.f32 %v550, %v868
        %v870 = vpop.f32.mrf.mxu0
        %871 = vmatprep.mubr.bf16.mxu0 0
        %872 = vmatmul.mubr.bf16.gmra.mxu0 %v575
        %v873 = vpop.f32.mrf.mxu0
        %v874 = vadd.f32 %v550, %v873
        %v875 = vpop.f32.mrf.mxu0
        %v876 = vpop.f32.mrf.mxu0
        %v877 = vadd.f32 %v550, %v876
        %v878 = vpop.f32.mrf.mxu0
        %879 = vmatprep.mubr.bf16.mxu0 0
        %880 = vmatmul.mubr.bf16.gmra.mxu0 %v578
        %v881 = vpop.f32.mrf.mxu0
        %v882 = vadd.f32 %v550, %v881
        %v883 = vpop.f32.mrf.mxu0
        %v884 = vpop.f32.mrf.mxu0
        %v885 = vadd.f32 %v550, %v884
        %v886 = vpop.f32.mrf.mxu0
        %887 = vmatprep.mubr.bf16.mxu0 0
        %888 = vmatmul.mubr.bf16.gmra.mxu0 %v581
        %v889 = vpop.f32.mrf.mxu0
        %v890 = vadd.f32 %v550, %v889
        %v891 = vpop.f32.mrf.mxu0
        %v892 = vpop.f32.mrf.mxu0
        %v893 = vadd.f32 %v550, %v892
        %v894 = vpop.f32.mrf.mxu0
        %895 = vmatprep.mubr.bf16.mxu0 0
        %896 = vmatmul.mubr.bf16.gmra.mxu0 %v584
        %v897 = vpop.f32.mrf.mxu0
        %v898 = vadd.f32 %v550, %v897
        %v899 = vpop.f32.mrf.mxu0
        %v900 = vpop.f32.mrf.mxu0
        %v901 = vadd.f32 %v550, %v900
        %v902 = vpop.f32.mrf.mxu0
        %903 = vmatprep.mubr.bf16.mxu0 0
        %904 = vmatmul.mubr.bf16.gmra.mxu0 %v587
        %v905 = vpop.f32.mrf.mxu0
        %v906 = vadd.f32 %v550, %v905
        %v907 = vpop.f32.mrf.mxu0
        %v908 = vpop.f32.mrf.mxu0
        %v909 = vadd.f32 %v550, %v908
        %v910 = vpop.f32.mrf.mxu0
        %911 = vmatprep.mubr.bf16.mxu0 0
        %912 = vmatmul.mubr.bf16.gmra.mxu0 %v590
        %v913 = vpop.f32.mrf.mxu0
        %v914 = vadd.f32 %v550, %v913
        %v915 = vpop.f32.mrf.mxu0
        %v916 = vpop.f32.mrf.mxu0
        %v917 = vadd.f32 %v550, %v916
        %v918 = vpop.f32.mrf.mxu0
        %919 = vmatprep.mubr.bf16.mxu0 0
        %920 = vmatmul.mubr.bf16.gmra.mxu0 %v593
        %v921 = vpop.f32.mrf.mxu0
        %v922 = vadd.f32 %v550, %v921
        %v923 = vpop.f32.mrf.mxu0
        %v924 = vpop.f32.mrf.mxu0
        %v925 = vadd.f32 %v550, %v924
        %v926 = vpop.f32.mrf.mxu0
        %927 = vmatprep.mubr.bf16.mxu0 0
        %928 = vmatmul.mubr.bf16.gmra.mxu0 %v596
        %v929 = vpop.f32.mrf.mxu0
        %v930 = vadd.f32 %v550, %v929
        %v931 = vpop.f32.mrf.mxu0
        %v932 = vpop.f32.mrf.mxu0
        %v933 = vadd.f32 %v550, %v932
        %v934 = vpop.f32.mrf.mxu0
        %935 = vmatprep.mubr.bf16.mxu0 0
        %936 = vmatmul.mubr.bf16.gmra.mxu0 %v599
        %v937 = vpop.f32.mrf.mxu0
        %v938 = vadd.f32 %v550, %v937
        %v939 = vpop.f32.mrf.mxu0
        %v940 = vpop.f32.mrf.mxu0
        %v941 = vadd.f32 %v550, %v940
        %v942 = vpop.f32.mrf.mxu0
        %943 = vmatprep.mubr.bf16.mxu0 0
        %944 = vmatmul.mubr.bf16.gmra.mxu0 %v602
        %v945 = vpop.f32.mrf.mxu0
        %v946 = vadd.f32 %v550, %v945
        %v947 = vpop.f32.mrf.mxu0
        %v948 = vpop.f32.mrf.mxu0
        %v949 = vadd.f32 %v550, %v948
        %v950 = vpop.f32.mrf.mxu0
        %951 = vmatprep.mubr.bf16.mxu0 0
        %952 = vmatmul.mubr.bf16.gmra.mxu0 %v605
        %v953 = vpop.f32.mrf.mxu0
        %v954 = vadd.f32 %v550, %v953
        %v955 = vpop.f32.mrf.mxu0
        %v956 = vpop.f32.mrf.mxu0
        %v957 = vadd.f32 %v550, %v956
        %v958 = vpop.f32.mrf.mxu0
        %959 = vmatprep.mubr.bf16.mxu0 0
        %960 = vmatmul.mubr.bf16.gmra.mxu0 %v608
        %v961 = vpop.f32.mrf.mxu0
        %v962 = vadd.f32 %v550, %v961
        %v963 = vpop.f32.mrf.mxu0
        %v964 = vpop.f32.mrf.mxu0
        %v965 = vadd.f32 %v550, %v964
        %v966 = vpop.f32.mrf.mxu0
        %967 = vmatprep.mubr.bf16.mxu0 0
        %968 = vmatmul.mubr.bf16.gmra.mxu0 %v611
        %v969 = vpop.f32.mrf.mxu0
        %v970 = vadd.f32 %v550, %v969
        %v971 = vpop.f32.mrf.mxu0
        %v972 = vpop.f32.mrf.mxu0
        %v973 = vadd.f32 %v550, %v972
        %v974 = vpop.f32.mrf.mxu0
        %975 = vmatprep.mubr.bf16.mxu0 0
        %976 = vmatmul.mubr.bf16.gmra.mxu0 %v614
        %v977 = vpop.f32.mrf.mxu0
        %v978 = vadd.f32 %v550, %v977
        %v979 = vpop.f32.mrf.mxu0
        %v980 = vpop.f32.mrf.mxu0
        %v981 = vadd.f32 %v550, %v980
        %v982 = vpop.f32.mrf.mxu0
        %983 = vmatprep.mubr.bf16.mxu0 0
        %984 = vmatmul.mubr.bf16.gmra.mxu0 %v617
        %v985 = vpop.f32.mrf.mxu0
        %v986 = vadd.f32 %v550, %v985
        %v987 = vpop.f32.mrf.mxu0
        %v988 = vpop.f32.mrf.mxu0
        %v989 = vadd.f32 %v550, %v988
        %v990 = vpop.f32.mrf.mxu0
        %991 = vmatprep.mubr.bf16.mxu0 0
        %992 = vmatmul.mubr.bf16.gmra.mxu0 %v620
        %v993 = vpop.f32.mrf.mxu0
        %v994 = vadd.f32 %v550, %v993
        %v995 = vpop.f32.mrf.mxu0
        %v996 = vpop.f32.mrf.mxu0
        %v997 = vadd.f32 %v550, %v996
        %v998 = vpop.f32.mrf.mxu0
        %999 = vmatprep.mubr.bf16.mxu0 0
        %1000 = vmatmul.mubr.bf16.gmra.mxu0 %v623
        %v1001 = vpop.f32.mrf.mxu0
        %v1002 = vadd.f32 %v550, %v1001
        %v1003 = vpop.f32.mrf.mxu0
        %v1004 = vpop.f32.mrf.mxu0
        %v1005 = vadd.f32 %v550, %v1004
        %v1006 = vpop.f32.mrf.mxu0
        %1007 = vmatprep.mubr.bf16.mxu0 0
        %1008 = vmatmul.mubr.bf16.gmra.mxu0 %v626
        %v1009 = vpop.f32.mrf.mxu0
        %v1010 = vadd.f32 %v550, %v1009
        %v1011 = vpop.f32.mrf.mxu0
        %v1012 = vpop.f32.mrf.mxu0
        %v1013 = vadd.f32 %v550, %v1012
        %v1014 = vpop.f32.mrf.mxu0
        %1015 = vmatprep.mubr.bf16.mxu0 0
        %1016 = vmatmul.mubr.bf16.gmra.mxu0 %v629
        %v1017 = vpop.f32.mrf.mxu0
        %v1018 = vadd.f32 %v550, %v1017
        %v1019 = vpop.f32.mrf.mxu0
        %v1020 = vpop.f32.mrf.mxu0
        %v1021 = vadd.f32 %v550, %v1020
        %v1022 = vpop.f32.mrf.mxu0
        %1023 = vmatprep.mubr.bf16.mxu0 0
        %1024 = vmatmul.mubr.bf16.gmra.mxu0 %v632
        %v1025 = vpop.f32.mrf.mxu0
        %v1026 = vadd.f32 %v550, %v1025
        %v1027 = vpop.f32.mrf.mxu0
        %v1028 = vpop.f32.mrf.mxu0
        %v1029 = vadd.f32 %v550, %v1028
        %v1030 = vpop.f32.mrf.mxu0
        %1031 = vmatprep.mubr.bf16.mxu0 0
        %1032 = vmatmul.mubr.bf16.gmra.mxu0 %v635
        %v1033 = vpop.f32.mrf.mxu0
        %v1034 = vadd.f32 %v550, %v1033
        %v1035 = vpop.f32.mrf.mxu0
        %v1036 = vpop.f32.mrf.mxu0
        %v1037 = vadd.f32 %v550, %v1036
        %v1038 = vpop.f32.mrf.mxu0
        %1039 = vmatprep.mubr.bf16.mxu0 0
        %1040 = vmatmul.mubr.bf16.gmra.mxu0 %v638
        %v1041 = vpop.f32.mrf.mxu0
        %v1042 = vadd.f32 %v550, %v1041
        %v1043 = vpop.f32.mrf.mxu0
        %v1044 = vpop.f32.mrf.mxu0
        %v1045 = vadd.f32 %v550, %v1044
        %v1046 = vpop.f32.mrf.mxu0
        %1047 = vmatprep.mubr.bf16.mxu0 0
        %1048 = vmatmul.mubr.bf16.gmra.mxu0 %v641
        %v1049 = vpop.f32.mrf.mxu0
        %v1050 = vadd.f32 %v550, %v1049
        %v1051 = vpop.f32.mrf.mxu0
        %v1052 = vpop.f32.mrf.mxu0
        %v1053 = vadd.f32 %v550, %v1052
        %v1054 = vpop.f32.mrf.mxu0
        %1055 = vmatprep.mubr.bf16.mxu0 0
        %1056 = vmatmul.mubr.bf16.gmra.mxu0 %v644
        %v1057 = vpop.f32.mrf.mxu0
        %v1058 = vadd.f32 %v550, %v1057
        %v1059 = vpop.f32.mrf.mxu0
        %v1060 = vpop.f32.mrf.mxu0
        %v1061 = vadd.f32 %v550, %v1060
        %v1062 = vpop.f32.mrf.mxu0
        %1063 = vmatprep.mubr.bf16.mxu0 0
        %1064 = vmatmul.mubr.bf16.gmra.mxu0 %v647
        %v1065 = vpop.f32.mrf.mxu0
        %v1066 = vadd.f32 %v550, %v1065
        %v1067 = vpop.f32.mrf.mxu0
        %v1068 = vpop.f32.mrf.mxu0
        %v1069 = vadd.f32 %v550, %v1068
        %v1070 = vpop.f32.mrf.mxu0
        %1071 = vmatprep.mubr.bf16.mxu0 0
        %1072 = vmatmul.mubr.bf16.gmra.mxu0 %v650
        %v1073 = vpop.f32.mrf.mxu0
        %v1074 = vadd.f32 %v550, %v1073
        %v1075 = vpop.f32.mrf.mxu0
        %v1076 = vpop.f32.mrf.mxu0
        %v1077 = vadd.f32 %v550, %v1076
        %v1078 = vpop.f32.mrf.mxu0
        %1079 = vmatprep.mubr.bf16.mxu0 0
        %1080 = vmatmul.mubr.bf16.gmra.mxu0 %v653
        %v1081 = vpop.f32.mrf.mxu0
        %v1082 = vadd.f32 %v550, %v1081
        %v1083 = vpop.f32.mrf.mxu0
        %v1084 = vpop.f32.mrf.mxu0
        %v1085 = vadd.f32 %v550, %v1084
        %v1086 = vpop.f32.mrf.mxu0
        %1087 = vmatprep.mubr.bf16.mxu0 0
        %1088 = vmatmul.mubr.bf16.gmra.mxu0 %v656
        %v1089 = vpop.f32.mrf.mxu0
        %v1090 = vadd.f32 %v550, %v1089
        %v1091 = vpop.f32.mrf.mxu0
        %v1092 = vpop.f32.mrf.mxu0
        %v1093 = vadd.f32 %v550, %v1092
        %v1094 = vpop.f32.mrf.mxu0
        %1095 = vmatprep.mubr.bf16.mxu0 0
        %1096 = vmatmul.mubr.bf16.gmra.mxu0 %v659
        %v1097 = vpop.f32.mrf.mxu0
        %v1098 = vadd.f32 %v550, %v1097
        %v1099 = vpop.f32.mrf.mxu0
        %v1100 = vpop.f32.mrf.mxu0
        %v1101 = vadd.f32 %v550, %v1100
        %v1102 = vpop.f32.mrf.mxu0
        %1103 = vmatprep.mubr.bf16.mxu0 0
        %1104 = vmatmul.mubr.bf16.gmra.mxu0 %v662
        %v1105 = vpop.f32.mrf.mxu0
        %v1106 = vadd.f32 %v550, %v1105
        %v1107 = vpop.f32.mrf.mxu0
        %v1108 = vpop.f32.mrf.mxu0
        %v1109 = vadd.f32 %v550, %v1108
        %v1110 = vpop.f32.mrf.mxu0
        %1111 = vmatprep.mubr.bf16.mxu0 0
        %1112 = vmatmul.mubr.bf16.gmra.mxu0 %v665
        %v1113 = vpop.f32.mrf.mxu0
        %v1114 = vadd.f32 %v550, %v1113
        %v1115 = vpop.f32.mrf.mxu0
        %v1116 = vpop.f32.mrf.mxu0
        %v1117 = vadd.f32 %v550, %v1116
        %v1118 = vpop.f32.mrf.mxu0
        %1119 = vmatprep.mubr.bf16.mxu0 0
        %1120 = vmatmul.mubr.bf16.gmra.mxu0 %v668
        %v1121 = vpop.f32.mrf.mxu0
        %v1122 = vadd.f32 %v550, %v1121
        %v1123 = vpop.f32.mrf.mxu0
        %v1124 = vpop.f32.mrf.mxu0
        %v1125 = vadd.f32 %v550, %v1124
        %v1126 = vpop.f32.mrf.mxu0
        %1127 = vmatprep.mubr.bf16.mxu0 0
        %1128 = vmatmul.mubr.bf16.gmra.mxu0 %v671
        %v1129 = vpop.f32.mrf.mxu0
        %v1130 = vadd.f32 %v550, %v1129
        %v1131 = vpop.f32.mrf.mxu0
        %v1132 = vpop.f32.mrf.mxu0
        %v1133 = vadd.f32 %v550, %v1132
        %v1134 = vpop.f32.mrf.mxu0
        %1135 = vmatprep.mubr.bf16.mxu0 0
        %1136 = vmatmul.mubr.bf16.gmra.mxu0 %v674
        %v1137 = vpop.f32.mrf.mxu0
        %v1138 = vadd.f32 %v550, %v1137
        %v1139 = vpop.f32.mrf.mxu0
        %v1140 = vpop.f32.mrf.mxu0
        %v1141 = vadd.f32 %v550, %v1140
        %v1142 = vpop.f32.mrf.mxu0
        %1143 = vmatprep.mubr.bf16.mxu0 0
        %1144 = vmatmul.mubr.bf16.gmra.mxu0 %v677
        %v1145 = vpop.f32.mrf.mxu0
        %v1146 = vadd.f32 %v550, %v1145
        %v1147 = vpop.f32.mrf.mxu0
        %v1148 = vpop.f32.mrf.mxu0
        %v1149 = vadd.f32 %v550, %v1148
        %v1150 = vpop.f32.mrf.mxu0
        %1151 = vmatprep.mubr.bf16.mxu0 0
        %1152 = vmatmul.mubr.bf16.gmra.mxu0 %v680
        %v1153 = vpop.f32.mrf.mxu0
        %v1154 = vadd.f32 %v550, %v1153
        %v1155 = vpop.f32.mrf.mxu0
        %v1156 = vpop.f32.mrf.mxu0
        %v1157 = vadd.f32 %v550, %v1156
        %v1158 = vpop.f32.mrf.mxu0
        %1159 = vmatprep.mubr.bf16.mxu0 0
        %1160 = vmatmul.mubr.bf16.gmra.mxu0 %v683
        %v1161 = vpop.f32.mrf.mxu0
        %v1162 = vadd.f32 %v550, %v1161
        %v1163 = vpop.f32.mrf.mxu0
        %v1164 = vpop.f32.mrf.mxu0
        %v1165 = vadd.f32 %v550, %v1164
        %v1166 = vpop.f32.mrf.mxu0
        %1167 = vmatprep.mubr.bf16.mxu0 0
        %1168 = vmatmul.mubr.bf16.gmra.mxu0 %v686
        %v1169 = vpop.f32.mrf.mxu0
        %v1170 = vadd.f32 %v550, %v1169
        %v1171 = vpop.f32.mrf.mxu0
        %v1172 = vpop.f32.mrf.mxu0
        %v1173 = vadd.f32 %v550, %v1172
        %v1174 = vpop.f32.mrf.mxu0
        %1175 = vmatprep.mubr.bf16.mxu0 0
        %1176 = vmatmul.mubr.bf16.gmra.mxu0 %v689
        %v1177 = vpop.f32.mrf.mxu0
        %v1178 = vadd.f32 %v550, %v1177
        %v1179 = vpop.f32.mrf.mxu0
        %v1180 = vpop.f32.mrf.mxu0
        %v1181 = vadd.f32 %v550, %v1180
        %v1182 = vpop.f32.mrf.mxu0
        %1183 = vmatprep.mubr.bf16.mxu0 0
        %1184 = vmatmul.mubr.bf16.gmra.mxu0 %v692
        %v1185 = vpop.f32.mrf.mxu0
        %v1186 = vadd.f32 %v550, %v1185
        %v1187 = vpop.f32.mrf.mxu0
        %v1188 = vpop.f32.mrf.mxu0
        %v1189 = vadd.f32 %v550, %v1188
        %v1190 = vpop.f32.mrf.mxu0
        %1191 = vmatprep.mubr.bf16.mxu0 0
        %1192 = vmatmul.mubr.bf16.gmra.mxu0 %v695
        %v1193 = vpop.f32.mrf.mxu0
        %v1194 = vadd.f32 %v550, %v1193
        %v1195 = vpop.f32.mrf.mxu0
        %v1196 = vpop.f32.mrf.mxu0
        %v1197 = vadd.f32 %v550, %v1196
        %v1198 = vpop.f32.mrf.mxu0
        %1199 = vmatprep.mubr.bf16.mxu0 0
        %1200 = vmatmul.mubr.bf16.gmra.mxu0 %v698
        %v1201 = vpop.f32.mrf.mxu0
        %v1202 = vadd.f32 %v550, %v1201
        %v1203 = vpop.f32.mrf.mxu0
        %v1204 = vpop.f32.mrf.mxu0
        %v1205 = vadd.f32 %v550, %v1204
        %v1206 = vpop.f32.mrf.mxu0
        %1207 = vmatprep.mubr.bf16.mxu0 0
        %1208 = vmatmul.mubr.bf16.gmra.mxu0 %v701
        %v1209 = vpop.f32.mrf.mxu0
        %v1210 = vadd.f32 %v550, %v1209
        %v1211 = vpop.f32.mrf.mxu0
        %v1212 = vpop.f32.mrf.mxu0
        %v1213 = vadd.f32 %v550, %v1212
        %v1214 = vpop.f32.mrf.mxu0
        %1215 = vmatprep.mubr.bf16.mxu0 0
        %1216 = vmatmul.mubr.bf16.gmra.mxu0 %v704
        %v1217 = vpop.f32.mrf.mxu0
        %v1218 = vadd.f32 %v550, %v1217
        %v1219 = vpop.f32.mrf.mxu0
        %v1220 = vpop.f32.mrf.mxu0
        %v1221 = vadd.f32 %v550, %v1220
        %v1222 = vpop.f32.mrf.mxu0
        %1223 = vmatprep.mubr.bf16.mxu0 0
        %1224 = vmatmul.mubr.bf16.gmra.mxu0 %v707
        %v1225 = vpop.f32.mrf.mxu0
        %v1226 = vadd.f32 %v550, %v1225
        %v1227 = vpop.f32.mrf.mxu0
        %v1228 = vpop.f32.mrf.mxu0
        %v1229 = vadd.f32 %v550, %v1228
        %v1230 = vpop.f32.mrf.mxu0
        %1231 = vmatprep.mubr.bf16.mxu0 0
        %1232 = vmatmul.mubr.bf16.gmra.mxu0 %v710
        %v1233 = vpop.f32.mrf.mxu0
        %v1234 = vadd.f32 %v550, %v1233
        %v1235 = vpop.f32.mrf.mxu0
        %v1236 = vpop.f32.mrf.mxu0
        %v1237 = vadd.f32 %v550, %v1236
        %v1238 = vpop.f32.mrf.mxu0
        %1239 = vmatprep.mubr.bf16.mxu0 0
        %1240 = vmatmul.mubr.bf16.gmra.mxu0 %v713
        %v1241 = vpop.f32.mrf.mxu0
        %v1242 = vadd.f32 %v550, %v1241
        %v1243 = vpop.f32.mrf.mxu0
        %v1244 = vpop.f32.mrf.mxu0
        %v1245 = vadd.f32 %v550, %v1244
        %v1246 = vpop.f32.mrf.mxu0
        %1247 = vmatprep.mubr.bf16.mxu0 0
        %1248 = vmatmul.mubr.bf16.gmra.mxu0 %v716
        %v1249 = vpop.f32.mrf.mxu0
        %v1250 = vadd.f32 %v550, %v1249
        %v1251 = vpop.f32.mrf.mxu0
        %v1252 = vpop.f32.mrf.mxu0
        %v1253 = vadd.f32 %v550, %v1252
        %v1254 = vpop.f32.mrf.mxu0
        %1255 = vmatprep.mubr.bf16.mxu0 0
        %1256 = vmatmul.mubr.bf16.gmra.mxu0 %v719
        %v1257 = vpop.f32.mrf.mxu0
        %v1258 = vadd.f32 %v550, %v1257
        %v1259 = vpop.f32.mrf.mxu0
        %v1260 = vpop.f32.mrf.mxu0
        %v1261 = vadd.f32 %v550, %v1260
        %v1262 = vpop.f32.mrf.mxu0
        %1263 = vmatprep.mubr.bf16.mxu0 0
        %1264 = vmatmul.mubr.bf16.gmra.mxu0 %v722
        %v1265 = vpop.f32.mrf.mxu0
        %v1266 = vadd.f32 %v550, %v1265
        %v1267 = vpop.f32.mrf.mxu0
        %v1268 = vpop.f32.mrf.mxu0
        %v1269 = vadd.f32 %v550, %v1268
        %v1270 = vpop.f32.mrf.mxu0
        %1271 = vmatprep.mubr.bf16.mxu0 0
        %1272 = vmatmul.mubr.bf16.gmra.mxu0 %v725
        %v1273 = vpop.f32.mrf.mxu0
        %v1274 = vadd.f32 %v550, %v1273
        %v1275 = vpop.f32.mrf.mxu0
        %v1276 = vpop.f32.mrf.mxu0
        %v1277 = vadd.f32 %v550, %v1276
        %v1278 = vpop.f32.mrf.mxu0
        %1279 = vmatprep.mubr.bf16.mxu0 0
        %1280 = vmatmul.mubr.bf16.gmra.mxu0 %v728
        %v1281 = vpop.f32.mrf.mxu0
        %v1282 = vadd.f32 %v550, %v1281
        %v1283 = vpop.f32.mrf.mxu0
        %v1284 = vpop.f32.mrf.mxu0
        %v1285 = vadd.f32 %v550, %v1284
        %v1286 = vpop.f32.mrf.mxu0
        %1287 = vmatprep.mubr.bf16.mxu0 0
        %1288 = vmatmul.mubr.bf16.gmra.mxu0 %v731
        %v1289 = vpop.f32.mrf.mxu0
        %v1290 = vadd.f32 %v550, %v1289
        %v1291 = vpop.f32.mrf.mxu0
        %v1292 = vpop.f32.mrf.mxu0
        %v1293 = vadd.f32 %v550, %v1292
        %v1294 = vpop.f32.mrf.mxu0
        %1295 = vmatprep.mubr.bf16.mxu0 0
        %1296 = vmatmul.mubr.bf16.gmra.mxu0 %v734
        %v1297 = vpop.f32.mrf.mxu0
        %v1298 = vadd.f32 %v550, %v1297
        %v1299 = vpop.f32.mrf.mxu0
        %v1300 = vpop.f32.mrf.mxu0
        %v1301 = vadd.f32 %v550, %v1300
        %v1302 = vpop.f32.mrf.mxu0
        %1303 = vmatprep.mubr.bf16.mxu0 0
        %1304 = vmatmul.mubr.bf16.gmra.mxu0 %v737
        %v1305 = vpop.f32.mrf.mxu0
        %v1306 = vadd.f32 %v550, %v1305
        %v1307 = vpop.f32.mrf.mxu0
        %v1308 = vpop.f32.mrf.mxu0
        %v1309 = vadd.f32 %v550, %v1308
        %v1310 = vpop.f32.mrf.mxu0
        %1311 = vmatprep.mubr.bf16.mxu0 0
        %1312 = vmatmul.mubr.bf16.gmra.mxu0 %v740
        %v1313 = vpop.f32.mrf.mxu0
        %v1314 = vadd.f32 %v550, %v1313
        %v1315 = vpop.f32.mrf.mxu0
        %v1316 = vpop.f32.mrf.mxu0
        %v1317 = vadd.f32 %v550, %v1316
        %v1318 = vpop.f32.mrf.mxu0
        %1319 = vmatprep.mubr.bf16.mxu0 0
        %1320 = vmatmul.mubr.bf16.gmra.mxu0 %v743
        %v1321 = vpop.f32.mrf.mxu0
        %v1322 = vadd.f32 %v550, %v1321
        %v1323 = vpop.f32.mrf.mxu0
        %v1324 = vpop.f32.mrf.mxu0
        %v1325 = vadd.f32 %v550, %v1324
        %v1326 = vpop.f32.mrf.mxu0
        %1327 = vmatprep.mubr.bf16.mxu0 0
        %1328 = vmatmul.mubr.bf16.gmra.mxu0 %v746
        %v1329 = vpop.f32.mrf.mxu0
        %v1330 = vadd.f32 %v550, %v1329
        %v1331 = vpop.f32.mrf.mxu0
        %v1332 = vpop.f32.mrf.mxu0
        %v1333 = vadd.f32 %v550, %v1332
        %v1334 = vpop.f32.mrf.mxu0
        %1335 = vmatprep.mubr.bf16.mxu0 0
        %1336 = vmatmul.mubr.bf16.gmra.mxu0 %v749
        %v1337 = vpop.f32.mrf.mxu0
        %v1338 = vadd.f32 %v550, %v1337
        %v1339 = vpop.f32.mrf.mxu0
        %v1340 = vpop.f32.mrf.mxu0
        %v1341 = vadd.f32 %v550, %v1340
        %v1342 = vpop.f32.mrf.mxu0
        %1343 = vmatprep.mubr.bf16.mxu0 0
        %1344 = vmatmul.mubr.bf16.gmra.mxu0 %v752
        %v1345 = vpop.f32.mrf.mxu0
        %v1346 = vadd.f32 %v550, %v1345
        %v1347 = vpop.f32.mrf.mxu0
        %v1348 = vpop.f32.mrf.mxu0
        %v1349 = vadd.f32 %v550, %v1348
        %v1350 = vpop.f32.mrf.mxu0
        %1351 = vmatprep.mubr.bf16.mxu0 0
        %1352 = vmatmul.mubr.bf16.gmra.mxu0 %v755
        %v1353 = vpop.f32.mrf.mxu0
        %v1354 = vadd.f32 %v550, %v1353
        %v1355 = vpop.f32.mrf.mxu0
        %v1356 = vpop.f32.mrf.mxu0
        %v1357 = vadd.f32 %v550, %v1356
        %v1358 = vpop.f32.mrf.mxu0
        %1359 = vmatprep.mubr.bf16.mxu0 0
        %1360 = vmatmul.mubr.bf16.gmra.mxu0 %v758
        %v1361 = vpop.f32.mrf.mxu0
        %v1362 = vadd.f32 %v550, %v1361
        %v1363 = vpop.f32.mrf.mxu0
        %v1364 = vpop.f32.mrf.mxu0
        %v1365 = vadd.f32 %v550, %v1364
        %v1366 = vpop.f32.mrf.mxu0
        %1367 = vmatprep.mubr.bf16.mxu0 0
        %1368 = vmatmul.mubr.bf16.gmra.mxu0 %v761
        %v1369 = vpop.f32.mrf.mxu0
        %v1370 = vadd.f32 %v550, %v1369
        %v1371 = vpop.f32.mrf.mxu0
        %v1372 = vpop.f32.mrf.mxu0
        %v1373 = vadd.f32 %v550, %v1372
        %v1374 = vpop.f32.mrf.mxu0
        %1375 = vmatprep.mubr.bf16.mxu0 0
        %1376 = vmatmul.mubr.bf16.gmra.mxu0 %v764
        %v1377 = vpop.f32.mrf.mxu0
        %v1378 = vadd.f32 %v550, %v1377
        %v1379 = vpop.f32.mrf.mxu0
        %v1380 = vpop.f32.mrf.mxu0
        %v1381 = vadd.f32 %v550, %v1380
        %v1382 = vpop.f32.mrf.mxu0
        %1383 = vmatprep.mubr.bf16.mxu0 0
        %1384 = vmatmul.mubr.bf16.gmra.mxu0 %v767
        %v1385 = vpop.f32.mrf.mxu0
        %v1386 = vadd.f32 %v550, %v1385
        %v1387 = vpop.f32.mrf.mxu0
        %v1388 = vpop.f32.mrf.mxu0
        %v1389 = vadd.f32 %v550, %v1388
        %v1390 = vpop.f32.mrf.mxu0
        %1391 = vmatprep.mubr.bf16.mxu0 0
        %1392 = vmatmul.mubr.bf16.gmra.mxu0 %v770
        %v1393 = vpop.f32.mrf.mxu0
        %v1394 = vadd.f32 %v550, %v1393
        %v1395 = vpop.f32.mrf.mxu0
        %v1396 = vpop.f32.mrf.mxu0
        %v1397 = vadd.f32 %v550, %v1396
        %v1398 = vpop.f32.mrf.mxu0
        %1399 = vmatprep.mubr.bf16.mxu0 0
        %1400 = vmatmul.mubr.bf16.gmra.mxu0 %v773
        %v1401 = vpop.f32.mrf.mxu0
        %v1402 = vadd.f32 %v550, %v1401
        %v1403 = vpop.f32.mrf.mxu0
        %v1404 = vpop.f32.mrf.mxu0
        %v1405 = vadd.f32 %v550, %v1404
        %v1406 = vpop.f32.mrf.mxu0
        %1407 = vmatprep.mubr.bf16.mxu0 0
        %1408 = vmatmul.mubr.bf16.gmra.mxu0 %v776
        %v1409 = vpop.f32.mrf.mxu0
        %v1410 = vadd.f32 %v550, %v1409
        %v1411 = vpop.f32.mrf.mxu0
        %v1412 = vpop.f32.mrf.mxu0
        %v1413 = vadd.f32 %v550, %v1412
        %v1414 = vpop.f32.mrf.mxu0
        %1415 = vmatprep.mubr.bf16.mxu0 0
        %1416 = vmatmul.mubr.bf16.gmra.mxu0 %v779
        %v1417 = vpop.f32.mrf.mxu0
        %v1418 = vadd.f32 %v550, %v1417
        %v1419 = vpop.f32.mrf.mxu0
        %v1420 = vpop.f32.mrf.mxu0
        %v1421 = vadd.f32 %v550, %v1420
        %v1422 = vpop.f32.mrf.mxu0
        %1423 = vmatprep.mubr.bf16.mxu0 0
        %1424 = vmatmul.mubr.bf16.gmra.mxu0 %v782
        %v1425 = vpop.f32.mrf.mxu0
        %v1426 = vadd.f32 %v550, %v1425
        %v1427 = vpop.f32.mrf.mxu0
        %v1428 = vpop.f32.mrf.mxu0
        %v1429 = vadd.f32 %v550, %v1428
        %v1430 = vpop.f32.mrf.mxu0
        %1431 = vmatprep.mubr.bf16.mxu0 0
        %1432 = vmatmul.mubr.bf16.gmra.mxu0 %v785
        %v1433 = vpop.f32.mrf.mxu0
        %v1434 = vadd.f32 %v550, %v1433
        %v1435 = vpop.f32.mrf.mxu0
        %v1436 = vpop.f32.mrf.mxu0
        %v1437 = vadd.f32 %v550, %v1436
        %v1438 = vpop.f32.mrf.mxu0
        %1439 = vmatprep.mubr.bf16.mxu0 0
        %1440 = vmatmul.mubr.bf16.gmra.mxu0 %v788
        %v1441 = vpop.f32.mrf.mxu0
        %v1442 = vadd.f32 %v550, %v1441
        %v1443 = vpop.f32.mrf.mxu0
        %v1444 = vpop.f32.mrf.mxu0
        %v1445 = vadd.f32 %v550, %v1444
        %v1446 = vpop.f32.mrf.mxu0
        %1447 = vmatprep.mubr.bf16.mxu0 0
        %1448 = vmatmul.mubr.bf16.gmra.mxu0 %v791
        %v1449 = vpop.f32.mrf.mxu0
        %v1450 = vadd.f32 %v550, %v1449
        %v1451 = vpop.f32.mrf.mxu0
        %v1452 = vpop.f32.mrf.mxu0
        %v1453 = vadd.f32 %v550, %v1452
        %v1454 = vpop.f32.mrf.mxu0
        %1455 = vmatprep.mubr.bf16.mxu0 0
        %1456 = vmatmul.mubr.bf16.gmra.mxu0 %v794
        %v1457 = vpop.f32.mrf.mxu0
        %v1458 = vadd.f32 %v550, %v1457
        %v1459 = vpop.f32.mrf.mxu0
        %v1460 = vpop.f32.mrf.mxu0
        %v1461 = vadd.f32 %v550, %v1460
        %v1462 = vpop.f32.mrf.mxu0
        %1463 = vmatprep.mubr.bf16.mxu0 0
        %1464 = vmatmul.mubr.bf16.gmra.mxu0 %v797
        %v1465 = vpop.f32.mrf.mxu0
        %v1466 = vadd.f32 %v550, %v1465
        %v1467 = vpop.f32.mrf.mxu0
        %v1468 = vpop.f32.mrf.mxu0
        %v1469 = vadd.f32 %v550, %v1468
        %v1470 = vpop.f32.mrf.mxu0
        %1471 = vdwg.mxu0
        %v1472 = vmax.f32 %v834, 0.0
        %v1473 = vmax.f32 %v837, 0.0
        %v1474 = vmax.f32 %v842, 0.0
        %v1475 = vmax.f32 %v845, 0.0
        %v1476 = vmax.f32 %v850, 0.0
        %v1477 = vmax.f32 %v853, 0.0
        %v1478 = vmax.f32 %v858, 0.0
        %v1479 = vmax.f32 %v861, 0.0
        %v1480 = vmax.f32 %v866, 0.0
        %v1481 = vmax.f32 %v869, 0.0
        %v1482 = vmax.f32 %v874, 0.0
        %v1483 = vmax.f32 %v877, 0.0
        %v1484 = vmax.f32 %v882, 0.0
        %v1485 = vmax.f32 %v885, 0.0
        %v1486 = vmax.f32 %v890, 0.0
        %v1487 = vmax.f32 %v893, 0.0
        %v1488 = vmax.f32 %v898, 0.0
        %v1489 = vmax.f32 %v901, 0.0
        %v1490 = vmax.f32 %v906, 0.0
        %v1491 = vmax.f32 %v909, 0.0
        %v1492 = vmax.f32 %v914, 0.0
        %v1493 = vmax.f32 %v917, 0.0
        %v1494 = vmax.f32 %v922, 0.0
        %v1495 = vmax.f32 %v925, 0.0
        %v1496 = vmax.f32 %v930, 0.0
        %v1497 = vmax.f32 %v933, 0.0
        %v1498 = vmax.f32 %v938, 0.0
        %v1499 = vmax.f32 %v941, 0.0
        %v1500 = vmax.f32 %v946, 0.0
        %v1501 = vmax.f32 %v949, 0.0
        %v1502 = vmax.f32 %v954, 0.0
        %v1503 = vmax.f32 %v957, 0.0
        %v1504 = vmax.f32 %v962, 0.0
        %v1505 = vmax.f32 %v965, 0.0
        %v1506 = vmax.f32 %v970, 0.0
        %v1507 = vmax.f32 %v973, 0.0
        %v1508 = vmax.f32 %v978, 0.0
        %v1509 = vmax.f32 %v981, 0.0
        %v1510 = vmax.f32 %v986, 0.0
        %v1511 = vmax.f32 %v989, 0.0
        %v1512 = vmax.f32 %v994, 0.0
        %v1513 = vmax.f32 %v997, 0.0
        %v1514 = vmax.f32 %v1002, 0.0
        %v1515 = vmax.f32 %v1005, 0.0
        %v1516 = vmax.f32 %v1010, 0.0
        %v1517 = vmax.f32 %v1013, 0.0
        %v1518 = vmax.f32 %v1018, 0.0
        %v1519 = vmax.f32 %v1021, 0.0
        %v1520 = vmax.f32 %v1026, 0.0
        %v1521 = vmax.f32 %v1029, 0.0
        %v1522 = vmax.f32 %v1034, 0.0
        %v1523 = vmax.f32 %v1037, 0.0
        %v1524 = vmax.f32 %v1042, 0.0
        %v1525 = vmax.f32 %v1045, 0.0
        %v1526 = vmax.f32 %v1050, 0.0
        %v1527 = vmax.f32 %v1053, 0.0
        %v1528 = vmax.f32 %v1058, 0.0
        %v1529 = vmax.f32 %v1061, 0.0
        %v1530 = vmax.f32 %v1066, 0.0
        %v1531 = vmax.f32 %v1069, 0.0
        %v1532 = vmax.f32 %v1074, 0.0
        %v1533 = vmax.f32 %v1077, 0.0
        %v1534 = vmax.f32 %v1082, 0.0
        %v1535 = vmax.f32 %v1085, 0.0
        %v1536 = vmax.f32 %v1090, 0.0
        %v1537 = vmax.f32 %v1093, 0.0
        %v1538 = vmax.f32 %v1098, 0.0
        %v1539 = vmax.f32 %v1101, 0.0
        %v1540 = vmax.f32 %v1106, 0.0
        %v1541 = vmax.f32 %v1109, 0.0
        %v1542 = vmax.f32 %v1114, 0.0
        %v1543 = vmax.f32 %v1117, 0.0
        %v1544 = vmax.f32 %v1122, 0.0
        %v1545 = vmax.f32 %v1125, 0.0
        %v1546 = vmax.f32 %v1130, 0.0
        %v1547 = vmax.f32 %v1133, 0.0
        %v1548 = vmax.f32 %v1138, 0.0
        %v1549 = vmax.f32 %v1141, 0.0
        %v1550 = vmax.f32 %v1146, 0.0
        %v1551 = vmax.f32 %v1149, 0.0
        %v1552 = vmax.f32 %v1154, 0.0
        %v1553 = vmax.f32 %v1157, 0.0
        %v1554 = vmax.f32 %v1162, 0.0
        %v1555 = vmax.f32 %v1165, 0.0
        %v1556 = vmax.f32 %v1170, 0.0
        %v1557 = vmax.f32 %v1173, 0.0
        %v1558 = vmax.f32 %v1178, 0.0
        %v1559 = vmax.f32 %v1181, 0.0
        %v1560 = vmax.f32 %v1186, 0.0
        %v1561 = vmax.f32 %v1189, 0.0
        %v1562 = vmax.f32 %v1194, 0.0
        %v1563 = vmax.f32 %v1197, 0.0
        %v1564 = vmax.f32 %v1202, 0.0
        %v1565 = vmax.f32 %v1205, 0.0
        %v1566 = vmax.f32 %v1210, 0.0
        %v1567 = vmax.f32 %v1213, 0.0
        %v1568 = vmax.f32 %v1218, 0.0
        %v1569 = vmax.f32 %v1221, 0.0
        %v1570 = vmax.f32 %v1226, 0.0
        %v1571 = vmax.f32 %v1229, 0.0
        %v1572 = vmax.f32 %v1234, 0.0
        %v1573 = vmax.f32 %v1237, 0.0
        %v1574 = vmax.f32 %v1242, 0.0
        %v1575 = vmax.f32 %v1245, 0.0
        %v1576 = vmax.f32 %v1250, 0.0
        %v1577 = vmax.f32 %v1253, 0.0
        %v1578 = vmax.f32 %v1258, 0.0
        %v1579 = vmax.f32 %v1261, 0.0
        %v1580 = vmax.f32 %v1266, 0.0
        %v1581 = vmax.f32 %v1269, 0.0
        %v1582 = vmax.f32 %v1274, 0.0
        %v1583 = vmax.f32 %v1277, 0.0
        %v1584 = vmax.f32 %v1282, 0.0
        %v1585 = vmax.f32 %v1285, 0.0
        %v1586 = vmax.f32 %v1290, 0.0
        %v1587 = vmax.f32 %v1293, 0.0
        %v1588 = vmax.f32 %v1298, 0.0
        %v1589 = vmax.f32 %v1301, 0.0
        %v1590 = vmax.f32 %v1306, 0.0
        %v1591 = vmax.f32 %v1309, 0.0
        %v1592 = vmax.f32 %v1314, 0.0
        %v1593 = vmax.f32 %v1317, 0.0
        %v1594 = vmax.f32 %v1322, 0.0
        %v1595 = vmax.f32 %v1325, 0.0
        %v1596 = vmax.f32 %v1330, 0.0
        %v1597 = vmax.f32 %v1333, 0.0
        %v1598 = vmax.f32 %v1338, 0.0
        %v1599 = vmax.f32 %v1341, 0.0
        %v1600 = vmax.f32 %v1346, 0.0
        %v1601 = vmax.f32 %v1349, 0.0
        %v1602 = vmax.f32 %v1354, 0.0
        %v1603 = vmax.f32 %v1357, 0.0
        %v1604 = vmax.f32 %v1362, 0.0
        %v1605 = vmax.f32 %v1365, 0.0
        %v1606 = vmax.f32 %v1370, 0.0
        %v1607 = vmax.f32 %v1373, 0.0
        %v1608 = vmax.f32 %v1378, 0.0
        %v1609 = vmax.f32 %v1381, 0.0
        %v1610 = vmax.f32 %v1386, 0.0
        %v1611 = vmax.f32 %v1389, 0.0
        %v1612 = vmax.f32 %v1394, 0.0
        %v1613 = vmax.f32 %v1397, 0.0
        %v1614 = vmax.f32 %v1402, 0.0
        %v1615 = vmax.f32 %v1405, 0.0
        %v1616 = vmax.f32 %v1410, 0.0
        %v1617 = vmax.f32 %v1413, 0.0
        %v1618 = vmax.f32 %v1418, 0.0
        %v1619 = vmax.f32 %v1421, 0.0
        %v1620 = vmax.f32 %v1426, 0.0
        %v1621 = vmax.f32 %v1429, 0.0
        %v1622 = vmax.f32 %v1434, 0.0
        %v1623 = vmax.f32 %v1437, 0.0
        %v1624 = vmax.f32 %v1442, 0.0
        %v1625 = vmax.f32 %v1445, 0.0
        %v1626 = vmax.f32 %v1450, 0.0
        %v1627 = vmax.f32 %v1453, 0.0
        %v1628 = vmax.f32 %v1458, 0.0
        %v1629 = vmax.f32 %v1461, 0.0
        %v1630 = vmax.f32 %v1466, 0.0
        %v1631 = vmax.f32 %v1469, 0.0
        %v1632 = vpack.c.bf16 %v1473, %v1472
        %v1633 = vpack.c.bf16 %v1475, %v1474
        %v1634 = vpack.c.bf16 %v1477, %v1476
        %v1635 = vpack.c.bf16 %v1479, %v1478
        %v1636 = vpack.c.bf16 %v1481, %v1480
        %v1637 = vpack.c.bf16 %v1483, %v1482
        %v1638 = vpack.c.bf16 %v1485, %v1484
        %v1639 = vpack.c.bf16 %v1487, %v1486
        %v1640 = vpack.c.bf16 %v1489, %v1488
        %v1641 = vpack.c.bf16 %v1491, %v1490
        %v1642 = vpack.c.bf16 %v1493, %v1492
        %v1643 = vpack.c.bf16 %v1495, %v1494
        %v1644 = vpack.c.bf16 %v1497, %v1496
        %v1645 = vpack.c.bf16 %v1499, %v1498
        %v1646 = vpack.c.bf16 %v1501, %v1500
        %v1647 = vpack.c.bf16 %v1503, %v1502
        %v1648 = vpack.c.bf16 %v1505, %v1504
        %v1649 = vpack.c.bf16 %v1507, %v1506
        %v1650 = vpack.c.bf16 %v1509, %v1508
        %v1651 = vpack.c.bf16 %v1511, %v1510
        %v1652 = vpack.c.bf16 %v1513, %v1512
        %v1653 = vpack.c.bf16 %v1515, %v1514
        %v1654 = vpack.c.bf16 %v1517, %v1516
        %v1655 = vpack.c.bf16 %v1519, %v1518
        %v1656 = vpack.c.bf16 %v1521, %v1520
        %v1657 = vpack.c.bf16 %v1523, %v1522
        %v1658 = vpack.c.bf16 %v1525, %v1524
        %v1659 = vpack.c.bf16 %v1527, %v1526
        %v1660 = vpack.c.bf16 %v1529, %v1528
        %v1661 = vpack.c.bf16 %v1531, %v1530
        %v1662 = vpack.c.bf16 %v1533, %v1532
        %v1663 = vpack.c.bf16 %v1535, %v1534
        %v1664 = vpack.c.bf16 %v1537, %v1536
        %v1665 = vpack.c.bf16 %v1539, %v1538
        %v1666 = vpack.c.bf16 %v1541, %v1540
        %v1667 = vpack.c.bf16 %v1543, %v1542
        %v1668 = vpack.c.bf16 %v1545, %v1544
        %v1669 = vpack.c.bf16 %v1547, %v1546
        %v1670 = vpack.c.bf16 %v1549, %v1548
        %v1671 = vpack.c.bf16 %v1551, %v1550
        %v1672 = vpack.c.bf16 %v1553, %v1552
        %v1673 = vpack.c.bf16 %v1555, %v1554
        %v1674 = vpack.c.bf16 %v1557, %v1556
        %v1675 = vpack.c.bf16 %v1559, %v1558
        %v1676 = vpack.c.bf16 %v1561, %v1560
        %v1677 = vpack.c.bf16 %v1563, %v1562
        %v1678 = vpack.c.bf16 %v1565, %v1564
        %v1679 = vpack.c.bf16 %v1567, %v1566
        %v1680 = vpack.c.bf16 %v1569, %v1568
        %v1681 = vpack.c.bf16 %v1571, %v1570
        %v1682 = vpack.c.bf16 %v1573, %v1572
        %v1683 = vpack.c.bf16 %v1575, %v1574
        %v1684 = vpack.c.bf16 %v1577, %v1576
        %v1685 = vpack.c.bf16 %v1579, %v1578
        %v1686 = vpack.c.bf16 %v1581, %v1580
        %v1687 = vpack.c.bf16 %v1583, %v1582
        %v1688 = vpack.c.bf16 %v1585, %v1584
        %v1689 = vpack.c.bf16 %v1587, %v1586
        %v1690 = vpack.c.bf16 %v1589, %v1588
        %v1691 = vpack.c.bf16 %v1591, %v1590
        %v1692 = vpack.c.bf16 %v1593, %v1592
        %v1693 = vpack.c.bf16 %v1595, %v1594
        %v1694 = vpack.c.bf16 %v1597, %v1596
        %v1695 = vpack.c.bf16 %v1599, %v1598
        %v1696 = vpack.c.bf16 %v1601, %v1600
        %v1697 = vpack.c.bf16 %v1603, %v1602
        %v1698 = vpack.c.bf16 %v1605, %v1604
        %v1699 = vpack.c.bf16 %v1607, %v1606
        %v1700 = vpack.c.bf16 %v1609, %v1608
        %v1701 = vpack.c.bf16 %v1611, %v1610
        %v1702 = vpack.c.bf16 %v1613, %v1612
        %v1703 = vpack.c.bf16 %v1615, %v1614
        %v1704 = vpack.c.bf16 %v1617, %v1616
        %v1705 = vpack.c.bf16 %v1619, %v1618
        %v1706 = vpack.c.bf16 %v1621, %v1620
        %v1707 = vpack.c.bf16 %v1623, %v1622
        %v1708 = vpack.c.bf16 %v1625, %v1624
        %v1709 = vpack.c.bf16 %v1627, %v1626
        %v1710 = vpack.c.bf16 %v1629, %v1628
        %v1711 = vpack.c.bf16 %v1631, %v1630
        %v1712 = vld [vmem:[%s3] sm:$0xf]
        %v1713 = vld [vmem:[%s3 + $0x4] sm:$0xf]
        %v1714 = vld [vmem:[%s3 + $0x8] sm:$0xf]
        %v1715 = vld [vmem:[%s3 + $0xc] sm:$0xf]
        %v1716 = vld [vmem:[%s3 + $0x10] sm:$0xf]
        %v1717 = vld [vmem:[%s3 + $0x14] sm:$0xf]
        %v1718 = vld [vmem:[%s3 + $0x18] sm:$0xf]
        %v1719 = vld [vmem:[%s3 + $0x1c] sm:$0xf]
        %v1720 = vld [vmem:[%s4] sm:$0x1]
        %v1722 = vlaneseq
        %v1723 = vshrl.u32 %v1722, 7
        %v1724 = vsub.s32 0, %v1723
        %v1725 = vrot.slane %v1720, %v1724
        %v1735 = vunpack.c.l.b16 %v1712
        %v1736 = vunpack.c.l.b16 %v1713
        %v1737 = vunpack.c.l.b16 %v1714
        %v1738 = vunpack.c.l.b16 %v1715
        %v1739 = vunpack.c.l.b16 %v1716
        %v1740 = vunpack.c.l.b16 %v1717
        %v1741 = vunpack.c.l.b16 %v1718
        %v1742 = vunpack.c.l.b16 %v1719
        %v1743 = vpack.c.b16 %v1736, %v1735
        %v1744 = vpack.c.b16 %v1738, %v1737
        %v1745 = vpack.c.b16 %v1740, %v1739
        %v1746 = vpack.c.b16 %v1742, %v1741
        %vm1751 = vcmask 523264
        %v1753 = vsel %vm1751, %v1632, 0
        %v1756 = vsel %vm1751, %v1633, 0
        %v1759 = vsel %vm1751, %v1634, 0
        %v1762 = vsel %vm1751, %v1635, 0
        %v1765 = vsel %vm1751, %v1636, 0
        %v1768 = vsel %vm1751, %v1637, 0
        %v1771 = vsel %vm1751, %v1638, 0
        %v1774 = vsel %vm1751, %v1639, 0
        %v1777 = vsel %vm1751, %v1640, 0
        %v1780 = vsel %vm1751, %v1641, 0
        %v1783 = vsel %vm1751, %v1642, 0
        %v1786 = vsel %vm1751, %v1643, 0
        %v1789 = vsel %vm1751, %v1644, 0
        %v1792 = vsel %vm1751, %v1645, 0
        %v1795 = vsel %vm1751, %v1646, 0
        %v1798 = vsel %vm1751, %v1647, 0
        %v1801 = vsel %vm1751, %v1648, 0
        %v1804 = vsel %vm1751, %v1649, 0
        %v1807 = vsel %vm1751, %v1650, 0
        %v1810 = vsel %vm1751, %v1651, 0
        %v1813 = vsel %vm1751, %v1652, 0
        %v1816 = vsel %vm1751, %v1653, 0
        %v1819 = vsel %vm1751, %v1654, 0
        %v1822 = vsel %vm1751, %v1655, 0
        %v1825 = vsel %vm1751, %v1656, 0
        %v1828 = vsel %vm1751, %v1657, 0
        %v1831 = vsel %vm1751, %v1658, 0
        %v1834 = vsel %vm1751, %v1659, 0
        %v1837 = vsel %vm1751, %v1660, 0
        %v1840 = vsel %vm1751, %v1661, 0
        %v1843 = vsel %vm1751, %v1662, 0
        %v1846 = vsel %vm1751, %v1663, 0
        %v1849 = vsel %vm1751, %v1664, 0
        %v1852 = vsel %vm1751, %v1665, 0
        %v1855 = vsel %vm1751, %v1666, 0
        %v1858 = vsel %vm1751, %v1667, 0
        %v1861 = vsel %vm1751, %v1668, 0
        %v1864 = vsel %vm1751, %v1669, 0
        %v1867 = vsel %vm1751, %v1670, 0
        %v1870 = vsel %vm1751, %v1671, 0
        %v1873 = vsel %vm1751, %v1672, 0
        %v1876 = vsel %vm1751, %v1673, 0
        %v1879 = vsel %vm1751, %v1674, 0
        %v1882 = vsel %vm1751, %v1675, 0
        %v1885 = vsel %vm1751, %v1676, 0
        %v1888 = vsel %vm1751, %v1677, 0
        %v1891 = vsel %vm1751, %v1678, 0
        %v1894 = vsel %vm1751, %v1679, 0
        %v1897 = vsel %vm1751, %v1680, 0
        %v1900 = vsel %vm1751, %v1681, 0
        %v1903 = vsel %vm1751, %v1682, 0
        %v1906 = vsel %vm1751, %v1683, 0
        %v1909 = vsel %vm1751, %v1684, 0
        %v1912 = vsel %vm1751, %v1685, 0
        %v1915 = vsel %vm1751, %v1686, 0
        %v1918 = vsel %vm1751, %v1687, 0
        %v1921 = vsel %vm1751, %v1688, 0
        %v1924 = vsel %vm1751, %v1689, 0
        %v1927 = vsel %vm1751, %v1690, 0
        %v1930 = vsel %vm1751, %v1691, 0
        %v1933 = vsel %vm1751, %v1692, 0
        %v1936 = vsel %vm1751, %v1693, 0
        %v1939 = vsel %vm1751, %v1694, 0
        %v1942 = vsel %vm1751, %v1695, 0
        %v1945 = vsel %vm1751, %v1696, 0
        %v1948 = vsel %vm1751, %v1697, 0
        %v1951 = vsel %vm1751, %v1698, 0
        %v1954 = vsel %vm1751, %v1699, 0
        %v1957 = vsel %vm1751, %v1700, 0
        %v1960 = vsel %vm1751, %v1701, 0
        %v1963 = vsel %vm1751, %v1702, 0
        %v1966 = vsel %vm1751, %v1703, 0
        %v1969 = vsel %vm1751, %v1704, 0
        %v1972 = vsel %vm1751, %v1705, 0
        %v1975 = vsel %vm1751, %v1706, 0
        %v1978 = vsel %vm1751, %v1707, 0
        %v1981 = vsel %vm1751, %v1708, 0
        %v1984 = vsel %vm1751, %v1709, 0
        %v1987 = vsel %vm1751, %v1710, 0
        %v1990 = vsel %vm1751, %v1711, 0
        %1992 = vmatprep.subr.bf16.mxu0 0
        %1993 = vmatpush1.bf16.msra.mxu0 0
        %1994 = vmatprep.subr.bf16.mxu0 0
        %1995 = vmatpush1.bf16.msra.mxu0 0
        %1996 = vmatprep.subr.bf16.mxu0 0
        %1997 = vmatpush1.bf16.msra.mxu0 0
        %1998 = vmatprep.subr.bf16.mxu0 0
        %1999 = vmatpush1.bf16.msra.mxu0 0
        %2000 = vmatprep.subr.bf16.mxu0 0
        %2001 = vmatpush1.bf16.msra.mxu0 %v1746
        %2002 = vmatprep.subr.bf16.mxu0 0
        %2003 = vmatpush1.bf16.msra.mxu0 %v1745
        %2004 = vmatprep.subr.bf16.mxu0 0
        %2005 = vmatpush1.bf16.msra.mxu0 %v1744
        %2006 = vmatprep.subr.bf16.mxu0 0
        %2007 = vmatpush1.bf16.msra.mxu0 %v1743
        %2008 = vmatprep.subr.bf16.mxu0 0
        %2009 = vmatpush2.bf16.msra.mxu0 0
        %2010 = vmatprep.subr.bf16.mxu0 0
        %2011 = vmatpush2.bf16.msra.mxu0 0
        %2012 = vmatprep.subr.bf16.mxu0 0
        %2013 = vmatpush2.bf16.msra.mxu0 0
        %2014 = vmatprep.subr.bf16.mxu0 0
        %2015 = vmatpush2.bf16.msra.mxu0 0
        %2016 = vmatprep.subr.bf16.mxu0 0
        %2017 = vmatpush2.bf16.msra.mxu0 0
        %2018 = vmatprep.subr.bf16.mxu0 0
        %2019 = vmatpush2.bf16.msra.mxu0 0
        %2020 = vmatprep.subr.bf16.mxu0 0
        %2021 = vmatpush2.bf16.msra.mxu0 0
        %2022 = vmatprep.subr.bf16.mxu0 0
        %2023 = vmatpush2.bf16.msra.mxu0 0
        %2024 = vmatprep.mubr.bf16.mxu0 0
        %2025 = vmatmul.mubr.bf16.gmra.mxu0 %v1753
        %v2026 = vpop.f32.mrf.mxu0
        %v2027 = vadd.f32 %v1725, %v2026
        %v2028 = vpop.f32.mrf.mxu0
        %v2029 = vpop.f32.mrf.mxu0
        %v2030 = vadd.f32 %v1725, %v2029
        %v2031 = vpop.f32.mrf.mxu0
        %2032 = vmatprep.mubr.bf16.mxu0 0
        %2033 = vmatmul.mubr.bf16.gmra.mxu0 %v1756
        %v2034 = vpop.f32.mrf.mxu0
        %v2035 = vadd.f32 %v1725, %v2034
        %v2036 = vpop.f32.mrf.mxu0
        %v2037 = vpop.f32.mrf.mxu0
        %v2038 = vadd.f32 %v1725, %v2037
        %v2039 = vpop.f32.mrf.mxu0
        %2040 = vmatprep.mubr.bf16.mxu0 0
        %2041 = vmatmul.mubr.bf16.gmra.mxu0 %v1759
        %v2042 = vpop.f32.mrf.mxu0
        %v2043 = vadd.f32 %v1725, %v2042
        %v2044 = vpop.f32.mrf.mxu0
        %v2045 = vpop.f32.mrf.mxu0
        %v2046 = vadd.f32 %v1725, %v2045
        %v2047 = vpop.f32.mrf.mxu0
        %2048 = vmatprep.mubr.bf16.mxu0 0
        %2049 = vmatmul.mubr.bf16.gmra.mxu0 %v1762
        %v2050 = vpop.f32.mrf.mxu0
        %v2051 = vadd.f32 %v1725, %v2050
        %v2052 = vpop.f32.mrf.mxu0
        %v2053 = vpop.f32.mrf.mxu0
        %v2054 = vadd.f32 %v1725, %v2053
        %v2055 = vpop.f32.mrf.mxu0
        %2056 = vmatprep.mubr.bf16.mxu0 0
        %2057 = vmatmul.mubr.bf16.gmra.mxu0 %v1765
        %v2058 = vpop.f32.mrf.mxu0
        %v2059 = vadd.f32 %v1725, %v2058
        %v2060 = vpop.f32.mrf.mxu0
        %v2061 = vpop.f32.mrf.mxu0
        %v2062 = vadd.f32 %v1725, %v2061
        %v2063 = vpop.f32.mrf.mxu0
        %2064 = vmatprep.mubr.bf16.mxu0 0
        %2065 = vmatmul.mubr.bf16.gmra.mxu0 %v1768
        %v2066 = vpop.f32.mrf.mxu0
        %v2067 = vadd.f32 %v1725, %v2066
        %v2068 = vpop.f32.mrf.mxu0
        %v2069 = vpop.f32.mrf.mxu0
        %v2070 = vadd.f32 %v1725, %v2069
        %v2071 = vpop.f32.mrf.mxu0
        %2072 = vmatprep.mubr.bf16.mxu0 0
        %2073 = vmatmul.mubr.bf16.gmra.mxu0 %v1771
        %v2074 = vpop.f32.mrf.mxu0
        %v2075 = vadd.f32 %v1725, %v2074
        %v2076 = vpop.f32.mrf.mxu0
        %v2077 = vpop.f32.mrf.mxu0
        %v2078 = vadd.f32 %v1725, %v2077
        %v2079 = vpop.f32.mrf.mxu0
        %2080 = vmatprep.mubr.bf16.mxu0 0
        %2081 = vmatmul.mubr.bf16.gmra.mxu0 %v1774
        %v2082 = vpop.f32.mrf.mxu0
        %v2083 = vadd.f32 %v1725, %v2082
        %v2084 = vpop.f32.mrf.mxu0
        %v2085 = vpop.f32.mrf.mxu0
        %v2086 = vadd.f32 %v1725, %v2085
        %v2087 = vpop.f32.mrf.mxu0
        %2088 = vmatprep.mubr.bf16.mxu0 0
        %2089 = vmatmul.mubr.bf16.gmra.mxu0 %v1777
        %v2090 = vpop.f32.mrf.mxu0
        %v2091 = vadd.f32 %v1725, %v2090
        %v2092 = vpop.f32.mrf.mxu0
        %v2093 = vpop.f32.mrf.mxu0
        %v2094 = vadd.f32 %v1725, %v2093
        %v2095 = vpop.f32.mrf.mxu0
        %2096 = vmatprep.mubr.bf16.mxu0 0
        %2097 = vmatmul.mubr.bf16.gmra.mxu0 %v1780
        %v2098 = vpop.f32.mrf.mxu0
        %v2099 = vadd.f32 %v1725, %v2098
        %v2100 = vpop.f32.mrf.mxu0
        %v2101 = vpop.f32.mrf.mxu0
        %v2102 = vadd.f32 %v1725, %v2101
        %v2103 = vpop.f32.mrf.mxu0
        %2104 = vmatprep.mubr.bf16.mxu0 0
        %2105 = vmatmul.mubr.bf16.gmra.mxu0 %v1783
        %v2106 = vpop.f32.mrf.mxu0
        %v2107 = vadd.f32 %v1725, %v2106
        %v2108 = vpop.f32.mrf.mxu0
        %v2109 = vpop.f32.mrf.mxu0
        %v2110 = vadd.f32 %v1725, %v2109
        %v2111 = vpop.f32.mrf.mxu0
        %2112 = vmatprep.mubr.bf16.mxu0 0
        %2113 = vmatmul.mubr.bf16.gmra.mxu0 %v1786
        %v2114 = vpop.f32.mrf.mxu0
        %v2115 = vadd.f32 %v1725, %v2114
        %v2116 = vpop.f32.mrf.mxu0
        %v2117 = vpop.f32.mrf.mxu0
        %v2118 = vadd.f32 %v1725, %v2117
        %v2119 = vpop.f32.mrf.mxu0
        %2120 = vmatprep.mubr.bf16.mxu0 0
        %2121 = vmatmul.mubr.bf16.gmra.mxu0 %v1789
        %v2122 = vpop.f32.mrf.mxu0
        %v2123 = vadd.f32 %v1725, %v2122
        %v2124 = vpop.f32.mrf.mxu0
        %v2125 = vpop.f32.mrf.mxu0
        %v2126 = vadd.f32 %v1725, %v2125
        %v2127 = vpop.f32.mrf.mxu0
        %2128 = vmatprep.mubr.bf16.mxu0 0
        %2129 = vmatmul.mubr.bf16.gmra.mxu0 %v1792
        %v2130 = vpop.f32.mrf.mxu0
        %v2131 = vadd.f32 %v1725, %v2130
        %v2132 = vpop.f32.mrf.mxu0
        %v2133 = vpop.f32.mrf.mxu0
        %v2134 = vadd.f32 %v1725, %v2133
        %v2135 = vpop.f32.mrf.mxu0
        %2136 = vmatprep.mubr.bf16.mxu0 0
        %2137 = vmatmul.mubr.bf16.gmra.mxu0 %v1795
        %v2138 = vpop.f32.mrf.mxu0
        %v2139 = vadd.f32 %v1725, %v2138
        %v2140 = vpop.f32.mrf.mxu0
        %v2141 = vpop.f32.mrf.mxu0
        %v2142 = vadd.f32 %v1725, %v2141
        %v2143 = vpop.f32.mrf.mxu0
        %2144 = vmatprep.mubr.bf16.mxu0 0
        %2145 = vmatmul.mubr.bf16.gmra.mxu0 %v1798
        %v2146 = vpop.f32.mrf.mxu0
        %v2147 = vadd.f32 %v1725, %v2146
        %v2148 = vpop.f32.mrf.mxu0
        %v2149 = vpop.f32.mrf.mxu0
        %v2150 = vadd.f32 %v1725, %v2149
        %v2151 = vpop.f32.mrf.mxu0
        %2152 = vmatprep.mubr.bf16.mxu0 0
        %2153 = vmatmul.mubr.bf16.gmra.mxu0 %v1801
        %v2154 = vpop.f32.mrf.mxu0
        %v2155 = vadd.f32 %v1725, %v2154
        %v2156 = vpop.f32.mrf.mxu0
        %v2157 = vpop.f32.mrf.mxu0
        %v2158 = vadd.f32 %v1725, %v2157
        %v2159 = vpop.f32.mrf.mxu0
        %2160 = vmatprep.mubr.bf16.mxu0 0
        %2161 = vmatmul.mubr.bf16.gmra.mxu0 %v1804
        %v2162 = vpop.f32.mrf.mxu0
        %v2163 = vadd.f32 %v1725, %v2162
        %v2164 = vpop.f32.mrf.mxu0
        %v2165 = vpop.f32.mrf.mxu0
        %v2166 = vadd.f32 %v1725, %v2165
        %v2167 = vpop.f32.mrf.mxu0
        %2168 = vmatprep.mubr.bf16.mxu0 0
        %2169 = vmatmul.mubr.bf16.gmra.mxu0 %v1807
        %v2170 = vpop.f32.mrf.mxu0
        %v2171 = vadd.f32 %v1725, %v2170
        %v2172 = vpop.f32.mrf.mxu0
        %v2173 = vpop.f32.mrf.mxu0
        %v2174 = vadd.f32 %v1725, %v2173
        %v2175 = vpop.f32.mrf.mxu0
        %2176 = vmatprep.mubr.bf16.mxu0 0
        %2177 = vmatmul.mubr.bf16.gmra.mxu0 %v1810
        %v2178 = vpop.f32.mrf.mxu0
        %v2179 = vadd.f32 %v1725, %v2178
        %v2180 = vpop.f32.mrf.mxu0
        %v2181 = vpop.f32.mrf.mxu0
        %v2182 = vadd.f32 %v1725, %v2181
        %v2183 = vpop.f32.mrf.mxu0
        %2184 = vmatprep.mubr.bf16.mxu0 0
        %2185 = vmatmul.mubr.bf16.gmra.mxu0 %v1813
        %v2186 = vpop.f32.mrf.mxu0
        %v2187 = vadd.f32 %v1725, %v2186
        %v2188 = vpop.f32.mrf.mxu0
        %v2189 = vpop.f32.mrf.mxu0
        %v2190 = vadd.f32 %v1725, %v2189
        %v2191 = vpop.f32.mrf.mxu0
        %2192 = vmatprep.mubr.bf16.mxu0 0
        %2193 = vmatmul.mubr.bf16.gmra.mxu0 %v1816
        %v2194 = vpop.f32.mrf.mxu0
        %v2195 = vadd.f32 %v1725, %v2194
        %v2196 = vpop.f32.mrf.mxu0
        %v2197 = vpop.f32.mrf.mxu0
        %v2198 = vadd.f32 %v1725, %v2197
        %v2199 = vpop.f32.mrf.mxu0
        %2200 = vmatprep.mubr.bf16.mxu0 0
        %2201 = vmatmul.mubr.bf16.gmra.mxu0 %v1819
        %v2202 = vpop.f32.mrf.mxu0
        %v2203 = vadd.f32 %v1725, %v2202
        %v2204 = vpop.f32.mrf.mxu0
        %v2205 = vpop.f32.mrf.mxu0
        %v2206 = vadd.f32 %v1725, %v2205
        %v2207 = vpop.f32.mrf.mxu0
        %2208 = vmatprep.mubr.bf16.mxu0 0
        %2209 = vmatmul.mubr.bf16.gmra.mxu0 %v1822
        %v2210 = vpop.f32.mrf.mxu0
        %v2211 = vadd.f32 %v1725, %v2210
        %v2212 = vpop.f32.mrf.mxu0
        %v2213 = vpop.f32.mrf.mxu0
        %v2214 = vadd.f32 %v1725, %v2213
        %v2215 = vpop.f32.mrf.mxu0
        %2216 = vmatprep.mubr.bf16.mxu0 0
        %2217 = vmatmul.mubr.bf16.gmra.mxu0 %v1825
        %v2218 = vpop.f32.mrf.mxu0
        %v2219 = vadd.f32 %v1725, %v2218
        %v2220 = vpop.f32.mrf.mxu0
        %v2221 = vpop.f32.mrf.mxu0
        %v2222 = vadd.f32 %v1725, %v2221
        %v2223 = vpop.f32.mrf.mxu0
        %2224 = vmatprep.mubr.bf16.mxu0 0
        %2225 = vmatmul.mubr.bf16.gmra.mxu0 %v1828
        %v2226 = vpop.f32.mrf.mxu0
        %v2227 = vadd.f32 %v1725, %v2226
        %v2228 = vpop.f32.mrf.mxu0
        %v2229 = vpop.f32.mrf.mxu0
        %v2230 = vadd.f32 %v1725, %v2229
        %v2231 = vpop.f32.mrf.mxu0
        %2232 = vmatprep.mubr.bf16.mxu0 0
        %2233 = vmatmul.mubr.bf16.gmra.mxu0 %v1831
        %v2234 = vpop.f32.mrf.mxu0
        %v2235 = vadd.f32 %v1725, %v2234
        %v2236 = vpop.f32.mrf.mxu0
        %v2237 = vpop.f32.mrf.mxu0
        %v2238 = vadd.f32 %v1725, %v2237
        %v2239 = vpop.f32.mrf.mxu0
        %2240 = vmatprep.mubr.bf16.mxu0 0
        %2241 = vmatmul.mubr.bf16.gmra.mxu0 %v1834
        %v2242 = vpop.f32.mrf.mxu0
        %v2243 = vadd.f32 %v1725, %v2242
        %v2244 = vpop.f32.mrf.mxu0
        %v2245 = vpop.f32.mrf.mxu0
        %v2246 = vadd.f32 %v1725, %v2245
        %v2247 = vpop.f32.mrf.mxu0
        %2248 = vmatprep.mubr.bf16.mxu0 0
        %2249 = vmatmul.mubr.bf16.gmra.mxu0 %v1837
        %v2250 = vpop.f32.mrf.mxu0
        %v2251 = vadd.f32 %v1725, %v2250
        %v2252 = vpop.f32.mrf.mxu0
        %v2253 = vpop.f32.mrf.mxu0
        %v2254 = vadd.f32 %v1725, %v2253
        %v2255 = vpop.f32.mrf.mxu0
        %2256 = vmatprep.mubr.bf16.mxu0 0
        %2257 = vmatmul.mubr.bf16.gmra.mxu0 %v1840
        %v2258 = vpop.f32.mrf.mxu0
        %v2259 = vadd.f32 %v1725, %v2258
        %v2260 = vpop.f32.mrf.mxu0
        %v2261 = vpop.f32.mrf.mxu0
        %v2262 = vadd.f32 %v1725, %v2261
        %v2263 = vpop.f32.mrf.mxu0
        %2264 = vmatprep.mubr.bf16.mxu0 0
        %2265 = vmatmul.mubr.bf16.gmra.mxu0 %v1843
        %v2266 = vpop.f32.mrf.mxu0
        %v2267 = vadd.f32 %v1725, %v2266
        %v2268 = vpop.f32.mrf.mxu0
        %v2269 = vpop.f32.mrf.mxu0
        %v2270 = vadd.f32 %v1725, %v2269
        %v2271 = vpop.f32.mrf.mxu0
        %2272 = vmatprep.mubr.bf16.mxu0 0
        %2273 = vmatmul.mubr.bf16.gmra.mxu0 %v1846
        %v2274 = vpop.f32.mrf.mxu0
        %v2275 = vadd.f32 %v1725, %v2274
        %v2276 = vpop.f32.mrf.mxu0
        %v2277 = vpop.f32.mrf.mxu0
        %v2278 = vadd.f32 %v1725, %v2277
        %v2279 = vpop.f32.mrf.mxu0
        %2280 = vmatprep.mubr.bf16.mxu0 0
        %2281 = vmatmul.mubr.bf16.gmra.mxu0 %v1849
        %v2282 = vpop.f32.mrf.mxu0
        %v2283 = vadd.f32 %v1725, %v2282
        %v2284 = vpop.f32.mrf.mxu0
        %v2285 = vpop.f32.mrf.mxu0
        %v2286 = vadd.f32 %v1725, %v2285
        %v2287 = vpop.f32.mrf.mxu0
        %2288 = vmatprep.mubr.bf16.mxu0 0
        %2289 = vmatmul.mubr.bf16.gmra.mxu0 %v1852
        %v2290 = vpop.f32.mrf.mxu0
        %v2291 = vadd.f32 %v1725, %v2290
        %v2292 = vpop.f32.mrf.mxu0
        %v2293 = vpop.f32.mrf.mxu0
        %v2294 = vadd.f32 %v1725, %v2293
        %v2295 = vpop.f32.mrf.mxu0
        %2296 = vmatprep.mubr.bf16.mxu0 0
        %2297 = vmatmul.mubr.bf16.gmra.mxu0 %v1855
        %v2298 = vpop.f32.mrf.mxu0
        %v2299 = vadd.f32 %v1725, %v2298
        %v2300 = vpop.f32.mrf.mxu0
        %v2301 = vpop.f32.mrf.mxu0
        %v2302 = vadd.f32 %v1725, %v2301
        %v2303 = vpop.f32.mrf.mxu0
        %2304 = vmatprep.mubr.bf16.mxu0 0
        %2305 = vmatmul.mubr.bf16.gmra.mxu0 %v1858
        %v2306 = vpop.f32.mrf.mxu0
        %v2307 = vadd.f32 %v1725, %v2306
        %v2308 = vpop.f32.mrf.mxu0
        %v2309 = vpop.f32.mrf.mxu0
        %v2310 = vadd.f32 %v1725, %v2309
        %v2311 = vpop.f32.mrf.mxu0
        %2312 = vmatprep.mubr.bf16.mxu0 0
        %2313 = vmatmul.mubr.bf16.gmra.mxu0 %v1861
        %v2314 = vpop.f32.mrf.mxu0
        %v2315 = vadd.f32 %v1725, %v2314
        %v2316 = vpop.f32.mrf.mxu0
        %v2317 = vpop.f32.mrf.mxu0
        %v2318 = vadd.f32 %v1725, %v2317
        %v2319 = vpop.f32.mrf.mxu0
        %2320 = vmatprep.mubr.bf16.mxu0 0
        %2321 = vmatmul.mubr.bf16.gmra.mxu0 %v1864
        %v2322 = vpop.f32.mrf.mxu0
        %v2323 = vadd.f32 %v1725, %v2322
        %v2324 = vpop.f32.mrf.mxu0
        %v2325 = vpop.f32.mrf.mxu0
        %v2326 = vadd.f32 %v1725, %v2325
        %v2327 = vpop.f32.mrf.mxu0
        %2328 = vmatprep.mubr.bf16.mxu0 0
        %2329 = vmatmul.mubr.bf16.gmra.mxu0 %v1867
        %v2330 = vpop.f32.mrf.mxu0
        %v2331 = vadd.f32 %v1725, %v2330
        %v2332 = vpop.f32.mrf.mxu0
        %v2333 = vpop.f32.mrf.mxu0
        %v2334 = vadd.f32 %v1725, %v2333
        %v2335 = vpop.f32.mrf.mxu0
        %2336 = vmatprep.mubr.bf16.mxu0 0
        %2337 = vmatmul.mubr.bf16.gmra.mxu0 %v1870
        %v2338 = vpop.f32.mrf.mxu0
        %v2339 = vadd.f32 %v1725, %v2338
        %v2340 = vpop.f32.mrf.mxu0
        %v2341 = vpop.f32.mrf.mxu0
        %v2342 = vadd.f32 %v1725, %v2341
        %v2343 = vpop.f32.mrf.mxu0
        %2344 = vmatprep.mubr.bf16.mxu0 0
        %2345 = vmatmul.mubr.bf16.gmra.mxu0 %v1873
        %v2346 = vpop.f32.mrf.mxu0
        %v2347 = vadd.f32 %v1725, %v2346
        %v2348 = vpop.f32.mrf.mxu0
        %v2349 = vpop.f32.mrf.mxu0
        %v2350 = vadd.f32 %v1725, %v2349
        %v2351 = vpop.f32.mrf.mxu0
        %2352 = vmatprep.mubr.bf16.mxu0 0
        %2353 = vmatmul.mubr.bf16.gmra.mxu0 %v1876
        %v2354 = vpop.f32.mrf.mxu0
        %v2355 = vadd.f32 %v1725, %v2354
        %v2356 = vpop.f32.mrf.mxu0
        %v2357 = vpop.f32.mrf.mxu0
        %v2358 = vadd.f32 %v1725, %v2357
        %v2359 = vpop.f32.mrf.mxu0
        %2360 = vmatprep.mubr.bf16.mxu0 0
        %2361 = vmatmul.mubr.bf16.gmra.mxu0 %v1879
        %v2362 = vpop.f32.mrf.mxu0
        %v2363 = vadd.f32 %v1725, %v2362
        %v2364 = vpop.f32.mrf.mxu0
        %v2365 = vpop.f32.mrf.mxu0
        %v2366 = vadd.f32 %v1725, %v2365
        %v2367 = vpop.f32.mrf.mxu0
        %2368 = vmatprep.mubr.bf16.mxu0 0
        %2369 = vmatmul.mubr.bf16.gmra.mxu0 %v1882
        %v2370 = vpop.f32.mrf.mxu0
        %v2371 = vadd.f32 %v1725, %v2370
        %v2372 = vpop.f32.mrf.mxu0
        %v2373 = vpop.f32.mrf.mxu0
        %v2374 = vadd.f32 %v1725, %v2373
        %v2375 = vpop.f32.mrf.mxu0
        %2376 = vmatprep.mubr.bf16.mxu0 0
        %2377 = vmatmul.mubr.bf16.gmra.mxu0 %v1885
        %v2378 = vpop.f32.mrf.mxu0
        %v2379 = vadd.f32 %v1725, %v2378
        %v2380 = vpop.f32.mrf.mxu0
        %v2381 = vpop.f32.mrf.mxu0
        %v2382 = vadd.f32 %v1725, %v2381
        %v2383 = vpop.f32.mrf.mxu0
        %2384 = vmatprep.mubr.bf16.mxu0 0
        %2385 = vmatmul.mubr.bf16.gmra.mxu0 %v1888
        %v2386 = vpop.f32.mrf.mxu0
        %v2387 = vadd.f32 %v1725, %v2386
        %v2388 = vpop.f32.mrf.mxu0
        %v2389 = vpop.f32.mrf.mxu0
        %v2390 = vadd.f32 %v1725, %v2389
        %v2391 = vpop.f32.mrf.mxu0
        %2392 = vmatprep.mubr.bf16.mxu0 0
        %2393 = vmatmul.mubr.bf16.gmra.mxu0 %v1891
        %v2394 = vpop.f32.mrf.mxu0
        %v2395 = vadd.f32 %v1725, %v2394
        %v2396 = vpop.f32.mrf.mxu0
        %v2397 = vpop.f32.mrf.mxu0
        %v2398 = vadd.f32 %v1725, %v2397
        %v2399 = vpop.f32.mrf.mxu0
        %2400 = vmatprep.mubr.bf16.mxu0 0
        %2401 = vmatmul.mubr.bf16.gmra.mxu0 %v1894
        %v2402 = vpop.f32.mrf.mxu0
        %v2403 = vadd.f32 %v1725, %v2402
        %v2404 = vpop.f32.mrf.mxu0
        %v2405 = vpop.f32.mrf.mxu0
        %v2406 = vadd.f32 %v1725, %v2405
        %v2407 = vpop.f32.mrf.mxu0
        %2408 = vmatprep.mubr.bf16.mxu0 0
        %2409 = vmatmul.mubr.bf16.gmra.mxu0 %v1897
        %v2410 = vpop.f32.mrf.mxu0
        %v2411 = vadd.f32 %v1725, %v2410
        %v2412 = vpop.f32.mrf.mxu0
        %v2413 = vpop.f32.mrf.mxu0
        %v2414 = vadd.f32 %v1725, %v2413
        %v2415 = vpop.f32.mrf.mxu0
        %2416 = vmatprep.mubr.bf16.mxu0 0
        %2417 = vmatmul.mubr.bf16.gmra.mxu0 %v1900
        %v2418 = vpop.f32.mrf.mxu0
        %v2419 = vadd.f32 %v1725, %v2418
        %v2420 = vpop.f32.mrf.mxu0
        %v2421 = vpop.f32.mrf.mxu0
        %v2422 = vadd.f32 %v1725, %v2421
        %v2423 = vpop.f32.mrf.mxu0
        %2424 = vmatprep.mubr.bf16.mxu0 0
        %2425 = vmatmul.mubr.bf16.gmra.mxu0 %v1903
        %v2426 = vpop.f32.mrf.mxu0
        %v2427 = vadd.f32 %v1725, %v2426
        %v2428 = vpop.f32.mrf.mxu0
        %v2429 = vpop.f32.mrf.mxu0
        %v2430 = vadd.f32 %v1725, %v2429
        %v2431 = vpop.f32.mrf.mxu0
        %2432 = vmatprep.mubr.bf16.mxu0 0
        %2433 = vmatmul.mubr.bf16.gmra.mxu0 %v1906
        %v2434 = vpop.f32.mrf.mxu0
        %v2435 = vadd.f32 %v1725, %v2434
        %v2436 = vpop.f32.mrf.mxu0
        %v2437 = vpop.f32.mrf.mxu0
        %v2438 = vadd.f32 %v1725, %v2437
        %v2439 = vpop.f32.mrf.mxu0
        %2440 = vmatprep.mubr.bf16.mxu0 0
        %2441 = vmatmul.mubr.bf16.gmra.mxu0 %v1909
        %v2442 = vpop.f32.mrf.mxu0
        %v2443 = vadd.f32 %v1725, %v2442
        %v2444 = vpop.f32.mrf.mxu0
        %v2445 = vpop.f32.mrf.mxu0
        %v2446 = vadd.f32 %v1725, %v2445
        %v2447 = vpop.f32.mrf.mxu0
        %2448 = vmatprep.mubr.bf16.mxu0 0
        %2449 = vmatmul.mubr.bf16.gmra.mxu0 %v1912
        %v2450 = vpop.f32.mrf.mxu0
        %v2451 = vadd.f32 %v1725, %v2450
        %v2452 = vpop.f32.mrf.mxu0
        %v2453 = vpop.f32.mrf.mxu0
        %v2454 = vadd.f32 %v1725, %v2453
        %v2455 = vpop.f32.mrf.mxu0
        %2456 = vmatprep.mubr.bf16.mxu0 0
        %2457 = vmatmul.mubr.bf16.gmra.mxu0 %v1915
        %v2458 = vpop.f32.mrf.mxu0
        %v2459 = vadd.f32 %v1725, %v2458
        %v2460 = vpop.f32.mrf.mxu0
        %v2461 = vpop.f32.mrf.mxu0
        %v2462 = vadd.f32 %v1725, %v2461
        %v2463 = vpop.f32.mrf.mxu0
        %2464 = vmatprep.mubr.bf16.mxu0 0
        %2465 = vmatmul.mubr.bf16.gmra.mxu0 %v1918
        %v2466 = vpop.f32.mrf.mxu0
        %v2467 = vadd.f32 %v1725, %v2466
        %v2468 = vpop.f32.mrf.mxu0
        %v2469 = vpop.f32.mrf.mxu0
        %v2470 = vadd.f32 %v1725, %v2469
        %v2471 = vpop.f32.mrf.mxu0
        %2472 = vmatprep.mubr.bf16.mxu0 0
        %2473 = vmatmul.mubr.bf16.gmra.mxu0 %v1921
        %v2474 = vpop.f32.mrf.mxu0
        %v2475 = vadd.f32 %v1725, %v2474
        %v2476 = vpop.f32.mrf.mxu0
        %v2477 = vpop.f32.mrf.mxu0
        %v2478 = vadd.f32 %v1725, %v2477
        %v2479 = vpop.f32.mrf.mxu0
        %2480 = vmatprep.mubr.bf16.mxu0 0
        %2481 = vmatmul.mubr.bf16.gmra.mxu0 %v1924
        %v2482 = vpop.f32.mrf.mxu0
        %v2483 = vadd.f32 %v1725, %v2482
        %v2484 = vpop.f32.mrf.mxu0
        %v2485 = vpop.f32.mrf.mxu0
        %v2486 = vadd.f32 %v1725, %v2485
        %v2487 = vpop.f32.mrf.mxu0
        %2488 = vmatprep.mubr.bf16.mxu0 0
        %2489 = vmatmul.mubr.bf16.gmra.mxu0 %v1927
        %v2490 = vpop.f32.mrf.mxu0
        %v2491 = vadd.f32 %v1725, %v2490
        %v2492 = vpop.f32.mrf.mxu0
        %v2493 = vpop.f32.mrf.mxu0
        %v2494 = vadd.f32 %v1725, %v2493
        %v2495 = vpop.f32.mrf.mxu0
        %2496 = vmatprep.mubr.bf16.mxu0 0
        %2497 = vmatmul.mubr.bf16.gmra.mxu0 %v1930
        %v2498 = vpop.f32.mrf.mxu0
        %v2499 = vadd.f32 %v1725, %v2498
        %v2500 = vpop.f32.mrf.mxu0
        %v2501 = vpop.f32.mrf.mxu0
        %v2502 = vadd.f32 %v1725, %v2501
        %v2503 = vpop.f32.mrf.mxu0
        %2504 = vmatprep.mubr.bf16.mxu0 0
        %2505 = vmatmul.mubr.bf16.gmra.mxu0 %v1933
        %v2506 = vpop.f32.mrf.mxu0
        %v2507 = vadd.f32 %v1725, %v2506
        %v2508 = vpop.f32.mrf.mxu0
        %v2509 = vpop.f32.mrf.mxu0
        %v2510 = vadd.f32 %v1725, %v2509
        %v2511 = vpop.f32.mrf.mxu0
        %2512 = vmatprep.mubr.bf16.mxu0 0
        %2513 = vmatmul.mubr.bf16.gmra.mxu0 %v1936
        %v2514 = vpop.f32.mrf.mxu0
        %v2515 = vadd.f32 %v1725, %v2514
        %v2516 = vpop.f32.mrf.mxu0
        %v2517 = vpop.f32.mrf.mxu0
        %v2518 = vadd.f32 %v1725, %v2517
        %v2519 = vpop.f32.mrf.mxu0
        %2520 = vmatprep.mubr.bf16.mxu0 0
        %2521 = vmatmul.mubr.bf16.gmra.mxu0 %v1939
        %v2522 = vpop.f32.mrf.mxu0
        %v2523 = vadd.f32 %v1725, %v2522
        %v2524 = vpop.f32.mrf.mxu0
        %v2525 = vpop.f32.mrf.mxu0
        %v2526 = vadd.f32 %v1725, %v2525
        %v2527 = vpop.f32.mrf.mxu0
        %2528 = vmatprep.mubr.bf16.mxu0 0
        %2529 = vmatmul.mubr.bf16.gmra.mxu0 %v1942
        %v2530 = vpop.f32.mrf.mxu0
        %v2531 = vadd.f32 %v1725, %v2530
        %v2532 = vpop.f32.mrf.mxu0
        %v2533 = vpop.f32.mrf.mxu0
        %v2534 = vadd.f32 %v1725, %v2533
        %v2535 = vpop.f32.mrf.mxu0
        %2536 = vmatprep.mubr.bf16.mxu0 0
        %2537 = vmatmul.mubr.bf16.gmra.mxu0 %v1945
        %v2538 = vpop.f32.mrf.mxu0
        %v2539 = vadd.f32 %v1725, %v2538
        %v2540 = vpop.f32.mrf.mxu0
        %v2541 = vpop.f32.mrf.mxu0
        %v2542 = vadd.f32 %v1725, %v2541
        %v2543 = vpop.f32.mrf.mxu0
        %2544 = vmatprep.mubr.bf16.mxu0 0
        %2545 = vmatmul.mubr.bf16.gmra.mxu0 %v1948
        %v2546 = vpop.f32.mrf.mxu0
        %v2547 = vadd.f32 %v1725, %v2546
        %v2548 = vpop.f32.mrf.mxu0
        %v2549 = vpop.f32.mrf.mxu0
        %v2550 = vadd.f32 %v1725, %v2549
        %v2551 = vpop.f32.mrf.mxu0
        %2552 = vmatprep.mubr.bf16.mxu0 0
        %2553 = vmatmul.mubr.bf16.gmra.mxu0 %v1951
        %v2554 = vpop.f32.mrf.mxu0
        %v2555 = vadd.f32 %v1725, %v2554
        %v2556 = vpop.f32.mrf.mxu0
        %v2557 = vpop.f32.mrf.mxu0
        %v2558 = vadd.f32 %v1725, %v2557
        %v2559 = vpop.f32.mrf.mxu0
        %2560 = vmatprep.mubr.bf16.mxu0 0
        %2561 = vmatmul.mubr.bf16.gmra.mxu0 %v1954
        %v2562 = vpop.f32.mrf.mxu0
        %v2563 = vadd.f32 %v1725, %v2562
        %v2564 = vpop.f32.mrf.mxu0
        %v2565 = vpop.f32.mrf.mxu0
        %v2566 = vadd.f32 %v1725, %v2565
        %v2567 = vpop.f32.mrf.mxu0
        %2568 = vmatprep.mubr.bf16.mxu0 0
        %2569 = vmatmul.mubr.bf16.gmra.mxu0 %v1957
        %v2570 = vpop.f32.mrf.mxu0
        %v2571 = vadd.f32 %v1725, %v2570
        %v2572 = vpop.f32.mrf.mxu0
        %v2573 = vpop.f32.mrf.mxu0
        %v2574 = vadd.f32 %v1725, %v2573
        %v2575 = vpop.f32.mrf.mxu0
        %2576 = vmatprep.mubr.bf16.mxu0 0
        %2577 = vmatmul.mubr.bf16.gmra.mxu0 %v1960
        %v2578 = vpop.f32.mrf.mxu0
        %v2579 = vadd.f32 %v1725, %v2578
        %v2580 = vpop.f32.mrf.mxu0
        %v2581 = vpop.f32.mrf.mxu0
        %v2582 = vadd.f32 %v1725, %v2581
        %v2583 = vpop.f32.mrf.mxu0
        %2584 = vmatprep.mubr.bf16.mxu0 0
        %2585 = vmatmul.mubr.bf16.gmra.mxu0 %v1963
        %v2586 = vpop.f32.mrf.mxu0
        %v2587 = vadd.f32 %v1725, %v2586
        %v2588 = vpop.f32.mrf.mxu0
        %v2589 = vpop.f32.mrf.mxu0
        %v2590 = vadd.f32 %v1725, %v2589
        %v2591 = vpop.f32.mrf.mxu0
        %2592 = vmatprep.mubr.bf16.mxu0 0
        %2593 = vmatmul.mubr.bf16.gmra.mxu0 %v1966
        %v2594 = vpop.f32.mrf.mxu0
        %v2595 = vadd.f32 %v1725, %v2594
        %v2596 = vpop.f32.mrf.mxu0
        %v2597 = vpop.f32.mrf.mxu0
        %v2598 = vadd.f32 %v1725, %v2597
        %v2599 = vpop.f32.mrf.mxu0
        %2600 = vmatprep.mubr.bf16.mxu0 0
        %2601 = vmatmul.mubr.bf16.gmra.mxu0 %v1969
        %v2602 = vpop.f32.mrf.mxu0
        %v2603 = vadd.f32 %v1725, %v2602
        %v2604 = vpop.f32.mrf.mxu0
        %v2605 = vpop.f32.mrf.mxu0
        %v2606 = vadd.f32 %v1725, %v2605
        %v2607 = vpop.f32.mrf.mxu0
        %2608 = vmatprep.mubr.bf16.mxu0 0
        %2609 = vmatmul.mubr.bf16.gmra.mxu0 %v1972
        %v2610 = vpop.f32.mrf.mxu0
        %v2611 = vadd.f32 %v1725, %v2610
        %v2612 = vpop.f32.mrf.mxu0
        %v2613 = vpop.f32.mrf.mxu0
        %v2614 = vadd.f32 %v1725, %v2613
        %v2615 = vpop.f32.mrf.mxu0
        %2616 = vmatprep.mubr.bf16.mxu0 0
        %2617 = vmatmul.mubr.bf16.gmra.mxu0 %v1975
        %v2618 = vpop.f32.mrf.mxu0
        %v2619 = vadd.f32 %v1725, %v2618
        %v2620 = vpop.f32.mrf.mxu0
        %v2621 = vpop.f32.mrf.mxu0
        %v2622 = vadd.f32 %v1725, %v2621
        %v2623 = vpop.f32.mrf.mxu0
        %2624 = vmatprep.mubr.bf16.mxu0 0
        %2625 = vmatmul.mubr.bf16.gmra.mxu0 %v1978
        %v2626 = vpop.f32.mrf.mxu0
        %v2627 = vadd.f32 %v1725, %v2626
        %v2628 = vpop.f32.mrf.mxu0
        %v2629 = vpop.f32.mrf.mxu0
        %v2630 = vadd.f32 %v1725, %v2629
        %v2631 = vpop.f32.mrf.mxu0
        %2632 = vmatprep.mubr.bf16.mxu0 0
        %2633 = vmatmul.mubr.bf16.gmra.mxu0 %v1981
        %v2634 = vpop.f32.mrf.mxu0
        %v2635 = vadd.f32 %v1725, %v2634
        %v2636 = vpop.f32.mrf.mxu0
        %v2637 = vpop.f32.mrf.mxu0
        %v2638 = vadd.f32 %v1725, %v2637
        %v2639 = vpop.f32.mrf.mxu0
        %2640 = vmatprep.mubr.bf16.mxu0 0
        %2641 = vmatmul.mubr.bf16.gmra.mxu0 %v1984
        %v2642 = vpop.f32.mrf.mxu0
        %v2643 = vadd.f32 %v1725, %v2642
        %v2644 = vpop.f32.mrf.mxu0
        %v2645 = vpop.f32.mrf.mxu0
        %v2646 = vadd.f32 %v1725, %v2645
        %v2647 = vpop.f32.mrf.mxu0
        %2648 = vmatprep.mubr.bf16.mxu0 0
        %2649 = vmatmul.mubr.bf16.gmra.mxu0 %v1987
        %v2650 = vpop.f32.mrf.mxu0
        %v2651 = vadd.f32 %v1725, %v2650
        %v2652 = vpop.f32.mrf.mxu0
        %v2653 = vpop.f32.mrf.mxu0
        %v2654 = vadd.f32 %v1725, %v2653
        %v2655 = vpop.f32.mrf.mxu0
        %2656 = vmatprep.mubr.bf16.mxu0 0
        %2657 = vmatmul.mubr.bf16.gmra.mxu0 %v1990
        %v2658 = vpop.f32.mrf.mxu0
        %v2659 = vadd.f32 %v1725, %v2658
        %v2660 = vpop.f32.mrf.mxu0
        %v2661 = vpop.f32.mrf.mxu0
        %v2662 = vadd.f32 %v1725, %v2661
        %v2663 = vpop.f32.mrf.mxu0
        %2664 = vdwg.mxu0
        %v2665 = vmax.f32 %v2027, 0.0
        %v2666 = vmax.f32 %v2030, 0.0
        %v2667 = vmax.f32 %v2035, 0.0
        %v2668 = vmax.f32 %v2038, 0.0
        %v2669 = vmax.f32 %v2043, 0.0
        %v2670 = vmax.f32 %v2046, 0.0
        %v2671 = vmax.f32 %v2051, 0.0
        %v2672 = vmax.f32 %v2054, 0.0
        %v2673 = vmax.f32 %v2059, 0.0
        %v2674 = vmax.f32 %v2062, 0.0
        %v2675 = vmax.f32 %v2067, 0.0
        %v2676 = vmax.f32 %v2070, 0.0
        %v2677 = vmax.f32 %v2075, 0.0
        %v2678 = vmax.f32 %v2078, 0.0
        %v2679 = vmax.f32 %v2083, 0.0
        %v2680 = vmax.f32 %v2086, 0.0
        %v2681 = vmax.f32 %v2091, 0.0
        %v2682 = vmax.f32 %v2094, 0.0
        %v2683 = vmax.f32 %v2099, 0.0
        %v2684 = vmax.f32 %v2102, 0.0
        %v2685 = vmax.f32 %v2107, 0.0
        %v2686 = vmax.f32 %v2110, 0.0
        %v2687 = vmax.f32 %v2115, 0.0
        %v2688 = vmax.f32 %v2118, 0.0
        %v2689 = vmax.f32 %v2123, 0.0
        %v2690 = vmax.f32 %v2126, 0.0
        %v2691 = vmax.f32 %v2131, 0.0
        %v2692 = vmax.f32 %v2134, 0.0
        %v2693 = vmax.f32 %v2139, 0.0
        %v2694 = vmax.f32 %v2142, 0.0
        %v2695 = vmax.f32 %v2147, 0.0
        %v2696 = vmax.f32 %v2150, 0.0
        %v2697 = vmax.f32 %v2155, 0.0
        %v2698 = vmax.f32 %v2158, 0.0
        %v2699 = vmax.f32 %v2163, 0.0
        %v2700 = vmax.f32 %v2166, 0.0
        %v2701 = vmax.f32 %v2171, 0.0
        %v2702 = vmax.f32 %v2174, 0.0
        %v2703 = vmax.f32 %v2179, 0.0
        %v2704 = vmax.f32 %v2182, 0.0
        %v2705 = vmax.f32 %v2187, 0.0
        %v2706 = vmax.f32 %v2190, 0.0
        %v2707 = vmax.f32 %v2195, 0.0
        %v2708 = vmax.f32 %v2198, 0.0
        %v2709 = vmax.f32 %v2203, 0.0
        %v2710 = vmax.f32 %v2206, 0.0
        %v2711 = vmax.f32 %v2211, 0.0
        %v2712 = vmax.f32 %v2214, 0.0
        %v2713 = vmax.f32 %v2219, 0.0
        %v2714 = vmax.f32 %v2222, 0.0
        %v2715 = vmax.f32 %v2227, 0.0
        %v2716 = vmax.f32 %v2230, 0.0
        %v2717 = vmax.f32 %v2235, 0.0
        %v2718 = vmax.f32 %v2238, 0.0
        %v2719 = vmax.f32 %v2243, 0.0
        %v2720 = vmax.f32 %v2246, 0.0
        %v2721 = vmax.f32 %v2251, 0.0
        %v2722 = vmax.f32 %v2254, 0.0
        %v2723 = vmax.f32 %v2259, 0.0
        %v2724 = vmax.f32 %v2262, 0.0
        %v2725 = vmax.f32 %v2267, 0.0
        %v2726 = vmax.f32 %v2270, 0.0
        %v2727 = vmax.f32 %v2275, 0.0
        %v2728 = vmax.f32 %v2278, 0.0
        %v2729 = vmax.f32 %v2283, 0.0
        %v2730 = vmax.f32 %v2286, 0.0
        %v2731 = vmax.f32 %v2291, 0.0
        %v2732 = vmax.f32 %v2294, 0.0
        %v2733 = vmax.f32 %v2299, 0.0
        %v2734 = vmax.f32 %v2302, 0.0
        %v2735 = vmax.f32 %v2307, 0.0
        %v2736 = vmax.f32 %v2310, 0.0
        %v2737 = vmax.f32 %v2315, 0.0
        %v2738 = vmax.f32 %v2318, 0.0
        %v2739 = vmax.f32 %v2323, 0.0
        %v2740 = vmax.f32 %v2326, 0.0
        %v2741 = vmax.f32 %v2331, 0.0
        %v2742 = vmax.f32 %v2334, 0.0
        %v2743 = vmax.f32 %v2339, 0.0
        %v2744 = vmax.f32 %v2342, 0.0
        %v2745 = vmax.f32 %v2347, 0.0
        %v2746 = vmax.f32 %v2350, 0.0
        %v2747 = vmax.f32 %v2355, 0.0
        %v2748 = vmax.f32 %v2358, 0.0
        %v2749 = vmax.f32 %v2363, 0.0
        %v2750 = vmax.f32 %v2366, 0.0
        %v2751 = vmax.f32 %v2371, 0.0
        %v2752 = vmax.f32 %v2374, 0.0
        %v2753 = vmax.f32 %v2379, 0.0
        %v2754 = vmax.f32 %v2382, 0.0
        %v2755 = vmax.f32 %v2387, 0.0
        %v2756 = vmax.f32 %v2390, 0.0
        %v2757 = vmax.f32 %v2395, 0.0
        %v2758 = vmax.f32 %v2398, 0.0
        %v2759 = vmax.f32 %v2403, 0.0
        %v2760 = vmax.f32 %v2406, 0.0
        %v2761 = vmax.f32 %v2411, 0.0
        %v2762 = vmax.f32 %v2414, 0.0
        %v2763 = vmax.f32 %v2419, 0.0
        %v2764 = vmax.f32 %v2422, 0.0
        %v2765 = vmax.f32 %v2427, 0.0
        %v2766 = vmax.f32 %v2430, 0.0
        %v2767 = vmax.f32 %v2435, 0.0
        %v2768 = vmax.f32 %v2438, 0.0
        %v2769 = vmax.f32 %v2443, 0.0
        %v2770 = vmax.f32 %v2446, 0.0
        %v2771 = vmax.f32 %v2451, 0.0
        %v2772 = vmax.f32 %v2454, 0.0
        %v2773 = vmax.f32 %v2459, 0.0
        %v2774 = vmax.f32 %v2462, 0.0
        %v2775 = vmax.f32 %v2467, 0.0
        %v2776 = vmax.f32 %v2470, 0.0
        %v2777 = vmax.f32 %v2475, 0.0
        %v2778 = vmax.f32 %v2478, 0.0
        %v2779 = vmax.f32 %v2483, 0.0
        %v2780 = vmax.f32 %v2486, 0.0
        %v2781 = vmax.f32 %v2491, 0.0
        %v2782 = vmax.f32 %v2494, 0.0
        %v2783 = vmax.f32 %v2499, 0.0
        %v2784 = vmax.f32 %v2502, 0.0
        %v2785 = vmax.f32 %v2507, 0.0
        %v2786 = vmax.f32 %v2510, 0.0
        %v2787 = vmax.f32 %v2515, 0.0
        %v2788 = vmax.f32 %v2518, 0.0
        %v2789 = vmax.f32 %v2523, 0.0
        %v2790 = vmax.f32 %v2526, 0.0
        %v2791 = vmax.f32 %v2531, 0.0
        %v2792 = vmax.f32 %v2534, 0.0
        %v2793 = vmax.f32 %v2539, 0.0
        %v2794 = vmax.f32 %v2542, 0.0
        %v2795 = vmax.f32 %v2547, 0.0
        %v2796 = vmax.f32 %v2550, 0.0
        %v2797 = vmax.f32 %v2555, 0.0
        %v2798 = vmax.f32 %v2558, 0.0
        %v2799 = vmax.f32 %v2563, 0.0
        %v2800 = vmax.f32 %v2566, 0.0
        %v2801 = vmax.f32 %v2571, 0.0
        %v2802 = vmax.f32 %v2574, 0.0
        %v2803 = vmax.f32 %v2579, 0.0
        %v2804 = vmax.f32 %v2582, 0.0
        %v2805 = vmax.f32 %v2587, 0.0
        %v2806 = vmax.f32 %v2590, 0.0
        %v2807 = vmax.f32 %v2595, 0.0
        %v2808 = vmax.f32 %v2598, 0.0
        %v2809 = vmax.f32 %v2603, 0.0
        %v2810 = vmax.f32 %v2606, 0.0
        %v2811 = vmax.f32 %v2611, 0.0
        %v2812 = vmax.f32 %v2614, 0.0
        %v2813 = vmax.f32 %v2619, 0.0
        %v2814 = vmax.f32 %v2622, 0.0
        %v2815 = vmax.f32 %v2627, 0.0
        %v2816 = vmax.f32 %v2630, 0.0
        %v2817 = vmax.f32 %v2635, 0.0
        %v2818 = vmax.f32 %v2638, 0.0
        %v2819 = vmax.f32 %v2643, 0.0
        %v2820 = vmax.f32 %v2646, 0.0
        %v2821 = vmax.f32 %v2651, 0.0
        %v2822 = vmax.f32 %v2654, 0.0
        %v2823 = vmax.f32 %v2659, 0.0
        %v2824 = vmax.f32 %v2662, 0.0
        %v2825 = vld [vmem:[%s5] sm:$0x1]
        %v2826 = vld [vmem:[#allocation2] sm:$0x1]
        %2828 = vset.pattern.permute.xlu0 0
        %2829 = vperm.xlu0 %2828, %v2826
        %v2830 = vpop.permute.xlu0 %2829
        %v2832 = vlaneseq
        %v2833 = vshrl.u32 %v2832, 7
        %v2834 = vsub.s32 0, %v2833
        %v2835 = vrot.slane %v2830, %v2834
        %v2837 = vsel %vm1751, %v2825, 0
        %v2840 = vsel %vm1751, %v2665, 0
        %v2843 = vsel %vm1751, %v2666, 0
        %v2846 = vsel %vm1751, %v2667, 0
        %v2849 = vsel %vm1751, %v2668, 0
        %v2852 = vsel %vm1751, %v2669, 0
        %v2855 = vsel %vm1751, %v2670, 0
        %v2858 = vsel %vm1751, %v2671, 0
        %v2861 = vsel %vm1751, %v2672, 0
        %v2864 = vsel %vm1751, %v2673, 0
        %v2867 = vsel %vm1751, %v2674, 0
        %v2870 = vsel %vm1751, %v2675, 0
        %v2873 = vsel %vm1751, %v2676, 0
        %v2876 = vsel %vm1751, %v2677, 0
        %v2879 = vsel %vm1751, %v2678, 0
        %v2882 = vsel %vm1751, %v2679, 0
        %v2885 = vsel %vm1751, %v2680, 0
        %v2888 = vsel %vm1751, %v2681, 0
        %v2891 = vsel %vm1751, %v2682, 0
        %v2894 = vsel %vm1751, %v2683, 0
        %v2897 = vsel %vm1751, %v2684, 0
        %v2900 = vsel %vm1751, %v2685, 0
        %v2903 = vsel %vm1751, %v2686, 0
        %v2906 = vsel %vm1751, %v2687, 0
        %v2909 = vsel %vm1751, %v2688, 0
        %v2912 = vsel %vm1751, %v2689, 0
        %v2915 = vsel %vm1751, %v2690, 0
        %v2918 = vsel %vm1751, %v2691, 0
        %v2921 = vsel %vm1751, %v2692, 0
        %v2924 = vsel %vm1751, %v2693, 0
        %v2927 = vsel %vm1751, %v2694, 0
        %v2930 = vsel %vm1751, %v2695, 0
        %v2933 = vsel %vm1751, %v2696, 0
        %v2936 = vsel %vm1751, %v2697, 0
        %v2939 = vsel %vm1751, %v2698, 0
        %v2942 = vsel %vm1751, %v2699, 0
        %v2945 = vsel %vm1751, %v2700, 0
        %v2948 = vsel %vm1751, %v2701, 0
        %v2951 = vsel %vm1751, %v2702, 0
        %v2954 = vsel %vm1751, %v2703, 0
        %v2957 = vsel %vm1751, %v2704, 0
        %v2960 = vsel %vm1751, %v2705, 0
        %v2963 = vsel %vm1751, %v2706, 0
        %v2966 = vsel %vm1751, %v2707, 0
        %v2969 = vsel %vm1751, %v2708, 0
        %v2972 = vsel %vm1751, %v2709, 0
        %v2975 = vsel %vm1751, %v2710, 0
        %v2978 = vsel %vm1751, %v2711, 0
        %v2981 = vsel %vm1751, %v2712, 0
        %v2984 = vsel %vm1751, %v2713, 0
        %v2987 = vsel %vm1751, %v2714, 0
        %v2990 = vsel %vm1751, %v2715, 0
        %v2993 = vsel %vm1751, %v2716, 0
        %v2996 = vsel %vm1751, %v2717, 0
        %v2999 = vsel %vm1751, %v2718, 0
        %v3002 = vsel %vm1751, %v2719, 0
        %v3005 = vsel %vm1751, %v2720, 0
        %v3008 = vsel %vm1751, %v2721, 0
        %v3011 = vsel %vm1751, %v2722, 0
        %v3014 = vsel %vm1751, %v2723, 0
        %v3017 = vsel %vm1751, %v2724, 0
        %v3020 = vsel %vm1751, %v2725, 0
        %v3023 = vsel %vm1751, %v2726, 0
        %v3026 = vsel %vm1751, %v2727, 0
        %v3029 = vsel %vm1751, %v2728, 0
        %v3032 = vsel %vm1751, %v2729, 0
        %v3035 = vsel %vm1751, %v2730, 0
        %v3038 = vsel %vm1751, %v2731, 0
        %v3041 = vsel %vm1751, %v2732, 0
        %v3044 = vsel %vm1751, %v2733, 0
        %v3047 = vsel %vm1751, %v2734, 0
        %v3050 = vsel %vm1751, %v2735, 0
        %v3053 = vsel %vm1751, %v2736, 0
        %v3056 = vsel %vm1751, %v2737, 0
        %v3059 = vsel %vm1751, %v2738, 0
        %v3062 = vsel %vm1751, %v2739, 0
        %v3065 = vsel %vm1751, %v2740, 0
        %v3068 = vsel %vm1751, %v2741, 0
        %v3071 = vsel %vm1751, %v2742, 0
        %v3074 = vsel %vm1751, %v2743, 0
        %v3077 = vsel %vm1751, %v2744, 0
        %v3080 = vsel %vm1751, %v2745, 0
        %v3083 = vsel %vm1751, %v2746, 0
        %v3086 = vsel %vm1751, %v2747, 0
        %v3089 = vsel %vm1751, %v2748, 0
        %v3092 = vsel %vm1751, %v2749, 0
        %v3095 = vsel %vm1751, %v2750, 0
        %v3098 = vsel %vm1751, %v2751, 0
        %v3101 = vsel %vm1751, %v2752, 0
        %v3104 = vsel %vm1751, %v2753, 0
        %v3107 = vsel %vm1751, %v2754, 0
        %v3110 = vsel %vm1751, %v2755, 0
        %v3113 = vsel %vm1751, %v2756, 0
        %v3116 = vsel %vm1751, %v2757, 0
        %v3119 = vsel %vm1751, %v2758, 0
        %v3122 = vsel %vm1751, %v2759, 0
        %v3125 = vsel %vm1751, %v2760, 0
        %v3128 = vsel %vm1751, %v2761, 0
        %v3131 = vsel %vm1751, %v2762, 0
        %v3134 = vsel %vm1751, %v2763, 0
        %v3137 = vsel %vm1751, %v2764, 0
        %v3140 = vsel %vm1751, %v2765, 0
        %v3143 = vsel %vm1751, %v2766, 0
        %v3146 = vsel %vm1751, %v2767, 0
        %v3149 = vsel %vm1751, %v2768, 0
        %v3152 = vsel %vm1751, %v2769, 0
        %v3155 = vsel %vm1751, %v2770, 0
        %v3158 = vsel %vm1751, %v2771, 0
        %v3161 = vsel %vm1751, %v2772, 0
        %v3164 = vsel %vm1751, %v2773, 0
        %v3167 = vsel %vm1751, %v2774, 0
        %v3170 = vsel %vm1751, %v2775, 0
        %v3173 = vsel %vm1751, %v2776, 0
        %v3176 = vsel %vm1751, %v2777, 0
        %v3179 = vsel %vm1751, %v2778, 0
        %v3182 = vsel %vm1751, %v2779, 0
        %v3185 = vsel %vm1751, %v2780, 0
        %v3188 = vsel %vm1751, %v2781, 0
        %v3191 = vsel %vm1751, %v2782, 0
        %v3194 = vsel %vm1751, %v2783, 0
        %v3197 = vsel %vm1751, %v2784, 0
        %v3200 = vsel %vm1751, %v2785, 0
        %v3203 = vsel %vm1751, %v2786, 0
        %v3206 = vsel %vm1751, %v2787, 0
        %v3209 = vsel %vm1751, %v2788, 0
        %v3212 = vsel %vm1751, %v2789, 0
        %v3215 = vsel %vm1751, %v2790, 0
        %v3218 = vsel %vm1751, %v2791, 0
        %v3221 = vsel %vm1751, %v2792, 0
        %v3224 = vsel %vm1751, %v2793, 0
        %v3227 = vsel %vm1751, %v2794, 0
        %v3230 = vsel %vm1751, %v2795, 0
        %v3233 = vsel %vm1751, %v2796, 0
        %v3236 = vsel %vm1751, %v2797, 0
        %v3239 = vsel %vm1751, %v2798, 0
        %v3242 = vsel %vm1751, %v2799, 0
        %v3245 = vsel %vm1751, %v2800, 0
        %v3248 = vsel %vm1751, %v2801, 0
        %v3251 = vsel %vm1751, %v2802, 0
        %v3254 = vsel %vm1751, %v2803, 0
        %v3257 = vsel %vm1751, %v2804, 0
        %v3260 = vsel %vm1751, %v2805, 0
        %v3263 = vsel %vm1751, %v2806, 0
        %v3266 = vsel %vm1751, %v2807, 0
        %v3269 = vsel %vm1751, %v2808, 0
        %v3272 = vsel %vm1751, %v2809, 0
        %v3275 = vsel %vm1751, %v2810, 0
        %v3278 = vsel %vm1751, %v2811, 0
        %v3281 = vsel %vm1751, %v2812, 0
        %v3284 = vsel %vm1751, %v2813, 0
        %v3287 = vsel %vm1751, %v2814, 0
        %v3290 = vsel %vm1751, %v2815, 0
        %v3293 = vsel %vm1751, %v2816, 0
        %v3296 = vsel %vm1751, %v2817, 0
        %v3299 = vsel %vm1751, %v2818, 0
        %v3302 = vsel %vm1751, %v2819, 0
        %v3305 = vsel %vm1751, %v2820, 0
        %v3308 = vsel %vm1751, %v2821, 0
        %v3311 = vsel %vm1751, %v2822, 0
        %v3314 = vsel %vm1751, %v2823, 0
        %v3317 = vsel %vm1751, %v2824, 0
        %3319 = vmatprep.subr.mxu0 0.0
        %3320 = vmatpush1.xpose.msra.mxu0 %v2885
        %3321 = vmatprep.subr.mxu0 0.0
        %3322 = vmatpush1.xpose.msra.mxu0 %v2882
        %3323 = vmatprep.subr.mxu0 0.0
        %3324 = vmatpush1.xpose.msra.mxu0 %v2879
        %3325 = vmatprep.subr.mxu0 0.0
        %3326 = vmatpush1.xpose.msra.mxu0 %v2876
        %3327 = vmatprep.subr.mxu0 0.0
        %3328 = vmatpush1.xpose.msra.mxu0 %v2873
        %3329 = vmatprep.subr.mxu0 0.0
        %3330 = vmatpush1.xpose.msra.mxu0 %v2870
        %3331 = vmatprep.subr.mxu0 0.0
        %3332 = vmatpush1.xpose.msra.mxu0 %v2867
        %3333 = vmatprep.subr.mxu0 0.0
        %3334 = vmatpush1.xpose.msra.mxu0 %v2864
        %3335 = vmatprep.subr.mxu0 0.0
        %3336 = vmatpush1.xpose.msra.mxu0 %v2861
        %3337 = vmatprep.subr.mxu0 0.0
        %3338 = vmatpush1.xpose.msra.mxu0 %v2858
        %3339 = vmatprep.subr.mxu0 0.0
        %3340 = vmatpush1.xpose.msra.mxu0 %v2855
        %3341 = vmatprep.subr.mxu0 0.0
        %3342 = vmatpush1.xpose.msra.mxu0 %v2852
        %3343 = vmatprep.subr.mxu0 0.0
        %3344 = vmatpush1.xpose.msra.mxu0 %v2849
        %3345 = vmatprep.subr.mxu0 0.0
        %3346 = vmatpush1.xpose.msra.mxu0 %v2846
        %3347 = vmatprep.subr.mxu0 0.0
        %3348 = vmatpush1.xpose.msra.mxu0 %v2843
        %3349 = vmatprep.subr.mxu0 0.0
        %3350 = vmatpush1.xpose.msra.mxu0 %v2840
        %3351 = vmatprep.subr.mxu0 0.0
        %3352 = vmatpush2.xpose.msra.mxu0 %v2933
        %3353 = vmatprep.subr.mxu0 0.0
        %3354 = vmatpush2.xpose.msra.mxu0 %v2930
        %3355 = vmatprep.subr.mxu0 0.0
        %3356 = vmatpush2.xpose.msra.mxu0 %v2927
        %3357 = vmatprep.subr.mxu0 0.0
        %3358 = vmatpush2.xpose.msra.mxu0 %v2924
        %3359 = vmatprep.subr.mxu0 0.0
        %3360 = vmatpush2.xpose.msra.mxu0 %v2921
        %3361 = vmatprep.subr.mxu0 0.0
        %3362 = vmatpush2.xpose.msra.mxu0 %v2918
        %3363 = vmatprep.subr.mxu0 0.0
        %3364 = vmatpush2.xpose.msra.mxu0 %v2915
        %3365 = vmatprep.subr.mxu0 0.0
        %3366 = vmatpush2.xpose.msra.mxu0 %v2912
        %3367 = vmatprep.subr.mxu0 0.0
        %3368 = vmatpush2.xpose.msra.mxu0 %v2909
        %3369 = vmatprep.subr.mxu0 0.0
        %3370 = vmatpush2.xpose.msra.mxu0 %v2906
        %3371 = vmatprep.subr.mxu0 0.0
        %3372 = vmatpush2.xpose.msra.mxu0 %v2903
        %3373 = vmatprep.subr.mxu0 0.0
        %3374 = vmatpush2.xpose.msra.mxu0 %v2900
        %3375 = vmatprep.subr.mxu0 0.0
        %3376 = vmatpush2.xpose.msra.mxu0 %v2897
        %3377 = vmatprep.subr.mxu0 0.0
        %3378 = vmatpush2.xpose.msra.mxu0 %v2894
        %3379 = vmatprep.subr.mxu0 0.0
        %3380 = vmatpush2.xpose.msra.mxu0 %v2891
        %3381 = vmatprep.subr.mxu0 0.0
        %3382 = vmatpush2.xpose.msra.mxu0 %v2888
        %3383 = vmatprep.mubr.f32.mxu0 0.0
        %3384 = vmatmul.mubr.f32.gmra.mxu0 %v2837
        %v3385 = vpop.f32.mrf.mxu0
        %v3386 = vadd.f32 %v2835, %v3385
        %v3387 = vpop.f32.mrf.mxu0
        %v3388 = vadd.f32 %v2835, %v3387
        %3389 = vdwg.mxu0
        %3390 = vmatprep.subr.mxu0 0.0
        %3391 = vmatpush1.xpose.msra.mxu0 %v2981
        %3392 = vmatprep.subr.mxu0 0.0
        %3393 = vmatpush1.xpose.msra.mxu0 %v2978
        %3394 = vmatprep.subr.mxu0 0.0
        %3395 = vmatpush1.xpose.msra.mxu0 %v2975
        %3396 = vmatprep.subr.mxu0 0.0
        %3397 = vmatpush1.xpose.msra.mxu0 %v2972
        %3398 = vmatprep.subr.mxu0 0.0
        %3399 = vmatpush1.xpose.msra.mxu0 %v2969
        %3400 = vmatprep.subr.mxu0 0.0
        %3401 = vmatpush1.xpose.msra.mxu0 %v2966
        %3402 = vmatprep.subr.mxu0 0.0
        %3403 = vmatpush1.xpose.msra.mxu0 %v2963
        %3404 = vmatprep.subr.mxu0 0.0
        %3405 = vmatpush1.xpose.msra.mxu0 %v2960
        %3406 = vmatprep.subr.mxu0 0.0
        %3407 = vmatpush1.xpose.msra.mxu0 %v2957
        %3408 = vmatprep.subr.mxu0 0.0
        %3409 = vmatpush1.xpose.msra.mxu0 %v2954
        %3410 = vmatprep.subr.mxu0 0.0
        %3411 = vmatpush1.xpose.msra.mxu0 %v2951
        %3412 = vmatprep.subr.mxu0 0.0
        %3413 = vmatpush1.xpose.msra.mxu0 %v2948
        %3414 = vmatprep.subr.mxu0 0.0
        %3415 = vmatpush1.xpose.msra.mxu0 %v2945
        %3416 = vmatprep.subr.mxu0 0.0
        %3417 = vmatpush1.xpose.msra.mxu0 %v2942
        %3418 = vmatprep.subr.mxu0 0.0
        %3419 = vmatpush1.xpose.msra.mxu0 %v2939
        %3420 = vmatprep.subr.mxu0 0.0
        %3421 = vmatpush1.xpose.msra.mxu0 %v2936
        %3422 = vmatprep.subr.mxu0 0.0
        %3423 = vmatpush2.xpose.msra.mxu0 %v3029
        %3424 = vmatprep.subr.mxu0 0.0
        %3425 = vmatpush2.xpose.msra.mxu0 %v3026
        %3426 = vmatprep.subr.mxu0 0.0
        %3427 = vmatpush2.xpose.msra.mxu0 %v3023
        %3428 = vmatprep.subr.mxu0 0.0
        %3429 = vmatpush2.xpose.msra.mxu0 %v3020
        %3430 = vmatprep.subr.mxu0 0.0
        %3431 = vmatpush2.xpose.msra.mxu0 %v3017
        %3432 = vmatprep.subr.mxu0 0.0
        %3433 = vmatpush2.xpose.msra.mxu0 %v3014
        %3434 = vmatprep.subr.mxu0 0.0
        %3435 = vmatpush2.xpose.msra.mxu0 %v3011
        %3436 = vmatprep.subr.mxu0 0.0
        %3437 = vmatpush2.xpose.msra.mxu0 %v3008
        %3438 = vmatprep.subr.mxu0 0.0
        %3439 = vmatpush2.xpose.msra.mxu0 %v3005
        %3440 = vmatprep.subr.mxu0 0.0
        %3441 = vmatpush2.xpose.msra.mxu0 %v3002
        %3442 = vmatprep.subr.mxu0 0.0
        %3443 = vmatpush2.xpose.msra.mxu0 %v2999
        %3444 = vmatprep.subr.mxu0 0.0
        %3445 = vmatpush2.xpose.msra.mxu0 %v2996
        %3446 = vmatprep.subr.mxu0 0.0
        %3447 = vmatpush2.xpose.msra.mxu0 %v2993
        %3448 = vmatprep.subr.mxu0 0.0
        %3449 = vmatpush2.xpose.msra.mxu0 %v2990
        %3450 = vmatprep.subr.mxu0 0.0
        %3451 = vmatpush2.xpose.msra.mxu0 %v2987
        %3452 = vmatprep.subr.mxu0 0.0
        %3453 = vmatpush2.xpose.msra.mxu0 %v2984
        %3454 = vmatprep.mubr.f32.mxu0 0.0
        %3455 = vmatmul.mubr.f32.gmra.mxu0 %v2837
        %v3456 = vpop.f32.mrf.mxu0
        %v3457 = vadd.f32 %v2835, %v3456
        %v3458 = vpop.f32.mrf.mxu0
        %v3459 = vadd.f32 %v2835, %v3458
        %3460 = vdwg.mxu0
        %3461 = vmatprep.subr.mxu0 0.0
        %3462 = vmatpush1.xpose.msra.mxu0 %v3077
        %3463 = vmatprep.subr.mxu0 0.0
        %3464 = vmatpush1.xpose.msra.mxu0 %v3074
        %3465 = vmatprep.subr.mxu0 0.0
        %3466 = vmatpush1.xpose.msra.mxu0 %v3071
        %3467 = vmatprep.subr.mxu0 0.0
        %3468 = vmatpush1.xpose.msra.mxu0 %v3068
        %3469 = vmatprep.subr.mxu0 0.0
        %3470 = vmatpush1.xpose.msra.mxu0 %v3065
        %3471 = vmatprep.subr.mxu0 0.0
        %3472 = vmatpush1.xpose.msra.mxu0 %v3062
        %3473 = vmatprep.subr.mxu0 0.0
        %3474 = vmatpush1.xpose.msra.mxu0 %v3059
        %3475 = vmatprep.subr.mxu0 0.0
        %3476 = vmatpush1.xpose.msra.mxu0 %v3056
        %3477 = vmatprep.subr.mxu0 0.0
        %3478 = vmatpush1.xpose.msra.mxu0 %v3053
        %3479 = vmatprep.subr.mxu0 0.0
        %3480 = vmatpush1.xpose.msra.mxu0 %v3050
        %3481 = vmatprep.subr.mxu0 0.0
        %3482 = vmatpush1.xpose.msra.mxu0 %v3047
        %3483 = vmatprep.subr.mxu0 0.0
        %3484 = vmatpush1.xpose.msra.mxu0 %v3044
        %3485 = vmatprep.subr.mxu0 0.0
        %3486 = vmatpush1.xpose.msra.mxu0 %v3041
        %3487 = vmatprep.subr.mxu0 0.0
        %3488 = vmatpush1.xpose.msra.mxu0 %v3038
        %3489 = vmatprep.subr.mxu0 0.0
        %3490 = vmatpush1.xpose.msra.mxu0 %v3035
        %3491 = vmatprep.subr.mxu0 0.0
        %3492 = vmatpush1.xpose.msra.mxu0 %v3032
        %3493 = vmatprep.subr.mxu0 0.0
        %3494 = vmatpush2.xpose.msra.mxu0 %v3125
        %3495 = vmatprep.subr.mxu0 0.0
        %3496 = vmatpush2.xpose.msra.mxu0 %v3122
        %3497 = vmatprep.subr.mxu0 0.0
        %3498 = vmatpush2.xpose.msra.mxu0 %v3119
        %3499 = vmatprep.subr.mxu0 0.0
        %3500 = vmatpush2.xpose.msra.mxu0 %v3116
        %3501 = vmatprep.subr.mxu0 0.0
        %3502 = vmatpush2.xpose.msra.mxu0 %v3113
        %3503 = vmatprep.subr.mxu0 0.0
        %3504 = vmatpush2.xpose.msra.mxu0 %v3110
        %3505 = vmatprep.subr.mxu0 0.0
        %3506 = vmatpush2.xpose.msra.mxu0 %v3107
        %3507 = vmatprep.subr.mxu0 0.0
        %3508 = vmatpush2.xpose.msra.mxu0 %v3104
        %3509 = vmatprep.subr.mxu0 0.0
        %3510 = vmatpush2.xpose.msra.mxu0 %v3101
        %3511 = vmatprep.subr.mxu0 0.0
        %3512 = vmatpush2.xpose.msra.mxu0 %v3098
        %3513 = vmatprep.subr.mxu0 0.0
        %3514 = vmatpush2.xpose.msra.mxu0 %v3095
        %3515 = vmatprep.subr.mxu0 0.0
        %3516 = vmatpush2.xpose.msra.mxu0 %v3092
        %3517 = vmatprep.subr.mxu0 0.0
        %3518 = vmatpush2.xpose.msra.mxu0 %v3089
        %3519 = vmatprep.subr.mxu0 0.0
        %3520 = vmatpush2.xpose.msra.mxu0 %v3086
        %3521 = vmatprep.subr.mxu0 0.0
        %3522 = vmatpush2.xpose.msra.mxu0 %v3083
        %3523 = vmatprep.subr.mxu0 0.0
        %3524 = vmatpush2.xpose.msra.mxu0 %v3080
        %3525 = vmatprep.mubr.f32.mxu0 0.0
        %3526 = vmatmul.mubr.f32.gmra.mxu0 %v2837
        %v3527 = vpop.f32.mrf.mxu0
        %v3528 = vadd.f32 %v2835, %v3527
        %v3529 = vpop.f32.mrf.mxu0
        %v3530 = vadd.f32 %v2835, %v3529
        %3531 = vdwg.mxu0
        %3532 = vmatprep.subr.mxu0 0.0
        %3533 = vmatpush1.xpose.msra.mxu0 %v3173
        %3534 = vmatprep.subr.mxu0 0.0
        %3535 = vmatpush1.xpose.msra.mxu0 %v3170
        %3536 = vmatprep.subr.mxu0 0.0
        %3537 = vmatpush1.xpose.msra.mxu0 %v3167
        %3538 = vmatprep.subr.mxu0 0.0
        %3539 = vmatpush1.xpose.msra.mxu0 %v3164
        %3540 = vmatprep.subr.mxu0 0.0
        %3541 = vmatpush1.xpose.msra.mxu0 %v3161
        %3542 = vmatprep.subr.mxu0 0.0
        %3543 = vmatpush1.xpose.msra.mxu0 %v3158
        %3544 = vmatprep.subr.mxu0 0.0
        %3545 = vmatpush1.xpose.msra.mxu0 %v3155
        %3546 = vmatprep.subr.mxu0 0.0
        %3547 = vmatpush1.xpose.msra.mxu0 %v3152
        %3548 = vmatprep.subr.mxu0 0.0
        %3549 = vmatpush1.xpose.msra.mxu0 %v3149
        %3550 = vmatprep.subr.mxu0 0.0
        %3551 = vmatpush1.xpose.msra.mxu0 %v3146
        %3552 = vmatprep.subr.mxu0 0.0
        %3553 = vmatpush1.xpose.msra.mxu0 %v3143
        %3554 = vmatprep.subr.mxu0 0.0
        %3555 = vmatpush1.xpose.msra.mxu0 %v3140
        %3556 = vmatprep.subr.mxu0 0.0
        %3557 = vmatpush1.xpose.msra.mxu0 %v3137
        %3558 = vmatprep.subr.mxu0 0.0
        %3559 = vmatpush1.xpose.msra.mxu0 %v3134
        %3560 = vmatprep.subr.mxu0 0.0
        %3561 = vmatpush1.xpose.msra.mxu0 %v3131
        %3562 = vmatprep.subr.mxu0 0.0
        %3563 = vmatpush1.xpose.msra.mxu0 %v3128
        %3564 = vmatprep.subr.mxu0 0.0
        %3565 = vmatpush2.xpose.msra.mxu0 %v3221
        %3566 = vmatprep.subr.mxu0 0.0
        %3567 = vmatpush2.xpose.msra.mxu0 %v3218
        %3568 = vmatprep.subr.mxu0 0.0
        %3569 = vmatpush2.xpose.msra.mxu0 %v3215
        %3570 = vmatprep.subr.mxu0 0.0
        %3571 = vmatpush2.xpose.msra.mxu0 %v3212
        %3572 = vmatprep.subr.mxu0 0.0
        %3573 = vmatpush2.xpose.msra.mxu0 %v3209
        %3574 = vmatprep.subr.mxu0 0.0
        %3575 = vmatpush2.xpose.msra.mxu0 %v3206
        %3576 = vmatprep.subr.mxu0 0.0
        %3577 = vmatpush2.xpose.msra.mxu0 %v3203
        %3578 = vmatprep.subr.mxu0 0.0
        %3579 = vmatpush2.xpose.msra.mxu0 %v3200
        %3580 = vmatprep.subr.mxu0 0.0
        %3581 = vmatpush2.xpose.msra.mxu0 %v3197
        %3582 = vmatprep.subr.mxu0 0.0
        %3583 = vmatpush2.xpose.msra.mxu0 %v3194
        %3584 = vmatprep.subr.mxu0 0.0
        %3585 = vmatpush2.xpose.msra.mxu0 %v3191
        %3586 = vmatprep.subr.mxu0 0.0
        %3587 = vmatpush2.xpose.msra.mxu0 %v3188
        %3588 = vmatprep.subr.mxu0 0.0
        %3589 = vmatpush2.xpose.msra.mxu0 %v3185
        %3590 = vmatprep.subr.mxu0 0.0
        %3591 = vmatpush2.xpose.msra.mxu0 %v3182
        %3592 = vmatprep.subr.mxu0 0.0
        %3593 = vmatpush2.xpose.msra.mxu0 %v3179
        %3594 = vmatprep.subr.mxu0 0.0
        %3595 = vmatpush2.xpose.msra.mxu0 %v3176
        %3596 = vmatprep.mubr.f32.mxu0 0.0
        %3597 = vmatmul.mubr.f32.gmra.mxu0 %v2837
        %v3598 = vpop.f32.mrf.mxu0
        %v3599 = vadd.f32 %v2835, %v3598
        %v3600 = vpop.f32.mrf.mxu0
        %v3601 = vadd.f32 %v2835, %v3600
        %3602 = vdwg.mxu0
        %3603 = vmatprep.subr.mxu0 0.0
        %3604 = vmatpush1.xpose.msra.mxu0 %v3269
        %3605 = vmatprep.subr.mxu0 0.0
        %3606 = vmatpush1.xpose.msra.mxu0 %v3266
        %3607 = vmatprep.subr.mxu0 0.0
        %3608 = vmatpush1.xpose.msra.mxu0 %v3263
        %3609 = vmatprep.subr.mxu0 0.0
        %3610 = vmatpush1.xpose.msra.mxu0 %v3260
        %3611 = vmatprep.subr.mxu0 0.0
        %3612 = vmatpush1.xpose.msra.mxu0 %v3257
        %3613 = vmatprep.subr.mxu0 0.0
        %3614 = vmatpush1.xpose.msra.mxu0 %v3254
        %3615 = vmatprep.subr.mxu0 0.0
        %3616 = vmatpush1.xpose.msra.mxu0 %v3251
        %3617 = vmatprep.subr.mxu0 0.0
        %3618 = vmatpush1.xpose.msra.mxu0 %v3248
        %3619 = vmatprep.subr.mxu0 0.0
        %3620 = vmatpush1.xpose.msra.mxu0 %v3245
        %3621 = vmatprep.subr.mxu0 0.0
        %3622 = vmatpush1.xpose.msra.mxu0 %v3242
        %3623 = vmatprep.subr.mxu0 0.0
        %3624 = vmatpush1.xpose.msra.mxu0 %v3239
        %3625 = vmatprep.subr.mxu0 0.0
        %3626 = vmatpush1.xpose.msra.mxu0 %v3236
        %3627 = vmatprep.subr.mxu0 0.0
        %3628 = vmatpush1.xpose.msra.mxu0 %v3233
        %3629 = vmatprep.subr.mxu0 0.0
        %3630 = vmatpush1.xpose.msra.mxu0 %v3230
        %3631 = vmatprep.subr.mxu0 0.0
        %3632 = vmatpush1.xpose.msra.mxu0 %v3227
        %3633 = vmatprep.subr.mxu0 0.0
        %3634 = vmatpush1.xpose.msra.mxu0 %v3224
        %3635 = vmatprep.subr.mxu0 0.0
        %3636 = vmatpush2.xpose.msra.mxu0 %v3317
        %3637 = vmatprep.subr.mxu0 0.0
        %3638 = vmatpush2.xpose.msra.mxu0 %v3314
        %3639 = vmatprep.subr.mxu0 0.0
        %3640 = vmatpush2.xpose.msra.mxu0 %v3311
        %3641 = vmatprep.subr.mxu0 0.0
        %3642 = vmatpush2.xpose.msra.mxu0 %v3308
        %3643 = vmatprep.subr.mxu0 0.0
        %3644 = vmatpush2.xpose.msra.mxu0 %v3305
        %3645 = vmatprep.subr.mxu0 0.0
        %3646 = vmatpush2.xpose.msra.mxu0 %v3302
        %3647 = vmatprep.subr.mxu0 0.0
        %3648 = vmatpush2.xpose.msra.mxu0 %v3299
        %3649 = vmatprep.subr.mxu0 0.0
        %3650 = vmatpush2.xpose.msra.mxu0 %v3296
        %3651 = vmatprep.subr.mxu0 0.0
        %3652 = vmatpush2.xpose.msra.mxu0 %v3293
        %3653 = vmatprep.subr.mxu0 0.0
        %3654 = vmatpush2.xpose.msra.mxu0 %v3290
        %3655 = vmatprep.subr.mxu0 0.0
        %3656 = vmatpush2.xpose.msra.mxu0 %v3287
        %3657 = vmatprep.subr.mxu0 0.0
        %3658 = vmatpush2.xpose.msra.mxu0 %v3284
        %3659 = vmatprep.subr.mxu0 0.0
        %3660 = vmatpush2.xpose.msra.mxu0 %v3281
        %3661 = vmatprep.subr.mxu0 0.0
        %3662 = vmatpush2.xpose.msra.mxu0 %v3278
        %3663 = vmatprep.subr.mxu0 0.0
        %3664 = vmatpush2.xpose.msra.mxu0 %v3275
        %3665 = vmatprep.subr.mxu0 0.0
        %3666 = vmatpush2.xpose.msra.mxu0 %v3272
        %3667 = vmatprep.mubr.f32.mxu0 0.0
        %3668 = vmatmul.mubr.f32.gmra.mxu0 %v2837
        %v3669 = vpop.f32.mrf.mxu0
        %v3670 = vadd.f32 %v2835, %v3669
        %v3671 = vpop.f32.mrf.mxu0
        %v3672 = vadd.f32 %v2835, %v3671
        %3673 = vdwg.mxu0
        %v3684 = vcombine.low %v3386, %v3388
        %v3685 = vcombine.low %v3457, %v3459
        %v3686 = vcombine.low %v3528, %v3530
        %v3687 = vcombine.low %v3599, %v3601
        %v3689 = vunpack.c.l.s4 1966171168
        %v3690 = vunpack.c.0.s8 %v3689
        %v3691 = vlaneseq
        %v3692 = vshrl.u32 %v3691, 7
        %v3693 = vsub.s32 %v3690, %v3692
        %v3694 = vrot.slane %v3684, %v3693
        %v3696 = vunpack.c.l.s4 1966171168
        %v3697 = vunpack.c.0.s8 %v3696
        %v3698 = vlaneseq
        %v3699 = vshrl.u32 %v3698, 7
        %v3700 = vsub.s32 %v3697, %v3699
        %v3701 = vrot.slane %v3685, %v3700
        %v3703 = vunpack.c.l.s4 1966171168
        %v3704 = vunpack.c.0.s8 %v3703
        %v3705 = vlaneseq
        %v3706 = vshrl.u32 %v3705, 7
        %v3707 = vsub.s32 %v3704, %v3706
        %v3708 = vrot.slane %v3686, %v3707
        %v3710 = vunpack.c.l.s4 1966171168
        %v3711 = vunpack.c.0.s8 %v3710
        %v3712 = vlaneseq
        %v3713 = vshrl.u32 %v3712, 7
        %v3714 = vsub.s32 %v3711, %v3713
        %v3715 = vrot.slane %v3687, %v3714
        %v3716 = vcombine.low %v3694, %v3701
        %v3717 = vcombine.low %v3708, %v3715
        %v3719 = vunpack.c.l.s4 1966171168
        %v3720 = vunpack.c.0.s8 %v3719
        %v3721 = vlaneseq
        %v3722 = vshrl.u32 %v3721, 7
        %v3723 = vsub.s32 %v3720, %v3722
        %v3724 = vrot.slane %v3716, %v3723
        %v3726 = vunpack.c.l.s4 1966171168
        %v3727 = vunpack.c.0.s8 %v3726
        %v3728 = vlaneseq
        %v3729 = vshrl.u32 %v3728, 7
        %v3730 = vsub.s32 %v3727, %v3729
        %v3731 = vrot.slane %v3717, %v3730
        %v3732 = vcombine.low %v3724, %v3731
        %v3733 = vcombine.low %v3670, %v3672
        %v3735 = vunpack.c.l.s4 1966171168
        %v3736 = vunpack.c.0.s8 %v3735
        %v3737 = vlaneseq
        %v3738 = vshrl.u32 %v3737, 7
        %v3739 = vsub.s32 %v3736, %v3738
        %v3740 = vrot.slane %v3733, %v3739
        %v3742 = vunpack.c.l.s4 1966171168
        %v3743 = vunpack.c.0.s8 %v3742
        %v3744 = vlaneseq
        %v3745 = vshrl.u32 %v3744, 7
        %v3746 = vsub.s32 %v3743, %v3745
        %v3747 = vrot.slane %v3740, %v3746
        %3750 = vst [vmem:[%s286] sm:$0xff] %v3732
        %v3751 = vlaneseq
        %vm3752 = vcmp.ge.s32.totalorder %v3751, 0
        %vm3753 = vcmp.lt.s32.totalorder %v3751, 256
        %vm3754 = vmand %vm3752, %vm3753
        %3755 = vst.msk [vmem:[%s286 + $0x8] sm:$0x3] %vm3754, %v3747
        %s3756 = sand.u32 %s183, 1
        %s3757 = scalar_lea.sflag [#allocation4], %s3756
        %s3758 = sand.u32 %s183, 1
        %s3759 = smul.addr %s3758, 10
        %s3760 = scalar_lea.vmem [#allocation3], %s3759
        // Predicated region
        $region49: #{tpu_custom_call.1} parent=47 // pred_check
          %p3761 = pneg %p193
        $region50: #{tpu_custom_call.1} parent=47 // pred_check_branch
          %3763 = sbr.rel (%p3761) target = $region52
        $region51: #{tpu_custom_call.1} parent=47 // pred_region
          %s3764 = smul.u32 10, %s23
          %s3766 = ssub.s32 160, 160
          %3767 = vsyncadd %s3757, %s3766
          %s3768 = smul.addr %s3764, 16
          %s3769 = scalar_lea.hbm %s7, %s3768
          %s3771 = sshll.u32 %s3760, 4
          %s3772 = int_to_ptr.vmem [resolvable:$true] %s3771
          %3774 = dma.vmem_to_hbm [thread:$0]  %s3772, 160, %s3769, %s3757
        $region52: #{tpu_custom_call.1} parent=47 // pred_fallthru
          _
      $region48: #{tpu_custom_call.1} parent=5 // pred_fallthru
        _
      %p3775 = scmp.le.s32.totalorder 2, %s18
      // Predicated region
      $region53: #{tpu_custom_call.1} parent=5 // pred_check
        %p3776 = pneg %p3775
      $region54: #{tpu_custom_call.1} parent=5 // pred_check_branch
        %3778 = sbr.rel (%p3776) target = $region56
      $region55: #{tpu_custom_call.1} parent=5 // pred_region
        %s3779 = ssub.s32 %s18, 2
        // Predicated region
        $region57: #{tpu_custom_call.1} parent=55 // pred_check
          %p3780 = pneg %p199
        $region58: #{tpu_custom_call.1} parent=55 // pred_check_branch
          %3782 = sbr.rel (%p3780) target = $region60
        $region59: #{tpu_custom_call.1} parent=55 // pred_region
          %s3783 = sand.u32 %s184, 1
          %s3784 = scalar_lea.sflag [#allocation4], %s3783
          %s3785 = sand.u32 %s184, 1
          %s3786 = smul.addr %s3785, 10
          %s3787 = scalar_lea.vmem [#allocation3], %s3786
          %3788 = dma.done %s3784, 160
        $region60: #{tpu_custom_call.1} parent=55 // pred_fallthru
          _
      $region56: #{tpu_custom_call.1} parent=5 // pred_fallthru
        _
    $region6: #{tpu_custom_call.1} parent=1 // loop_footer
      %s22 = sadd.s32 1, %s18
    $region7: #{tpu_custom_call.1} parent=1 // loop_footer_branch
      %17 = sbr.rel target = $region3
    $region8: #{tpu_custom_call.1} parent=1 // loop_exit
      _
    %3789 = vsyncpa [#allocation4], 1
    %s3790 = scalar_lea.sflag [#allocation4], 1
    %3791 = vsyncpa %s3790, 1

</llo_original>
